<compile_context>
chip_gen: v6e
topology: v6e:2x2x1
jax: 0.10.0
libtpu: 0.0.40
codegen_flags: <defaults>
</compile_context>

<pallas_src>
import functools
import math

import jax
import jax.numpy as jnp
from jax.experimental import pallas as pl
from jax.experimental.pallas import tpu as pltpu


def _round_up(x, m):
    return (x + m - 1) // m * m


def upblock3d_kernel(x_ref, skip_ref, wg_ref, bg_ref, wc_ref, bc_ref,
                     wup_ref, bup_ref, o_ref, y_scr,
                     *, taps, m_out, off_r, rb, lanes):
    """One batch element per grid step.  All refs are VMEM blocks.

    x_ref, skip_ref : (rb, lanes)        zero-padded volume; rows=(d_pad, h_pad),
                                         lanes=(w_pad, C)      [lane-dense]
    wg_ref, wc_ref  : (9, lanes, lanes)  banded conv taps per (kd, kh); the kw sum
                                         (and, for wg, the +1 width shift) is baked in
    bg_ref, bc_ref  : (1, lanes)
    wup_ref         : (lanes, n_up)      block-diagonal ConvTranspose weights,
                                         n_up lanes = (w, kd, kh, kw, c_out)
    bup_ref         : (1, n_up)
    o_ref           : (m_out, n_up)      rows = (d, h) in unpadded output coords
    y_scr           : (rb, lanes)        gated residual, padded layout
    """
    f32 = jnp.float32

    # ---- stage 1: gate = sigmoid(conv3d(skip) + bias)   (BN folded) ------------
    # 9 banded (lanes x lanes) matmuls; tap 0 initialises the accumulator and the
    # bias is added once at the end (no zeros+bias broadcast store).
    acc = jnp.dot(skip_ref[pl.ds(taps[0], m_out), :], wg_ref[0],
                  preferred_element_type=f32)
    for i in range(1, len(taps)):
        acc = acc + jnp.dot(skip_ref[pl.ds(taps[i], m_out), :], wg_ref[i],
                            preferred_element_type=f32)
    # sigmoid via EUP exp + approx reciprocal (both off the VPU critical path).
    gate = pl.reciprocal(1.0 + jnp.exp(-(acc + bg_ref[...])), approx=True)

    # ---- gated residual, written back in the *padded* layout -------------------
    # gate row r corresponds to padded row r + off_r (off_r = Hl + 1) and its lane
    # blocks are already in padded width coordinates (width shift baked into wg),
    # so only a static row offset is needed.  Rows outside [off_r, off_r + m_out)
    # are pure padding -> zero.  Zero fills use 8-aligned ranges; the main store
    # afterwards overwrites the small overlap.
    lead = (off_r + 7) // 8 * 8
    tail_start = (off_r + m_out) // 8 * 8
    y_scr[pl.ds(0, lead), :] = jnp.zeros((lead, lanes), f32)
    y_scr[pl.ds(tail_start, rb - tail_start), :] = jnp.zeros((rb - tail_start, lanes), f32)
    y_scr[pl.ds(off_r, m_out), :] = (x_ref[pl.ds(off_r, m_out), :]
                                     + skip_ref[pl.ds(off_r, m_out), :] * gate)

    # ---- stage 2: y2 = relu(conv3d(y) + bias)   (BN folded) --------------------
    acc2 = jnp.dot(y_scr[pl.ds(taps[0], m_out), :], wc_ref[0],
                   preferred_element_type=f32)
    for i in range(1, len(taps)):
        acc2 = acc2 + jnp.dot(y_scr[pl.ds(taps[i], m_out), :], wc_ref[i],
                              preferred_element_type=f32)
    y2 = jnp.maximum(acc2 + bc_ref[...], 0.0)

    # ---- stage 3: ConvTranspose3d(k=2, s=2) == one lane-dense matmul ------------
    o_ref[...] = (jnp.dot(y2, wup_ref[...], preferred_element_type=f32)
                  + bup_ref[...])


@jax.jit
def upblock3d(x, skip, params):
    """x, skip: (B, C, D, H, W) float32 -> (B, C_out, 2D, 2H, 2W) float32."""
    eps = 1e-5
    B, C, D, H, W = x.shape
    C_out = params["wup"].shape[1]

    # ---- layout choices ---------------------------------------------------------
    # lanes = (padded width, channels), Wl chosen so Wl*C is a multiple of 128
    # (lane-dense loads/stores + a real MXU K/N); rows = (padded depth, padded
    # height) with Hl a multiple of 8 so kd tap row-shifts are sublane aligned.
    Wl = _round_up(W + 2, 128 // math.gcd(128, C))
    Hl = _round_up(H + 2, 8)
    Dl = D + 3                    # 1 front + 2 back zero d-slices: the extra slice
                                  # is the in-block tail so shifted tap reads never
                                  # leave the per-batch block (per-block halo).
    LANES = Wl * C
    Rb = Dl * Hl                  # rows per batch block (multiple of 8)
    Mout = D * Hl                 # output rows per batch block (multiple of 8)
    N_UP = Wl * 8 * C_out         # output lanes = (w, kd, kh, kw, c_out)
    off_r = Hl + 1                # padded-row offset of the unpadded origin
    taps = tuple(kd * Hl + kh for kd in range(3) for kh in range(3))

    # ---- inputs: one transpose + one pad + one reshape per tensor ---------------
    def to_flat(v):
        v = jnp.transpose(v, (0, 2, 3, 4, 1))                          # (B,D,H,W,C)
        v = jnp.pad(v, ((0, 0), (1, Dl - D - 1), (1, Hl - H - 1),
                        (1, Wl - W - 1), (0, 0)))                      # (B,Dl,Hl,Wl,C)
        return v.reshape(B * Rb, LANES)

    x_flat, skip_flat = to_flat(x), to_flat(skip)

    # ---- fold eval-mode BatchNorm and build banded / block-diagonal weights -----
    def fold_bn(w, b, mean, var, gamma, beta, width_shift):
        s = gamma / jnp.sqrt(var + eps)                   # per-out-channel scale
        w_f = w * s[:, None, None, None, None]            # (co, ci, kd, kh, kw)
        b_f = b * s + beta - mean * s
        w_t = jnp.transpose(w_f, (2, 3, 4, 1, 0))         # (kd, kh, kw, ci, co)
        # banded width coupling: output lane block wo reads input lane block
        # wi = wo + kw - width_shift  ->  eye(Wl, k = width_shift - kw), [wi, wo].
        shift = jnp.stack([jnp.eye(Wl, k=width_shift - kw, dtype=w.dtype)
                           for kw in range(3)])           # (3, Wl, Wl)
        big = jnp.einsum('kab,dhkij->dhaibj', shift, w_t)  # (3,3,Wl,C,Wl,C)
        return big.reshape(9, LANES, LANES), jnp.tile(b_f, Wl).reshape(1, LANES)

    # gate conv: output lanes in padded width coords (width_shift=1) so the gated
    # residual needs no lane roll; conv branch keeps unshifted output coords.
    wg_big, bg_big = fold_bn(params["wg"], params["bg"], params["g_mean"],
                             params["g_var"], params["g_gamma"], params["g_beta"],
                             width_shift=1)
    wc_big, bc_big = fold_bn(params["wc"], params["bc"], params["c_mean"],
                             params["c_var"], params["c_gamma"], params["c_beta"],
                             width_shift=0)

    # ConvTranspose3d (C, C_out, 2,2,2) -> block-diagonal (LANES, N_UP)
    wup_r = jnp.transpose(params["wup"], (0, 2, 3, 4, 1)).reshape(C, 8 * C_out)
    wup_big = jnp.einsum('ab,ij->aibj', jnp.eye(Wl, dtype=wup_r.dtype),
                         wup_r).reshape(LANES, N_UP)
    bup_big = jnp.tile(params["bup"], Wl * 8).reshape(1, N_UP)

    kernel = functools.partial(upblock3d_kernel, taps=taps, m_out=Mout,
                               off_r=off_r, rb=Rb, lanes=LANES)

    # cost estimate + VMEM budget derived from the actual block shapes.
    flops = B * (2 * 9 * 2 * Mout * LANES * LANES        # two banded 3x3x3 convs
                 + 2 * Mout * LANES * N_UP                # transposed conv
                 + 6 * Mout * LANES)                      # gate / residual / relu
    bytes_accessed = 4 * (2 * B * Rb * LANES + B * Mout * N_UP
                          + 2 * 9 * LANES * LANES + LANES * N_UP
                          + 2 * LANES + N_UP)
    block_bytes = 4 * (2 * Rb * LANES                     # x + skip blocks
                       + Mout * N_UP                      # output block
                       + 2 * 9 * LANES * LANES + LANES * N_UP   # weights
                       + 2 * LANES + N_UP)                # biases
    scratch_bytes = 4 * Rb * LANES
    # double-buffered blocks + scratch + headroom; cap below v7x's 64 MiB physical.
    vmem_bytes = int(min(2 * block_bytes + scratch_bytes + (8 << 20), 48 << 20))

    out_flat = pl.pallas_call(
        kernel,
        out_shape=jax.ShapeDtypeStruct((B * Mout, N_UP), jnp.float32),
        grid=(B,),
        in_specs=[
            pl.BlockSpec((Rb, LANES), lambda b: (b, 0)),            # x
            pl.BlockSpec((Rb, LANES), lambda b: (b, 0)),            # skip
            pl.BlockSpec((9, LANES, LANES), lambda b: (0, 0, 0)),   # gate conv taps
            pl.BlockSpec((1, LANES), lambda b: (0, 0)),             # gate bias
            pl.BlockSpec((9, LANES, LANES), lambda b: (0, 0, 0)),   # conv taps
            pl.BlockSpec((1, LANES), lambda b: (0, 0)),             # conv bias
            pl.BlockSpec((LANES, N_UP), lambda b: (0, 0)),          # up-conv weight
            pl.BlockSpec((1, N_UP), lambda b: (0, 0)),              # up-conv bias
        ],
        out_specs=pl.BlockSpec((Mout, N_UP), lambda b: (b, 0)),
        scratch_shapes=[pltpu.VMEM((Rb, LANES), jnp.float32)],
        compiler_params=pltpu.CompilerParams(
            dimension_semantics=("parallel",),      # batch across v7x's 2 TCs
            vmem_limit_bytes=vmem_bytes),
        cost_estimate=pl.CostEstimate(flops=flops,
                                      transcendentals=B * Mout * LANES,
                                      bytes_accessed=bytes_accessed),
    )(x_flat, skip_flat, wg_big, bg_big, wc_big, bc_big, wup_big, bup_big)

    # ---- scatter the (kd,kh,kw) lane groups back to the 2x upsampled NCDHW volume
    # TODO(synk): if the consumer accepts the channels-last (w,kd,kh,kw,co)-packed
    # layout, skip this transpose and save one full HBM round trip.
    o = out_flat.reshape(B, D, Hl, Wl, 2, 2, 2, C_out)[:, :, :H, :W]
    o = jnp.transpose(o, (0, 7, 1, 4, 2, 5, 3, 6))        # (B,co,d,kd,h,kh,w,kw)
    return o.reshape(B, C_out, 2 * D, 2 * H, 2 * W)


def upblock3d_reference(x, skip, params):
    """Pure-JAX mirror of the PyTorch UpBlock3D.forward (eval-mode BatchNorm)."""
    eps = 1e-5
    hp = jax.lax.Precision.HIGHEST

    def conv3d(v, w, b):
        dn = jax.lax.conv_dimension_numbers(v.shape, w.shape,
                                            ("NCDHW", "OIDHW", "NCDHW"))
        out = jax.lax.conv_general_dilated(v, w, window_strides=(1, 1, 1),
                                           padding=((1, 1), (1, 1), (1, 1)),
                                           dimension_numbers=dn, precision=hp)
        return out + b[None, :, None, None, None]

    def bn(v, mean, var, gamma, beta):
        inv = (gamma / jnp.sqrt(var + eps))[None, :, None, None, None]
        return (v - mean[None, :, None, None, None]) * inv + beta[None, :, None, None, None]

    g = jax.nn.sigmoid(bn(conv3d(skip, params["wg"], params["bg"]),
                          params["g_mean"], params["g_var"],
                          params["g_gamma"], params["g_beta"]))
    y = x + skip * g
    y = jnp.maximum(bn(conv3d(y, params["wc"], params["bc"]),
                       params["c_mean"], params["c_var"],
                       params["c_gamma"], params["c_beta"]), 0.0)
    B, C, D, H, W = y.shape
    C_out = params["wup"].shape[1]
    up = jnp.einsum("ncdhw,coijk->nodihjwk", y, params["wup"], precision=hp)
    up = up.reshape(B, C_out, 2 * D, 2 * H, 2 * W)
    return up + params["bup"][None, :, None, None, None]


if __name__ == "__main__":
    B, C_IN, C_OUT = 2, 8, 4
    D = H = W = 8

    key = jax.random.PRNGKey(0)
    ks = jax.random.split(key, 16)
    params = dict(
        # gate branch: Conv3d(in, in, 3, padding=1) + BatchNorm3d (running stats)
        wg=0.15 * jax.random.normal(ks[0], (C_IN, C_IN, 3, 3, 3), jnp.float32),
        bg=0.10 * jax.random.normal(ks[1], (C_IN,), jnp.float32),
        g_mean=0.10 * jax.random.normal(ks[2], (C_IN,), jnp.float32),
        g_var=jax.random.uniform(ks[3], (C_IN,), jnp.float32, 0.5, 1.5),
        g_gamma=1.0 + 0.10 * jax.random.normal(ks[4], (C_IN,), jnp.float32),
        g_beta=0.10 * jax.random.normal(ks[5], (C_IN,), jnp.float32),
        # conv branch: Conv3d(in, in, 3, padding=1) + BatchNorm3d + ReLU
        wc=0.15 * jax.random.normal(ks[6], (C_IN, C_IN, 3, 3, 3), jnp.float32),
        bc=0.10 * jax.random.normal(ks[7], (C_IN,), jnp.float32),
        c_mean=0.10 * jax.random.normal(ks[8], (C_IN,), jnp.float32),
        c_var=jax.random.uniform(ks[9], (C_IN,), jnp.float32, 0.5, 1.5),
        c_gamma=1.0 + 0.10 * jax.random.normal(ks[10], (C_IN,), jnp.float32),
        c_beta=0.10 * jax.random.normal(ks[11], (C_IN,), jnp.float32),
        # up_conv: ConvTranspose3d(in, out, kernel_size=2, stride=2)
        wup=0.20 * jax.random.normal(ks[12], (C_IN, C_OUT, 2, 2, 2), jnp.float32),
        bup=0.10 * jax.random.normal(ks[13], (C_OUT,), jnp.float32),
    )
    x = jax.random.normal(ks[14], (B, C_IN, D, H, W), jnp.float32)
    skip = jax.random.normal(ks[15], (B, C_IN, D, H, W), jnp.float32)

    out = jax.block_until_ready(upblock3d(x, skip, params))
    assert out.shape == (B, C_OUT, 2 * D, 2 * H, 2 * W) and out.dtype == jnp.float32

    ref = upblock3d_reference(x, skip, params)
    assert bool(jnp.all(jnp.isfinite(out)))
    err = float(jnp.max(jnp.abs(out - ref)))
    assert bool(jnp.allclose(out, ref, atol=5e-3, rtol=5e-3)), f"max abs diff {err}"

    print("KERNEL_OK")
</pallas_src>

<mosaic_0001>
module attributes {stable_mosaic.version = 11 : i64} {
  func.func @upblock3d_kernel(%arg0: i32, %arg1: memref<176x128xf32, #tpu.memory_space<vmem>>, %arg2: memref<176x128xf32, #tpu.memory_space<vmem>>, %arg3: memref<9x128x128xf32, #tpu.memory_space<vmem>>, %arg4: memref<1x128xf32, #tpu.memory_space<vmem>>, %arg5: memref<9x128x128xf32, #tpu.memory_space<vmem>>, %arg6: memref<1x128xf32, #tpu.memory_space<vmem>>, %arg7: memref<128x512xf32, #tpu.memory_space<vmem>>, %arg8: memref<1x512xf32, #tpu.memory_space<vmem>>, %arg9: memref<128x512xf32, #tpu.memory_space<vmem>>, %arg10: memref<176x128xf32, #tpu.memory_space<vmem>>) attributes {dimension_semantics = [#tpu.dimension_semantics<parallel>], iteration_bounds = array<i64: 2>, scalar_prefetch = 0 : i64, scratch_operands = 1 : i64, tpu.core_type = #tpu.core_type<tc>, window_params = [{transform_indices = @transform_0, window_bounds = array<i64: 176, 128>}, {transform_indices = @transform_1, window_bounds = array<i64: 176, 128>}, {pipeline_mode = #tpu.pipeline_mode<synchronous>, transform_indices = @transform_2, window_bounds = array<i64: 9, 128, 128>}, {pipeline_mode = #tpu.pipeline_mode<synchronous>, transform_indices = @transform_3, window_bounds = array<i64: 1, 128>}, {pipeline_mode = #tpu.pipeline_mode<synchronous>, transform_indices = @transform_4, window_bounds = array<i64: 9, 128, 128>}, {pipeline_mode = #tpu.pipeline_mode<synchronous>, transform_indices = @transform_5, window_bounds = array<i64: 1, 128>}, {pipeline_mode = #tpu.pipeline_mode<synchronous>, transform_indices = @transform_6, window_bounds = array<i64: 128, 512>}, {pipeline_mode = #tpu.pipeline_mode<synchronous>, transform_indices = @transform_7, window_bounds = array<i64: 1, 512>}, {transform_indices = @transform_8, window_bounds = array<i64: 128, 512>}]} {
    %c0 = arith.constant 0 : index
    %c0_0 = arith.constant 0 : index
    %0 = vector.load %arg2[%c0, %c0_0] : memref<176x128xf32, #tpu.memory_space<vmem>>, vector<128x128xf32>
    %c0_1 = arith.constant 0 : index
    %c0_2 = arith.constant 0 : index
    %c0_3 = arith.constant 0 : index
    %1 = vector.load %arg3[%c0_1, %c0_2, %c0_3] : memref<9x128x128xf32, #tpu.memory_space<vmem>>, vector<1x128x128xf32>
    %2 = vector.shape_cast %1 : vector<1x128x128xf32> to vector<128x128xf32>
    %cst = arith.constant dense<0.000000e+00> : vector<128x128xf32>
    %3 = tpu.matmul %0, %2, %cst {dimension_numbers = #tpu.dot_dimension_numbers<[1], [0], [0], [1], [0, 0, 1, 1], [], []>} : vector<128x128xf32>, vector<128x128xf32>, vector<128x128xf32> -> vector<128x128xf32>
    %c1 = arith.constant 1 : index
    %c0_4 = arith.constant 0 : index
    %4 = vector.load %arg2[%c1, %c0_4] : memref<176x128xf32, #tpu.memory_space<vmem>>, vector<128x128xf32>
    %c1_5 = arith.constant 1 : index
    %c0_6 = arith.constant 0 : index
    %c0_7 = arith.constant 0 : index
    %5 = vector.load %arg3[%c1_5, %c0_6, %c0_7] : memref<9x128x128xf32, #tpu.memory_space<vmem>>, vector<1x128x128xf32>
    %6 = vector.shape_cast %5 : vector<1x128x128xf32> to vector<128x128xf32>
    %cst_8 = arith.constant dense<0.000000e+00> : vector<128x128xf32>
    %7 = tpu.matmul %4, %6, %cst_8 {dimension_numbers = #tpu.dot_dimension_numbers<[1], [0], [0], [1], [0, 0, 1, 1], [], []>} : vector<128x128xf32>, vector<128x128xf32>, vector<128x128xf32> -> vector<128x128xf32>
    %8 = arith.addf %3, %7 : vector<128x128xf32>
    %c2 = arith.constant 2 : index
    %c0_9 = arith.constant 0 : index
    %9 = vector.load %arg2[%c2, %c0_9] : memref<176x128xf32, #tpu.memory_space<vmem>>, vector<128x128xf32>
    %c2_10 = arith.constant 2 : index
    %c0_11 = arith.constant 0 : index
    %c0_12 = arith.constant 0 : index
    %10 = vector.load %arg3[%c2_10, %c0_11, %c0_12] : memref<9x128x128xf32, #tpu.memory_space<vmem>>, vector<1x128x128xf32>
    %11 = vector.shape_cast %10 : vector<1x128x128xf32> to vector<128x128xf32>
    %cst_13 = arith.constant dense<0.000000e+00> : vector<128x128xf32>
    %12 = tpu.matmul %9, %11, %cst_13 {dimension_numbers = #tpu.dot_dimension_numbers<[1], [0], [0], [1], [0, 0, 1, 1], [], []>} : vector<128x128xf32>, vector<128x128xf32>, vector<128x128xf32> -> vector<128x128xf32>
    %13 = arith.addf %8, %12 : vector<128x128xf32>
    %c16 = arith.constant 16 : index
    %c0_14 = arith.constant 0 : index
    %14 = vector.load %arg2[%c16, %c0_14] : memref<176x128xf32, #tpu.memory_space<vmem>>, vector<128x128xf32>
    %c3 = arith.constant 3 : index
    %c0_15 = arith.constant 0 : index
    %c0_16 = arith.constant 0 : index
    %15 = vector.load %arg3[%c3, %c0_15, %c0_16] : memref<9x128x128xf32, #tpu.memory_space<vmem>>, vector<1x128x128xf32>
    %16 = vector.shape_cast %15 : vector<1x128x128xf32> to vector<128x128xf32>
    %cst_17 = arith.constant dense<0.000000e+00> : vector<128x128xf32>
    %17 = tpu.matmul %14, %16, %cst_17 {dimension_numbers = #tpu.dot_dimension_numbers<[1], [0], [0], [1], [0, 0, 1, 1], [], []>} : vector<128x128xf32>, vector<128x128xf32>, vector<128x128xf32> -> vector<128x128xf32>
    %18 = arith.addf %13, %17 : vector<128x128xf32>
    %c17 = arith.constant 17 : index
    %c0_18 = arith.constant 0 : index
    %19 = vector.load %arg2[%c17, %c0_18] : memref<176x128xf32, #tpu.memory_space<vmem>>, vector<128x128xf32>
    %c4 = arith.constant 4 : index
    %c0_19 = arith.constant 0 : index
    %c0_20 = arith.constant 0 : index
    %20 = vector.load %arg3[%c4, %c0_19, %c0_20] : memref<9x128x128xf32, #tpu.memory_space<vmem>>, vector<1x128x128xf32>
    %21 = vector.shape_cast %20 : vector<1x128x128xf32> to vector<128x128xf32>
    %cst_21 = arith.constant dense<0.000000e+00> : vector<128x128xf32>
    %22 = tpu.matmul %19, %21, %cst_21 {dimension_numbers = #tpu.dot_dimension_numbers<[1], [0], [0], [1], [0, 0, 1, 1], [], []>} : vector<128x128xf32>, vector<128x128xf32>, vector<128x128xf32> -> vector<128x128xf32>
    %23 = arith.addf %18, %22 : vector<128x128xf32>
    %c18 = arith.constant 18 : index
    %c0_22 = arith.constant 0 : index
    %24 = vector.load %arg2[%c18, %c0_22] : memref<176x128xf32, #tpu.memory_space<vmem>>, vector<128x128xf32>
    %c5 = arith.constant 5 : index
    %c0_23 = arith.constant 0 : index
    %c0_24 = arith.constant 0 : index
    %25 = vector.load %arg3[%c5, %c0_23, %c0_24] : memref<9x128x128xf32, #tpu.memory_space<vmem>>, vector<1x128x128xf32>
    %26 = vector.shape_cast %25 : vector<1x128x128xf32> to vector<128x128xf32>
    %cst_25 = arith.constant dense<0.000000e+00> : vector<128x128xf32>
    %27 = tpu.matmul %24, %26, %cst_25 {dimension_numbers = #tpu.dot_dimension_numbers<[1], [0], [0], [1], [0, 0, 1, 1], [], []>} : vector<128x128xf32>, vector<128x128xf32>, vector<128x128xf32> -> vector<128x128xf32>
    %28 = arith.addf %23, %27 : vector<128x128xf32>
    %c32 = arith.constant 32 : index
    %c0_26 = arith.constant 0 : index
    %29 = vector.load %arg2[%c32, %c0_26] : memref<176x128xf32, #tpu.memory_space<vmem>>, vector<128x128xf32>
    %c6 = arith.constant 6 : index
    %c0_27 = arith.constant 0 : index
    %c0_28 = arith.constant 0 : index
    %30 = vector.load %arg3[%c6, %c0_27, %c0_28] : memref<9x128x128xf32, #tpu.memory_space<vmem>>, vector<1x128x128xf32>
    %31 = vector.shape_cast %30 : vector<1x128x128xf32> to vector<128x128xf32>
    %cst_29 = arith.constant dense<0.000000e+00> : vector<128x128xf32>
    %32 = tpu.matmul %29, %31, %cst_29 {dimension_numbers = #tpu.dot_dimension_numbers<[1], [0], [0], [1], [0, 0, 1, 1], [], []>} : vector<128x128xf32>, vector<128x128xf32>, vector<128x128xf32> -> vector<128x128xf32>
    %33 = arith.addf %28, %32 : vector<128x128xf32>
    %c33 = arith.constant 33 : index
    %c0_30 = arith.constant 0 : index
    %34 = vector.load %arg2[%c33, %c0_30] : memref<176x128xf32, #tpu.memory_space<vmem>>, vector<128x128xf32>
    %c7 = arith.constant 7 : index
    %c0_31 = arith.constant 0 : index
    %c0_32 = arith.constant 0 : index
    %35 = vector.load %arg3[%c7, %c0_31, %c0_32] : memref<9x128x128xf32, #tpu.memory_space<vmem>>, vector<1x128x128xf32>
    %36 = vector.shape_cast %35 : vector<1x128x128xf32> to vector<128x128xf32>
    %cst_33 = arith.constant dense<0.000000e+00> : vector<128x128xf32>
    %37 = tpu.matmul %34, %36, %cst_33 {dimension_numbers = #tpu.dot_dimension_numbers<[1], [0], [0], [1], [0, 0, 1, 1], [], []>} : vector<128x128xf32>, vector<128x128xf32>, vector<128x128xf32> -> vector<128x128xf32>
    %38 = arith.addf %33, %37 : vector<128x128xf32>
    %c34 = arith.constant 34 : index
    %c0_34 = arith.constant 0 : index
    %39 = vector.load %arg2[%c34, %c0_34] : memref<176x128xf32, #tpu.memory_space<vmem>>, vector<128x128xf32>
    %c8 = arith.constant 8 : index
    %c0_35 = arith.constant 0 : index
    %c0_36 = arith.constant 0 : index
    %40 = vector.load %arg3[%c8, %c0_35, %c0_36] : memref<9x128x128xf32, #tpu.memory_space<vmem>>, vector<1x128x128xf32>
    %41 = vector.shape_cast %40 : vector<1x128x128xf32> to vector<128x128xf32>
    %cst_37 = arith.constant dense<0.000000e+00> : vector<128x128xf32>
    %42 = tpu.matmul %39, %41, %cst_37 {dimension_numbers = #tpu.dot_dimension_numbers<[1], [0], [0], [1], [0, 0, 1, 1], [], []>} : vector<128x128xf32>, vector<128x128xf32>, vector<128x128xf32> -> vector<128x128xf32>
    %43 = arith.addf %38, %42 : vector<128x128xf32>
    %c0_38 = arith.constant 0 : index
    %c0_39 = arith.constant 0 : index
    %44 = vector.load %arg4[%c0_38, %c0_39] : memref<1x128xf32, #tpu.memory_space<vmem>>, vector<1x128xf32>
    %45 = vector.broadcast %44 : vector<1x128xf32> to vector<128x128xf32>
    %46 = arith.addf %43, %45 : vector<128x128xf32>
    %cst_40 = arith.constant 0.000000e+00 : f32
    %47 = vector.broadcast %cst_40 : f32 to vector<128x128xf32>
    %48 = arith.subf %47, %46 : vector<128x128xf32>
    %49 = math.exp %48 : vector<128x128xf32>
    %cst_41 = arith.constant 1.000000e+00 : f32
    %50 = vector.broadcast %cst_41 : f32 to vector<128x128xf32>
    %51 = arith.addf %50, %49 : vector<128x128xf32>
    %52 = tpu.reciprocal %51 {approx = true} : vector<128x128xf32> -> vector<128x128xf32>
    %cst_42 = arith.constant 0.000000e+00 : f32
    %53 = vector.broadcast %cst_42 : f32 to vector<24x128xf32>
    %c0_43 = arith.constant 0 : index
    %c0_44 = arith.constant 0 : index
    %54 = vector.load %arg10[%c0_43, %c0_44] : memref<176x128xf32, #tpu.memory_space<vmem>>, vector<24x128xf32>
    tpu.vector_store %arg10[%c0_43, %c0_44], %53 {strides = array<i32>} : memref<176x128xf32, #tpu.memory_space<vmem>>, vector<24x128xf32>,
    %cst_45 = arith.constant 0.000000e+00 : f32
    %55 = vector.broadcast %cst_45 : f32 to vector<32x128xf32>
    %c144 = arith.constant 144 : index
    %c0_46 = arith.constant 0 : index
    %56 = vector.load %arg10[%c144, %c0_46] : memref<176x128xf32, #tpu.memory_space<vmem>>, vector<32x128xf32>
    tpu.vector_store %arg10[%c144, %c0_46], %55 {strides = array<i32>} : memref<176x128xf32, #tpu.memory_space<vmem>>, vector<32x128xf32>,
    %c17_47 = arith.constant 17 : index
    %c0_48 = arith.constant 0 : index
    %57 = vector.load %arg1[%c17_47, %c0_48] : memref<176x128xf32, #tpu.memory_space<vmem>>, vector<128x128xf32>
    %c17_49 = arith.constant 17 : index
    %c0_50 = arith.constant 0 : index
    %58 = vector.load %arg2[%c17_49, %c0_50] : memref<176x128xf32, #tpu.memory_space<vmem>>, vector<128x128xf32>
    %59 = arith.mulf %58, %52 : vector<128x128xf32>
    %60 = arith.addf %57, %59 : vector<128x128xf32>
    %c17_51 = arith.constant 17 : index
    %c0_52 = arith.constant 0 : index
    %61 = vector.load %arg10[%c17_51, %c0_52] : memref<176x128xf32, #tpu.memory_space<vmem>>, vector<128x128xf32>
    tpu.vector_store %arg10[%c17_51, %c0_52], %60 {strides = array<i32>} : memref<176x128xf32, #tpu.memory_space<vmem>>, vector<128x128xf32>,
    %c0_53 = arith.constant 0 : index
    %c0_54 = arith.constant 0 : index
    %62 = vector.load %arg10[%c0_53, %c0_54] : memref<176x128xf32, #tpu.memory_space<vmem>>, vector<128x128xf32>
    %c0_55 = arith.constant 0 : index
    %c0_56 = arith.constant 0 : index
    %c0_57 = arith.constant 0 : index
    %63 = vector.load %arg5[%c0_55, %c0_56, %c0_57] : memref<9x128x128xf32, #tpu.memory_space<vmem>>, vector<1x128x128xf32>
    %64 = vector.shape_cast %63 : vector<1x128x128xf32> to vector<128x128xf32>
    %cst_58 = arith.constant dense<0.000000e+00> : vector<128x128xf32>
    %65 = tpu.matmul %62, %64, %cst_58 {dimension_numbers = #tpu.dot_dimension_numbers<[1], [0], [0], [1], [0, 0, 1, 1], [], []>} : vector<128x128xf32>, vector<128x128xf32>, vector<128x128xf32> -> vector<128x128xf32>
    %c1_59 = arith.constant 1 : index
    %c0_60 = arith.constant 0 : index
    %66 = vector.load %arg10[%c1_59, %c0_60] : memref<176x128xf32, #tpu.memory_space<vmem>>, vector<128x128xf32>
    %c1_61 = arith.constant 1 : index
    %c0_62 = arith.constant 0 : index
    %c0_63 = arith.constant 0 : index
    %67 = vector.load %arg5[%c1_61, %c0_62, %c0_63] : memref<9x128x128xf32, #tpu.memory_space<vmem>>, vector<1x128x128xf32>
    %68 = vector.shape_cast %67 : vector<1x128x128xf32> to vector<128x128xf32>
    %cst_64 = arith.constant dense<0.000000e+00> : vector<128x128xf32>
    %69 = tpu.matmul %66, %68, %cst_64 {dimension_numbers = #tpu.dot_dimension_numbers<[1], [0], [0], [1], [0, 0, 1, 1], [], []>} : vector<128x128xf32>, vector<128x128xf32>, vector<128x128xf32> -> vector<128x128xf32>
    %70 = arith.addf %65, %69 : vector<128x128xf32>
    %c2_65 = arith.constant 2 : index
    %c0_66 = arith.constant 0 : index
    %71 = vector.load %arg10[%c2_65, %c0_66] : memref<176x128xf32, #tpu.memory_space<vmem>>, vector<128x128xf32>
    %c2_67 = arith.constant 2 : index
    %c0_68 = arith.constant 0 : index
    %c0_69 = arith.constant 0 : index
    %72 = vector.load %arg5[%c2_67, %c0_68, %c0_69] : memref<9x128x128xf32, #tpu.memory_space<vmem>>, vector<1x128x128xf32>
    %73 = vector.shape_cast %72 : vector<1x128x128xf32> to vector<128x128xf32>
    %cst_70 = arith.constant dense<0.000000e+00> : vector<128x128xf32>
    %74 = tpu.matmul %71, %73, %cst_70 {dimension_numbers = #tpu.dot_dimension_numbers<[1], [0], [0], [1], [0, 0, 1, 1], [], []>} : vector<128x128xf32>, vector<128x128xf32>, vector<128x128xf32> -> vector<128x128xf32>
    %75 = arith.addf %70, %74 : vector<128x128xf32>
    %c16_71 = arith.constant 16 : index
    %c0_72 = arith.constant 0 : index
    %76 = vector.load %arg10[%c16_71, %c0_72] : memref<176x128xf32, #tpu.memory_space<vmem>>, vector<128x128xf32>
    %c3_73 = arith.constant 3 : index
    %c0_74 = arith.constant 0 : index
    %c0_75 = arith.constant 0 : index
    %77 = vector.load %arg5[%c3_73, %c0_74, %c0_75] : memref<9x128x128xf32, #tpu.memory_space<vmem>>, vector<1x128x128xf32>
    %78 = vector.shape_cast %77 : vector<1x128x128xf32> to vector<128x128xf32>
    %cst_76 = arith.constant dense<0.000000e+00> : vector<128x128xf32>
    %79 = tpu.matmul %76, %78, %cst_76 {dimension_numbers = #tpu.dot_dimension_numbers<[1], [0], [0], [1], [0, 0, 1, 1], [], []>} : vector<128x128xf32>, vector<128x128xf32>, vector<128x128xf32> -> vector<128x128xf32>
    %80 = arith.addf %75, %79 : vector<128x128xf32>
    %c17_77 = arith.constant 17 : index
    %c0_78 = arith.constant 0 : index
    %81 = vector.load %arg10[%c17_77, %c0_78] : memref<176x128xf32, #tpu.memory_space<vmem>>, vector<128x128xf32>
    %c4_79 = arith.constant 4 : index
    %c0_80 = arith.constant 0 : index
    %c0_81 = arith.constant 0 : index
    %82 = vector.load %arg5[%c4_79, %c0_80, %c0_81] : memref<9x128x128xf32, #tpu.memory_space<vmem>>, vector<1x128x128xf32>
    %83 = vector.shape_cast %82 : vector<1x128x128xf32> to vector<128x128xf32>
    %cst_82 = arith.constant dense<0.000000e+00> : vector<128x128xf32>
    %84 = tpu.matmul %81, %83, %cst_82 {dimension_numbers = #tpu.dot_dimension_numbers<[1], [0], [0], [1], [0, 0, 1, 1], [], []>} : vector<128x128xf32>, vector<128x128xf32>, vector<128x128xf32> -> vector<128x128xf32>
    %85 = arith.addf %80, %84 : vector<128x128xf32>
    %c18_83 = arith.constant 18 : index
    %c0_84 = arith.constant 0 : index
    %86 = vector.load %arg10[%c18_83, %c0_84] : memref<176x128xf32, #tpu.memory_space<vmem>>, vector<128x128xf32>
    %c5_85 = arith.constant 5 : index
    %c0_86 = arith.constant 0 : index
    %c0_87 = arith.constant 0 : index
    %87 = vector.load %arg5[%c5_85, %c0_86, %c0_87] : memref<9x128x128xf32, #tpu.memory_space<vmem>>, vector<1x128x128xf32>
    %88 = vector.shape_cast %87 : vector<1x128x128xf32> to vector<128x128xf32>
    %cst_88 = arith.constant dense<0.000000e+00> : vector<128x128xf32>
    %89 = tpu.matmul %86, %88, %cst_88 {dimension_numbers = #tpu.dot_dimension_numbers<[1], [0], [0], [1], [0, 0, 1, 1], [], []>} : vector<128x128xf32>, vector<128x128xf32>, vector<128x128xf32> -> vector<128x128xf32>
    %90 = arith.addf %85, %89 : vector<128x128xf32>
    %c32_89 = arith.constant 32 : index
    %c0_90 = arith.constant 0 : index
    %91 = vector.load %arg10[%c32_89, %c0_90] : memref<176x128xf32, #tpu.memory_space<vmem>>, vector<128x128xf32>
    %c6_91 = arith.constant 6 : index
    %c0_92 = arith.constant 0 : index
    %c0_93 = arith.constant 0 : index
    %92 = vector.load %arg5[%c6_91, %c0_92, %c0_93] : memref<9x128x128xf32, #tpu.memory_space<vmem>>, vector<1x128x128xf32>
    %93 = vector.shape_cast %92 : vector<1x128x128xf32> to vector<128x128xf32>
    %cst_94 = arith.constant dense<0.000000e+00> : vector<128x128xf32>
    %94 = tpu.matmul %91, %93, %cst_94 {dimension_numbers = #tpu.dot_dimension_numbers<[1], [0], [0], [1], [0, 0, 1, 1], [], []>} : vector<128x128xf32>, vector<128x128xf32>, vector<128x128xf32> -> vector<128x128xf32>
    %95 = arith.addf %90, %94 : vector<128x128xf32>
    %c33_95 = arith.constant 33 : index
    %c0_96 = arith.constant 0 : index
    %96 = vector.load %arg10[%c33_95, %c0_96] : memref<176x128xf32, #tpu.memory_space<vmem>>, vector<128x128xf32>
    %c7_97 = arith.constant 7 : index
    %c0_98 = arith.constant 0 : index
    %c0_99 = arith.constant 0 : index
    %97 = vector.load %arg5[%c7_97, %c0_98, %c0_99] : memref<9x128x128xf32, #tpu.memory_space<vmem>>, vector<1x128x128xf32>
    %98 = vector.shape_cast %97 : vector<1x128x128xf32> to vector<128x128xf32>
    %cst_100 = arith.constant dense<0.000000e+00> : vector<128x128xf32>
    %99 = tpu.matmul %96, %98, %cst_100 {dimension_numbers = #tpu.dot_dimension_numbers<[1], [0], [0], [1], [0, 0, 1, 1], [], []>} : vector<128x128xf32>, vector<128x128xf32>, vector<128x128xf32> -> vector<128x128xf32>
    %100 = arith.addf %95, %99 : vector<128x128xf32>
    %c34_101 = arith.constant 34 : index
    %c0_102 = arith.constant 0 : index
    %101 = vector.load %arg10[%c34_101, %c0_102] : memref<176x128xf32, #tpu.memory_space<vmem>>, vector<128x128xf32>
    %c8_103 = arith.constant 8 : index
    %c0_104 = arith.constant 0 : index
    %c0_105 = arith.constant 0 : index
    %102 = vector.load %arg5[%c8_103, %c0_104, %c0_105] : memref<9x128x128xf32, #tpu.memory_space<vmem>>, vector<1x128x128xf32>
    %103 = vector.shape_cast %102 : vector<1x128x128xf32> to vector<128x128xf32>
    %cst_106 = arith.constant dense<0.000000e+00> : vector<128x128xf32>
    %104 = tpu.matmul %101, %103, %cst_106 {dimension_numbers = #tpu.dot_dimension_numbers<[1], [0], [0], [1], [0, 0, 1, 1], [], []>} : vector<128x128xf32>, vector<128x128xf32>, vector<128x128xf32> -> vector<128x128xf32>
    %105 = arith.addf %100, %104 : vector<128x128xf32>
    %c0_107 = arith.constant 0 : index
    %c0_108 = arith.constant 0 : index
    %106 = vector.load %arg6[%c0_107, %c0_108] : memref<1x128xf32, #tpu.memory_space<vmem>>, vector<1x128xf32>
    %107 = vector.broadcast %106 : vector<1x128xf32> to vector<128x128xf32>
    %108 = arith.addf %105, %107 : vector<128x128xf32>
    %cst_109 = arith.constant 0.000000e+00 : f32
    %109 = vector.broadcast %cst_109 : f32 to vector<128x128xf32>
    %110 = arith.maximumf %108, %109 : vector<128x128xf32>
    %c0_110 = arith.constant 0 : index
    %c0_111 = arith.constant 0 : index
    %111 = vector.load %arg7[%c0_110, %c0_111] : memref<128x512xf32, #tpu.memory_space<vmem>>, vector<128x512xf32>
    %cst_112 = arith.constant dense<0.000000e+00> : vector<128x512xf32>
    %112 = tpu.matmul %110, %111, %cst_112 {dimension_numbers = #tpu.dot_dimension_numbers<[1], [0], [0], [1], [0, 0, 1, 1], [], []>} : vector<128x128xf32>, vector<128x512xf32>, vector<128x512xf32> -> vector<128x512xf32>
    %c0_113 = arith.constant 0 : index
    %c0_114 = arith.constant 0 : index
    %113 = vector.load %arg8[%c0_113, %c0_114] : memref<1x512xf32, #tpu.memory_space<vmem>>, vector<1x512xf32>
    %114 = vector.broadcast %113 : vector<1x512xf32> to vector<128x512xf32>
    %115 = arith.addf %112, %114 : vector<128x512xf32>
    %c0_115 = arith.constant 0 : index
    %c0_116 = arith.constant 0 : index
    %116 = vector.load %arg9[%c0_115, %c0_116] : memref<128x512xf32, #tpu.memory_space<vmem>>, vector<128x512xf32>
    tpu.vector_store %arg9[%c0_115, %c0_116], %115 {strides = array<i32>} : memref<128x512xf32, #tpu.memory_space<vmem>>, vector<128x512xf32>,
    return
  }
  func.func @transform_0(%arg0: i32) -> (i32, i32) {
    %c0_i32 = arith.constant 0 : i32
    %c0_i32_0 = arith.constant 0 : i32
    return %arg0, %c0_i32 : i32, i32
  }
  func.func @transform_1(%arg0: i32) -> (i32, i32) {
    %c0_i32 = arith.constant 0 : i32
    %c0_i32_0 = arith.constant 0 : i32
    return %arg0, %c0_i32 : i32, i32
  }
  func.func @transform_2(%arg0: i32) -> (i32, i32, i32) {
    %c0_i32 = arith.constant 0 : i32
    %c0_i32_0 = arith.constant 0 : i32
    %c0_i32_1 = arith.constant 0 : i32
    %c0_i32_2 = arith.constant 0 : i32
    return %c0_i32, %c0_i32_0, %c0_i32_1 : i32, i32, i32
  }
  func.func @transform_3(%arg0: i32) -> (i32, i32) {
    %c0_i32 = arith.constant 0 : i32
    %c0_i32_0 = arith.constant 0 : i32
    %c0_i32_1 = arith.constant 0 : i32
    return %c0_i32, %c0_i32_0 : i32, i32
  }
  func.func @transform_4(%arg0: i32) -> (i32, i32, i32) {
    %c0_i32 = arith.constant 0 : i32
    %c0_i32_0 = arith.constant 0 : i32
    %c0_i32_1 = arith.constant 0 : i32
    %c0_i32_2 = arith.constant 0 : i32
    return %c0_i32, %c0_i32_0, %c0_i32_1 : i32, i32, i32
  }
  func.func @transform_5(%arg0: i32) -> (i32, i32) {
    %c0_i32 = arith.constant 0 : i32
    %c0_i32_0 = arith.constant 0 : i32
    %c0_i32_1 = arith.constant 0 : i32
    return %c0_i32, %c0_i32_0 : i32, i32
  }
  func.func @transform_6(%arg0: i32) -> (i32, i32) {
    %c0_i32 = arith.constant 0 : i32
    %c0_i32_0 = arith.constant 0 : i32
    %c0_i32_1 = arith.constant 0 : i32
    return %c0_i32, %c0_i32_0 : i32, i32
  }
  func.func @transform_7(%arg0: i32) -> (i32, i32) {
    %c0_i32 = arith.constant 0 : i32
    %c0_i32_0 = arith.constant 0 : i32
    %c0_i32_1 = arith.constant 0 : i32
    return %c0_i32, %c0_i32_0 : i32, i32
  }
  func.func @transform_8(%arg0: i32) -> (i32, i32) {
    %c0_i32 = arith.constant 0 : i32
    %c0_i32_0 = arith.constant 0 : i32
    return %arg0, %c0_i32 : i32, i32
  }
}

</mosaic_0001>

<llo_original>
// kernel: tile.18
$region0: #{tile.18}
  #allocation0 [shape = 's32[1]{0}', space=sflag, size = 0x4, scoped, tag = 'scoped memory for tile.18']
  %s0 = inlined_call_operand.vmem [shape: f32[8], index: 0, kind: input, shape index: {}]
  %s1 = inlined_call_operand.vmem [shape: f32[16,8], index: 1, kind: output, shape index: {}]
  // Predicated region
  $region2: #{tile.18} parent=0 // pred_check
    _
  $region3: #{tile.18} parent=0 // pred_check_branch
    %3 = sbr.rel (0) target = $region5
  $region4: #{tile.18} parent=0 // pred_region
    _
  $region5: #{tile.18} parent=0 // pred_fallthru
    _
  %v4 = vld [vmem:[%s0] ss:$0 sm:$0xff]
  %5 = vst [vmem:[%s1] sm:$0xff] %v4
  %s6 = scalar_lea.vmem %s1, 8
  %7 = vst [vmem:[%s6] sm:$0xff] %v4

// kernel: tile.19
$region0: #{tile.19}
  %s0 = inlined_call_operand.vmem [shape: f32[16,8], index: 0, kind: input, shape index: {}]
  %s1 = inlined_call_operand.vmem [shape: f32[1,128], index: 1, kind: output, shape index: {}]
  $region1: #{tile.19} parent=0
    #allocation0 [shape = 'u8[4096]{0}', space=vmem, size = 0x1000, scoped, tag = 'scoped mem for output reshape']
    %v2 = vld [vmem:[%s0] sm:$0x1]
    %vm3 = vcmask 64512
    %4 = vst.msk [vmem:[#allocation0] sm:$0x1] %vm3, %v2
    %s5 = scalar_lea.vmem %s0, 15
    %v6 = vld [vmem:[%s5] sm:$0x1]
    %7 = vrot.lane.b32.xlu0 %v6, 120
    %v8 = vpop.permute.xlu0 %7
    %vm9 = vcmask 1048512
    %10 = vst.msk [vmem:[#allocation0] sm:$0x1] %vm9, %v8
    %s11 = scalar_lea.vmem %s0, 14
    %v12 = vld [vmem:[%s11] sm:$0x1]
    %13 = vrot.lane.b32.xlu0 %v12, 112
    %v14 = vpop.permute.xlu0 %13
    %vm15 = vcmask 982912
    %16 = vst.msk [vmem:[#allocation0] sm:$0x1] %vm15, %v14
    %s17 = scalar_lea.vmem %s0, 13
    %v18 = vld [vmem:[%s17] sm:$0x1]
    %19 = vrot.lane.b32.xlu0 %v18, 104
    %v20 = vpop.permute.xlu0 %19
    %vm21 = vcmask 917312
    %22 = vst.msk [vmem:[#allocation0] sm:$0x1] %vm21, %v20
    %s23 = scalar_lea.vmem %s0, 12
    %v24 = vld [vmem:[%s23] sm:$0x1]
    %25 = vrot.lane.b32.xlu0 %v24, 96
    %v26 = vpop.permute.xlu0 %25
    %vm27 = vcmask 851712
    %28 = vst.msk [vmem:[#allocation0] sm:$0x1] %vm27, %v26
    %s29 = scalar_lea.vmem %s0, 11
    %v30 = vld [vmem:[%s29] sm:$0x1]
    %31 = vrot.lane.b32.xlu0 %v30, 88
    %v32 = vpop.permute.xlu0 %31
    %vm33 = vcmask 786112
    %34 = vst.msk [vmem:[#allocation0] sm:$0x1] %vm33, %v32
    %s35 = scalar_lea.vmem %s0, 10
    %v36 = vld [vmem:[%s35] sm:$0x1]
    %37 = vrot.lane.b32.xlu0 %v36, 80
    %v38 = vpop.permute.xlu0 %37
    %vm39 = vcmask 720512
    %40 = vst.msk [vmem:[#allocation0] sm:$0x1] %vm39, %v38
    %s41 = scalar_lea.vmem %s0, 9
    %v42 = vld [vmem:[%s41] sm:$0x1]
    %43 = vrot.lane.b32.xlu0 %v42, 72
    %v44 = vpop.permute.xlu0 %43
    %vm45 = vcmask 654912
    %46 = vst.msk [vmem:[#allocation0] sm:$0x1] %vm45, %v44
    %s47 = scalar_lea.vmem %s0, 8
    %v48 = vld [vmem:[%s47] sm:$0x1]
    %49 = vrot.lane.b32.xlu0 %v48, 64
    %v50 = vpop.permute.xlu0 %49
    %vm51 = vcmask 589312
    %52 = vst.msk [vmem:[#allocation0] sm:$0x1] %vm51, %v50
    %s53 = scalar_lea.vmem %s0, 7
    %v54 = vld [vmem:[%s53] sm:$0x1]
    %55 = vrot.lane.b32.xlu0 %v54, 56
    %v56 = vpop.permute.xlu0 %55
    %vm57 = vcmask 523712
    %58 = vst.msk [vmem:[#allocation0] sm:$0x1] %vm57, %v56
    %s59 = scalar_lea.vmem %s0, 6
    %v60 = vld [vmem:[%s59] sm:$0x1]
    %61 = vrot.lane.b32.xlu0 %v60, 48
    %v62 = vpop.permute.xlu0 %61
    %vm63 = vcmask 458112
    %64 = vst.msk [vmem:[#allocation0] sm:$0x1] %vm63, %v62
    %s65 = scalar_lea.vmem %s0, 5
    %v66 = vld [vmem:[%s65] sm:$0x1]
    %67 = vrot.lane.b32.xlu0 %v66, 40
    %v68 = vpop.permute.xlu0 %67
    %vm69 = vcmask 392512
    %70 = vst.msk [vmem:[#allocation0] sm:$0x1] %vm69, %v68
    %s71 = scalar_lea.vmem %s0, 4
    %v72 = vld [vmem:[%s71] sm:$0x1]
    %73 = vrot.lane.b32.xlu0 %v72, 32
    %v74 = vpop.permute.xlu0 %73
    %vm75 = vcmask 326912
    %76 = vst.msk [vmem:[#allocation0] sm:$0x1] %vm75, %v74
    %s77 = scalar_lea.vmem %s0, 3
    %v78 = vld [vmem:[%s77] sm:$0x1]
    %79 = vrot.lane.b32.xlu0 %v78, 24
    %v80 = vpop.permute.xlu0 %79
    %vm81 = vcmask 261312
    %82 = vst.msk [vmem:[#allocation0] sm:$0x1] %vm81, %v80
    %s83 = scalar_lea.vmem %s0, 2
    %v84 = vld [vmem:[%s83] sm:$0x1]
    %85 = vrot.lane.b32.xlu0 %v84, 16
    %v86 = vpop.permute.xlu0 %85
    %vm87 = vcmask 195712
    %88 = vst.msk [vmem:[#allocation0] sm:$0x1] %vm87, %v86
    %s89 = scalar_lea.vmem %s0, 1
    %v90 = vld [vmem:[%s89] sm:$0x1]
    %91 = vrot.lane.b32.xlu0 %v90, 8
    %v92 = vpop.permute.xlu0 %91
    %vm93 = vcmask 130112
    %94 = vst.msk [vmem:[#allocation0] sm:$0x1] %vm93, %v92
    %s96 = sshll.u32 1, 1
    %s97 = ssub.s32 %s96, 1
    %v99 = vld [vmem:[#allocation0] sm:%s97]
    %s100 = sshll.u32 1, 1
    %s101 = ssub.s32 %s100, 1
    %102 = vst [vmem:[%s1] sm:%s101] %v99

// kernel: tile.28
$region0: #{tile.28}
  #allocation0 [shape = 's32[1]{0}', space=sflag, size = 0x4, scoped, tag = 'scoped memory for tile.28']
  %s0 = inlined_call_operand.vmem [shape: f32[4], index: 0, kind: input, shape index: {}]
  %s1 = inlined_call_operand.vmem [shape: f32[128,4], index: 1, kind: output, shape index: {}]
  // Predicated region
  $region2: #{tile.28} parent=0 // pred_check
    _
  $region3: #{tile.28} parent=0 // pred_check_branch
    %3 = sbr.rel (0) target = $region5
  $region4: #{tile.28} parent=0 // pred_region
    _
  $region5: #{tile.28} parent=0 // pred_fallthru
    _
  %v4 = vld [vmem:[%s0] ss:$0 sm:$0xff]
  %5 = vst [vmem:[%s1] sm:$0xff] %v4
  %s6 = scalar_lea.vmem %s1, 8
  %7 = vst [vmem:[%s6] sm:$0xff] %v4
  %s8 = scalar_lea.vmem %s1, 16
  %9 = vst [vmem:[%s8] sm:$0xff] %v4
  %s10 = scalar_lea.vmem %s1, 24
  %11 = vst [vmem:[%s10] sm:$0xff] %v4
  %s12 = scalar_lea.vmem %s1, 32
  %13 = vst [vmem:[%s12] sm:$0xff] %v4
  %s14 = scalar_lea.vmem %s1, 40
  %15 = vst [vmem:[%s14] sm:$0xff] %v4
  %s16 = scalar_lea.vmem %s1, 48
  %17 = vst [vmem:[%s16] sm:$0xff] %v4
  %s18 = scalar_lea.vmem %s1, 56
  %19 = vst [vmem:[%s18] sm:$0xff] %v4
  %s20 = scalar_lea.vmem %s1, 64
  %21 = vst [vmem:[%s20] sm:$0xff] %v4
  %s22 = scalar_lea.vmem %s1, 72
  %23 = vst [vmem:[%s22] sm:$0xff] %v4
  %s24 = scalar_lea.vmem %s1, 80
  %25 = vst [vmem:[%s24] sm:$0xff] %v4
  %s26 = scalar_lea.vmem %s1, 88
  %27 = vst [vmem:[%s26] sm:$0xff] %v4
  %s28 = scalar_lea.vmem %s1, 96
  %29 = vst [vmem:[%s28] sm:$0xff] %v4
  %s30 = scalar_lea.vmem %s1, 104
  %31 = vst [vmem:[%s30] sm:$0xff] %v4
  %s32 = scalar_lea.vmem %s1, 112
  %33 = vst [vmem:[%s32] sm:$0xff] %v4
  %s34 = scalar_lea.vmem %s1, 120
  %35 = vst [vmem:[%s34] sm:$0xff] %v4

// kernel: tile.29
$region0: #{tile.29}
  %s0 = inlined_call_operand.vmem [shape: f32[128,4], index: 0, kind: input, shape index: {}]
  %s1 = inlined_call_operand.vmem [shape: f32[1,512], index: 1, kind: output, shape index: {}]
  $region1: #{tile.29} parent=0
    #allocation0 [shape = 'u8[16384]{0}', space=vmem, size = 0x4000, scoped, tag = 'scoped mem for output reshape']
    %v2 = vld [vmem:[%s0] sm:$0x1]
    %s3 = scalar_lea.vmem %s0, 31
    %v4 = vld [vmem:[%s3] sm:$0x2]
    %vm5 = vcmask 1041409
    %v6 = vsel %vm5, %v4, %v2
    %s7 = scalar_lea.vmem %s0, 62
    %v8 = vld [vmem:[%s7] sm:$0x4]
    %vm9 = vcmask 1042434
    %v10 = vsel %vm9, %v8, %v6
    %s11 = scalar_lea.vmem %s0, 93
    %v12 = vld [vmem:[%s11] sm:$0x8]
    %vm13 = vcmask 1043459
    %v14 = vsel %vm13, %v12, %v10
    %vm15 = vcmask 31744
    %16 = vst.msk [vmem:[#allocation0] ss:$8 sm:$0xf] %vm15, %v14
    %s17 = scalar_lea.vmem %s0, 31
    %v18 = vld [vmem:[%s17] sm:$0x1]
    %s19 = scalar_lea.vmem %s0, 62
    %v20 = vld [vmem:[%s19] sm:$0x2]
    %vm21 = vcmask 1041409
    %v22 = vsel %vm21, %v20, %v18
    %s23 = scalar_lea.vmem %s0, 93
    %v24 = vld [vmem:[%s23] sm:$0x4]
    %vm25 = vcmask 1042434
    %v26 = vsel %vm25, %v24, %v22
    %s27 = scalar_lea.vmem %s0, 124
    %v28 = vld [vmem:[%s27] sm:$0x8]
    %vm29 = vcmask 1043459
    %v30 = vsel %vm29, %v28, %v26
    %31 = vrot.lane.b32.xlu0 %v30, 124
    %v32 = vpop.permute.xlu0 %31
    %vm33 = vcmask 1048544
    %34 = vst.msk [vmem:[#allocation0] ss:$8 sm:$0xf] %vm33, %v32
    %s35 = scalar_lea.vmem %s0, 30
    %v36 = vld [vmem:[%s35] sm:$0x1]
    %s37 = scalar_lea.vmem %s0, 61
    %v38 = vld [vmem:[%s37] sm:$0x2]
    %vm39 = vcmask 1041409
    %v40 = vsel %vm39, %v38, %v36
    %s41 = scalar_lea.vmem %s0, 92
    %v42 = vld [vmem:[%s41] sm:$0x4]
    %vm43 = vcmask 1042434
    %v44 = vsel %vm43, %v42, %v40
    %s45 = scalar_lea.vmem %s0, 123
    %v46 = vld [vmem:[%s45] sm:$0x8]
    %vm47 = vcmask 1043459
    %v48 = vsel %vm47, %v46, %v44
    %49 = vrot.lane.b32.xlu0 %v48, 120
    %v50 = vpop.permute.xlu0 %49
    %vm51 = vcmask 1015744
    %52 = vst.msk [vmem:[#allocation0] ss:$8 sm:$0xf] %vm51, %v50
    %s53 = scalar_lea.vmem %s0, 29
    %v54 = vld [vmem:[%s53] sm:$0x1]
    %s55 = scalar_lea.vmem %s0, 60
    %v56 = vld [vmem:[%s55] sm:$0x2]
    %vm57 = vcmask 1041409
    %v58 = vsel %vm57, %v56, %v54
    %s59 = scalar_lea.vmem %s0, 91
    %v60 = vld [vmem:[%s59] sm:$0x4]
    %vm61 = vcmask 1042434
    %v62 = vsel %vm61, %v60, %v58
    %s63 = scalar_lea.vmem %s0, 122
    %v64 = vld [vmem:[%s63] sm:$0x8]
    %vm65 = vcmask 1043459
    %v66 = vsel %vm65, %v64, %v62
    %67 = vrot.lane.b32.xlu0 %v66, 116
    %v68 = vpop.permute.xlu0 %67
    %vm69 = vcmask 982944
    %70 = vst.msk [vmem:[#allocation0] ss:$8 sm:$0xf] %vm69, %v68
    %s71 = scalar_lea.vmem %s0, 28
    %v72 = vld [vmem:[%s71] sm:$0x1]
    %s73 = scalar_lea.vmem %s0, 59
    %v74 = vld [vmem:[%s73] sm:$0x2]
    %vm75 = vcmask 1041409
    %v76 = vsel %vm75, %v74, %v72
    %s77 = scalar_lea.vmem %s0, 90
    %v78 = vld [vmem:[%s77] sm:$0x4]
    %vm79 = vcmask 1042434
    %v80 = vsel %vm79, %v78, %v76
    %s81 = scalar_lea.vmem %s0, 121
    %v82 = vld [vmem:[%s81] sm:$0x8]
    %vm83 = vcmask 1043459
    %v84 = vsel %vm83, %v82, %v80
    %85 = vrot.lane.b32.xlu0 %v84, 112
    %v86 = vpop.permute.xlu0 %85
    %vm87 = vcmask 950144
    %88 = vst.msk [vmem:[#allocation0] ss:$8 sm:$0xf] %vm87, %v86
    %s89 = scalar_lea.vmem %s0, 27
    %v90 = vld [vmem:[%s89] sm:$0x1]
    %s91 = scalar_lea.vmem %s0, 58
    %v92 = vld [vmem:[%s91] sm:$0x2]
    %vm93 = vcmask 1041409
    %v94 = vsel %vm93, %v92, %v90
    %s95 = scalar_lea.vmem %s0, 89
    %v96 = vld [vmem:[%s95] sm:$0x4]
    %vm97 = vcmask 1042434
    %v98 = vsel %vm97, %v96, %v94
    %s99 = scalar_lea.vmem %s0, 120
    %v100 = vld [vmem:[%s99] sm:$0x8]
    %vm101 = vcmask 1043459
    %v102 = vsel %vm101, %v100, %v98
    %103 = vrot.lane.b32.xlu0 %v102, 108
    %v104 = vpop.permute.xlu0 %103
    %vm105 = vcmask 917344
    %106 = vst.msk [vmem:[#allocation0] ss:$8 sm:$0xf] %vm105, %v104
    %s107 = scalar_lea.vmem %s0, 26
    %v108 = vld [vmem:[%s107] sm:$0x1]
    %s109 = scalar_lea.vmem %s0, 57
    %v110 = vld [vmem:[%s109] sm:$0x2]
    %vm111 = vcmask 1041409
    %v112 = vsel %vm111, %v110, %v108
    %s113 = scalar_lea.vmem %s0, 88
    %v114 = vld [vmem:[%s113] sm:$0x4]
    %vm115 = vcmask 1042434
    %v116 = vsel %vm115, %v114, %v112
    %s117 = scalar_lea.vmem %s0, 119
    %v118 = vld [vmem:[%s117] sm:$0x8]
    %vm119 = vcmask 1043459
    %v120 = vsel %vm119, %v118, %v116
    %121 = vrot.lane.b32.xlu0 %v120, 104
    %v122 = vpop.permute.xlu0 %121
    %vm123 = vcmask 884544
    %124 = vst.msk [vmem:[#allocation0] ss:$8 sm:$0xf] %vm123, %v122
    %s125 = scalar_lea.vmem %s0, 25
    %v126 = vld [vmem:[%s125] sm:$0x1]
    %s127 = scalar_lea.vmem %s0, 56
    %v128 = vld [vmem:[%s127] sm:$0x2]
    %vm129 = vcmask 1041409
    %v130 = vsel %vm129, %v128, %v126
    %s131 = scalar_lea.vmem %s0, 87
    %v132 = vld [vmem:[%s131] sm:$0x4]
    %vm133 = vcmask 1042434
    %v134 = vsel %vm133, %v132, %v130
    %s135 = scalar_lea.vmem %s0, 118
    %v136 = vld [vmem:[%s135] sm:$0x8]
    %vm137 = vcmask 1043459
    %v138 = vsel %vm137, %v136, %v134
    %139 = vrot.lane.b32.xlu0 %v138, 100
    %v140 = vpop.permute.xlu0 %139
    %vm141 = vcmask 851744
    %142 = vst.msk [vmem:[#allocation0] ss:$8 sm:$0xf] %vm141, %v140
    %s143 = scalar_lea.vmem %s0, 24
    %v144 = vld [vmem:[%s143] sm:$0x1]
    %s145 = scalar_lea.vmem %s0, 55
    %v146 = vld [vmem:[%s145] sm:$0x2]
    %vm147 = vcmask 1041409
    %v148 = vsel %vm147, %v146, %v144
    %s149 = scalar_lea.vmem %s0, 86
    %v150 = vld [vmem:[%s149] sm:$0x4]
    %vm151 = vcmask 1042434
    %v152 = vsel %vm151, %v150, %v148
    %s153 = scalar_lea.vmem %s0, 117
    %v154 = vld [vmem:[%s153] sm:$0x8]
    %vm155 = vcmask 1043459
    %v156 = vsel %vm155, %v154, %v152
    %157 = vrot.lane.b32.xlu0 %v156, 96
    %v158 = vpop.permute.xlu0 %157
    %vm159 = vcmask 818944
    %160 = vst.msk [vmem:[#allocation0] ss:$8 sm:$0xf] %vm159, %v158
    %s161 = scalar_lea.vmem %s0, 23
    %v162 = vld [vmem:[%s161] sm:$0x1]
    %s163 = scalar_lea.vmem %s0, 54
    %v164 = vld [vmem:[%s163] sm:$0x2]
    %vm165 = vcmask 1041409
    %v166 = vsel %vm165, %v164, %v162
    %s167 = scalar_lea.vmem %s0, 85
    %v168 = vld [vmem:[%s167] sm:$0x4]
    %vm169 = vcmask 1042434
    %v170 = vsel %vm169, %v168, %v166
    %s171 = scalar_lea.vmem %s0, 116
    %v172 = vld [vmem:[%s171] sm:$0x8]
    %vm173 = vcmask 1043459
    %v174 = vsel %vm173, %v172, %v170
    %175 = vrot.lane.b32.xlu0 %v174, 92
    %v176 = vpop.permute.xlu0 %175
    %vm177 = vcmask 786144
    %178 = vst.msk [vmem:[#allocation0] ss:$8 sm:$0xf] %vm177, %v176
    %s179 = scalar_lea.vmem %s0, 22
    %v180 = vld [vmem:[%s179] sm:$0x1]
    %s181 = scalar_lea.vmem %s0, 53
    %v182 = vld [vmem:[%s181] sm:$0x2]
    %vm183 = vcmask 1041409
    %v184 = vsel %vm183, %v182, %v180
    %s185 = scalar_lea.vmem %s0, 84
    %v186 = vld [vmem:[%s185] sm:$0x4]
    %vm187 = vcmask 1042434
    %v188 = vsel %vm187, %v186, %v184
    %s189 = scalar_lea.vmem %s0, 115
    %v190 = vld [vmem:[%s189] sm:$0x8]
    %vm191 = vcmask 1043459
    %v192 = vsel %vm191, %v190, %v188
    %193 = vrot.lane.b32.xlu0 %v192, 88
    %v194 = vpop.permute.xlu0 %193
    %vm195 = vcmask 753344
    %196 = vst.msk [vmem:[#allocation0] ss:$8 sm:$0xf] %vm195, %v194
    %s197 = scalar_lea.vmem %s0, 21
    %v198 = vld [vmem:[%s197] sm:$0x1]
    %s199 = scalar_lea.vmem %s0, 52
    %v200 = vld [vmem:[%s199] sm:$0x2]
    %vm201 = vcmask 1041409
    %v202 = vsel %vm201, %v200, %v198
    %s203 = scalar_lea.vmem %s0, 83
    %v204 = vld [vmem:[%s203] sm:$0x4]
    %vm205 = vcmask 1042434
    %v206 = vsel %vm205, %v204, %v202
    %s207 = scalar_lea.vmem %s0, 114
    %v208 = vld [vmem:[%s207] sm:$0x8]
    %vm209 = vcmask 1043459
    %v210 = vsel %vm209, %v208, %v206
    %211 = vrot.lane.b32.xlu0 %v210, 84
    %v212 = vpop.permute.xlu0 %211
    %vm213 = vcmask 720544
    %214 = vst.msk [vmem:[#allocation0] ss:$8 sm:$0xf] %vm213, %v212
    %s215 = scalar_lea.vmem %s0, 20
    %v216 = vld [vmem:[%s215] sm:$0x1]
    %s217 = scalar_lea.vmem %s0, 51
    %v218 = vld [vmem:[%s217] sm:$0x2]
    %vm219 = vcmask 1041409
    %v220 = vsel %vm219, %v218, %v216
    %s221 = scalar_lea.vmem %s0, 82
    %v222 = vld [vmem:[%s221] sm:$0x4]
    %vm223 = vcmask 1042434
    %v224 = vsel %vm223, %v222, %v220
    %s225 = scalar_lea.vmem %s0, 113
    %v226 = vld [vmem:[%s225] sm:$0x8]
    %vm227 = vcmask 1043459
    %v228 = vsel %vm227, %v226, %v224
    %229 = vrot.lane.b32.xlu0 %v228, 80
    %v230 = vpop.permute.xlu0 %229
    %vm231 = vcmask 687744
    %232 = vst.msk [vmem:[#allocation0] ss:$8 sm:$0xf] %vm231, %v230
    %s233 = scalar_lea.vmem %s0, 19
    %v234 = vld [vmem:[%s233] sm:$0x1]
    %s235 = scalar_lea.vmem %s0, 50
    %v236 = vld [vmem:[%s235] sm:$0x2]
    %vm237 = vcmask 1041409
    %v238 = vsel %vm237, %v236, %v234
    %s239 = scalar_lea.vmem %s0, 81
    %v240 = vld [vmem:[%s239] sm:$0x4]
    %vm241 = vcmask 1042434
    %v242 = vsel %vm241, %v240, %v238
    %s243 = scalar_lea.vmem %s0, 112
    %v244 = vld [vmem:[%s243] sm:$0x8]
    %vm245 = vcmask 1043459
    %v246 = vsel %vm245, %v244, %v242
    %247 = vrot.lane.b32.xlu0 %v246, 76
    %v248 = vpop.permute.xlu0 %247
    %vm249 = vcmask 654944
    %250 = vst.msk [vmem:[#allocation0] ss:$8 sm:$0xf] %vm249, %v248
    %s251 = scalar_lea.vmem %s0, 18
    %v252 = vld [vmem:[%s251] sm:$0x1]
    %s253 = scalar_lea.vmem %s0, 49
    %v254 = vld [vmem:[%s253] sm:$0x2]
    %vm255 = vcmask 1041409
    %v256 = vsel %vm255, %v254, %v252
    %s257 = scalar_lea.vmem %s0, 80
    %v258 = vld [vmem:[%s257] sm:$0x4]
    %vm259 = vcmask 1042434
    %v260 = vsel %vm259, %v258, %v256
    %s261 = scalar_lea.vmem %s0, 111
    %v262 = vld [vmem:[%s261] sm:$0x8]
    %vm263 = vcmask 1043459
    %v264 = vsel %vm263, %v262, %v260
    %265 = vrot.lane.b32.xlu0 %v264, 72
    %v266 = vpop.permute.xlu0 %265
    %vm267 = vcmask 622144
    %268 = vst.msk [vmem:[#allocation0] ss:$8 sm:$0xf] %vm267, %v266
    %s269 = scalar_lea.vmem %s0, 17
    %v270 = vld [vmem:[%s269] sm:$0x1]
    %s271 = scalar_lea.vmem %s0, 48
    %v272 = vld [vmem:[%s271] sm:$0x2]
    %vm273 = vcmask 1041409
    %v274 = vsel %vm273, %v272, %v270
    %s275 = scalar_lea.vmem %s0, 79
    %v276 = vld [vmem:[%s275] sm:$0x4]
    %vm277 = vcmask 1042434
    %v278 = vsel %vm277, %v276, %v274
    %s279 = scalar_lea.vmem %s0, 110
    %v280 = vld [vmem:[%s279] sm:$0x8]
    %vm281 = vcmask 1043459
    %v282 = vsel %vm281, %v280, %v278
    %283 = vrot.lane.b32.xlu0 %v282, 68
    %v284 = vpop.permute.xlu0 %283
    %vm285 = vcmask 589344
    %286 = vst.msk [vmem:[#allocation0] ss:$8 sm:$0xf] %vm285, %v284
    %s287 = scalar_lea.vmem %s0, 16
    %v288 = vld [vmem:[%s287] sm:$0x1]
    %s289 = scalar_lea.vmem %s0, 47
    %v290 = vld [vmem:[%s289] sm:$0x2]
    %vm291 = vcmask 1041409
    %v292 = vsel %vm291, %v290, %v288
    %s293 = scalar_lea.vmem %s0, 78
    %v294 = vld [vmem:[%s293] sm:$0x4]
    %vm295 = vcmask 1042434
    %v296 = vsel %vm295, %v294, %v292
    %s297 = scalar_lea.vmem %s0, 109
    %v298 = vld [vmem:[%s297] sm:$0x8]
    %vm299 = vcmask 1043459
    %v300 = vsel %vm299, %v298, %v296
    %301 = vrot.lane.b32.xlu0 %v300, 64
    %v302 = vpop.permute.xlu0 %301
    %vm303 = vcmask 556544
    %304 = vst.msk [vmem:[#allocation0] ss:$8 sm:$0xf] %vm303, %v302
    %s305 = scalar_lea.vmem %s0, 15
    %v306 = vld [vmem:[%s305] sm:$0x1]
    %s307 = scalar_lea.vmem %s0, 46
    %v308 = vld [vmem:[%s307] sm:$0x2]
    %vm309 = vcmask 1041409
    %v310 = vsel %vm309, %v308, %v306
    %s311 = scalar_lea.vmem %s0, 77
    %v312 = vld [vmem:[%s311] sm:$0x4]
    %vm313 = vcmask 1042434
    %v314 = vsel %vm313, %v312, %v310
    %s315 = scalar_lea.vmem %s0, 108
    %v316 = vld [vmem:[%s315] sm:$0x8]
    %vm317 = vcmask 1043459
    %v318 = vsel %vm317, %v316, %v314
    %319 = vrot.lane.b32.xlu0 %v318, 60
    %v320 = vpop.permute.xlu0 %319
    %vm321 = vcmask 523744
    %322 = vst.msk [vmem:[#allocation0] ss:$8 sm:$0xf] %vm321, %v320
    %s323 = scalar_lea.vmem %s0, 14
    %v324 = vld [vmem:[%s323] sm:$0x1]
    %s325 = scalar_lea.vmem %s0, 45
    %v326 = vld [vmem:[%s325] sm:$0x2]
    %vm327 = vcmask 1041409
    %v328 = vsel %vm327, %v326, %v324
    %s329 = scalar_lea.vmem %s0, 76
    %v330 = vld [vmem:[%s329] sm:$0x4]
    %vm331 = vcmask 1042434
    %v332 = vsel %vm331, %v330, %v328
    %s333 = scalar_lea.vmem %s0, 107
    %v334 = vld [vmem:[%s333] sm:$0x8]
    %vm335 = vcmask 1043459
    %v336 = vsel %vm335, %v334, %v332
    %337 = vrot.lane.b32.xlu0 %v336, 56
    %v338 = vpop.permute.xlu0 %337
    %vm339 = vcmask 490944
    %340 = vst.msk [vmem:[#allocation0] ss:$8 sm:$0xf] %vm339, %v338
    %s341 = scalar_lea.vmem %s0, 13
    %v342 = vld [vmem:[%s341] sm:$0x1]
    %s343 = scalar_lea.vmem %s0, 44
    %v344 = vld [vmem:[%s343] sm:$0x2]
    %vm345 = vcmask 1041409
    %v346 = vsel %vm345, %v344, %v342
    %s347 = scalar_lea.vmem %s0, 75
    %v348 = vld [vmem:[%s347] sm:$0x4]
    %vm349 = vcmask 1042434
    %v350 = vsel %vm349, %v348, %v346
    %s351 = scalar_lea.vmem %s0, 106
    %v352 = vld [vmem:[%s351] sm:$0x8]
    %vm353 = vcmask 1043459
    %v354 = vsel %vm353, %v352, %v350
    %355 = vrot.lane.b32.xlu0 %v354, 52
    %v356 = vpop.permute.xlu0 %355
    %vm357 = vcmask 458144
    %358 = vst.msk [vmem:[#allocation0] ss:$8 sm:$0xf] %vm357, %v356
    %s359 = scalar_lea.vmem %s0, 12
    %v360 = vld [vmem:[%s359] sm:$0x1]
    %s361 = scalar_lea.vmem %s0, 43
    %v362 = vld [vmem:[%s361] sm:$0x2]
    %vm363 = vcmask 1041409
    %v364 = vsel %vm363, %v362, %v360
    %s365 = scalar_lea.vmem %s0, 74
    %v366 = vld [vmem:[%s365] sm:$0x4]
    %vm367 = vcmask 1042434
    %v368 = vsel %vm367, %v366, %v364
    %s369 = scalar_lea.vmem %s0, 105
    %v370 = vld [vmem:[%s369] sm:$0x8]
    %vm371 = vcmask 1043459
    %v372 = vsel %vm371, %v370, %v368
    %373 = vrot.lane.b32.xlu0 %v372, 48
    %v374 = vpop.permute.xlu0 %373
    %vm375 = vcmask 425344
    %376 = vst.msk [vmem:[#allocation0] ss:$8 sm:$0xf] %vm375, %v374
    %s377 = scalar_lea.vmem %s0, 11
    %v378 = vld [vmem:[%s377] sm:$0x1]
    %s379 = scalar_lea.vmem %s0, 42
    %v380 = vld [vmem:[%s379] sm:$0x2]
    %vm381 = vcmask 1041409
    %v382 = vsel %vm381, %v380, %v378
    %s383 = scalar_lea.vmem %s0, 73
    %v384 = vld [vmem:[%s383] sm:$0x4]
    %vm385 = vcmask 1042434
    %v386 = vsel %vm385, %v384, %v382
    %s387 = scalar_lea.vmem %s0, 104
    %v388 = vld [vmem:[%s387] sm:$0x8]
    %vm389 = vcmask 1043459
    %v390 = vsel %vm389, %v388, %v386
    %391 = vrot.lane.b32.xlu0 %v390, 44
    %v392 = vpop.permute.xlu0 %391
    %vm393 = vcmask 392544
    %394 = vst.msk [vmem:[#allocation0] ss:$8 sm:$0xf] %vm393, %v392
    %s395 = scalar_lea.vmem %s0, 10
    %v396 = vld [vmem:[%s395] sm:$0x1]
    %s397 = scalar_lea.vmem %s0, 41
    %v398 = vld [vmem:[%s397] sm:$0x2]
    %vm399 = vcmask 1041409
    %v400 = vsel %vm399, %v398, %v396
    %s401 = scalar_lea.vmem %s0, 72
    %v402 = vld [vmem:[%s401] sm:$0x4]
    %vm403 = vcmask 1042434
    %v404 = vsel %vm403, %v402, %v400
    %s405 = scalar_lea.vmem %s0, 103
    %v406 = vld [vmem:[%s405] sm:$0x8]
    %vm407 = vcmask 1043459
    %v408 = vsel %vm407, %v406, %v404
    %409 = vrot.lane.b32.xlu0 %v408, 40
    %v410 = vpop.permute.xlu0 %409
    %vm411 = vcmask 359744
    %412 = vst.msk [vmem:[#allocation0] ss:$8 sm:$0xf] %vm411, %v410
    %s413 = scalar_lea.vmem %s0, 9
    %v414 = vld [vmem:[%s413] sm:$0x1]
    %s415 = scalar_lea.vmem %s0, 40
    %v416 = vld [vmem:[%s415] sm:$0x2]
    %vm417 = vcmask 1041409
    %v418 = vsel %vm417, %v416, %v414
    %s419 = scalar_lea.vmem %s0, 71
    %v420 = vld [vmem:[%s419] sm:$0x4]
    %vm421 = vcmask 1042434
    %v422 = vsel %vm421, %v420, %v418
    %s423 = scalar_lea.vmem %s0, 102
    %v424 = vld [vmem:[%s423] sm:$0x8]
    %vm425 = vcmask 1043459
    %v426 = vsel %vm425, %v424, %v422
    %427 = vrot.lane.b32.xlu0 %v426, 36
    %v428 = vpop.permute.xlu0 %427
    %vm429 = vcmask 326944
    %430 = vst.msk [vmem:[#allocation0] ss:$8 sm:$0xf] %vm429, %v428
    %s431 = scalar_lea.vmem %s0, 8
    %v432 = vld [vmem:[%s431] sm:$0x1]
    %s433 = scalar_lea.vmem %s0, 39
    %v434 = vld [vmem:[%s433] sm:$0x2]
    %vm435 = vcmask 1041409
    %v436 = vsel %vm435, %v434, %v432
    %s437 = scalar_lea.vmem %s0, 70
    %v438 = vld [vmem:[%s437] sm:$0x4]
    %vm439 = vcmask 1042434
    %v440 = vsel %vm439, %v438, %v436
    %s441 = scalar_lea.vmem %s0, 101
    %v442 = vld [vmem:[%s441] sm:$0x8]
    %vm443 = vcmask 1043459
    %v444 = vsel %vm443, %v442, %v440
    %445 = vrot.lane.b32.xlu0 %v444, 32
    %v446 = vpop.permute.xlu0 %445
    %vm447 = vcmask 294144
    %448 = vst.msk [vmem:[#allocation0] ss:$8 sm:$0xf] %vm447, %v446
    %s449 = scalar_lea.vmem %s0, 7
    %v450 = vld [vmem:[%s449] sm:$0x1]
    %s451 = scalar_lea.vmem %s0, 38
    %v452 = vld [vmem:[%s451] sm:$0x2]
    %vm453 = vcmask 1041409
    %v454 = vsel %vm453, %v452, %v450
    %s455 = scalar_lea.vmem %s0, 69
    %v456 = vld [vmem:[%s455] sm:$0x4]
    %vm457 = vcmask 1042434
    %v458 = vsel %vm457, %v456, %v454
    %s459 = scalar_lea.vmem %s0, 100
    %v460 = vld [vmem:[%s459] sm:$0x8]
    %vm461 = vcmask 1043459
    %v462 = vsel %vm461, %v460, %v458
    %463 = vrot.lane.b32.xlu0 %v462, 28
    %v464 = vpop.permute.xlu0 %463
    %vm465 = vcmask 261344
    %466 = vst.msk [vmem:[#allocation0] ss:$8 sm:$0xf] %vm465, %v464
    %s467 = scalar_lea.vmem %s0, 6
    %v468 = vld [vmem:[%s467] sm:$0x1]
    %s469 = scalar_lea.vmem %s0, 37
    %v470 = vld [vmem:[%s469] sm:$0x2]
    %vm471 = vcmask 1041409
    %v472 = vsel %vm471, %v470, %v468
    %s473 = scalar_lea.vmem %s0, 68
    %v474 = vld [vmem:[%s473] sm:$0x4]
    %vm475 = vcmask 1042434
    %v476 = vsel %vm475, %v474, %v472
    %s477 = scalar_lea.vmem %s0, 99
    %v478 = vld [vmem:[%s477] sm:$0x8]
    %vm479 = vcmask 1043459
    %v480 = vsel %vm479, %v478, %v476
    %481 = vrot.lane.b32.xlu0 %v480, 24
    %v482 = vpop.permute.xlu0 %481
    %vm483 = vcmask 228544
    %484 = vst.msk [vmem:[#allocation0] ss:$8 sm:$0xf] %vm483, %v482
    %s485 = scalar_lea.vmem %s0, 5
    %v486 = vld [vmem:[%s485] sm:$0x1]
    %s487 = scalar_lea.vmem %s0, 36
    %v488 = vld [vmem:[%s487] sm:$0x2]
    %vm489 = vcmask 1041409
    %v490 = vsel %vm489, %v488, %v486
    %s491 = scalar_lea.vmem %s0, 67
    %v492 = vld [vmem:[%s491] sm:$0x4]
    %vm493 = vcmask 1042434
    %v494 = vsel %vm493, %v492, %v490
    %s495 = scalar_lea.vmem %s0, 98
    %v496 = vld [vmem:[%s495] sm:$0x8]
    %vm497 = vcmask 1043459
    %v498 = vsel %vm497, %v496, %v494
    %499 = vrot.lane.b32.xlu0 %v498, 20
    %v500 = vpop.permute.xlu0 %499
    %vm501 = vcmask 195744
    %502 = vst.msk [vmem:[#allocation0] ss:$8 sm:$0xf] %vm501, %v500
    %s503 = scalar_lea.vmem %s0, 4
    %v504 = vld [vmem:[%s503] sm:$0x1]
    %s505 = scalar_lea.vmem %s0, 35
    %v506 = vld [vmem:[%s505] sm:$0x2]
    %vm507 = vcmask 1041409
    %v508 = vsel %vm507, %v506, %v504
    %s509 = scalar_lea.vmem %s0, 66
    %v510 = vld [vmem:[%s509] sm:$0x4]
    %vm511 = vcmask 1042434
    %v512 = vsel %vm511, %v510, %v508
    %s513 = scalar_lea.vmem %s0, 97
    %v514 = vld [vmem:[%s513] sm:$0x8]
    %vm515 = vcmask 1043459
    %v516 = vsel %vm515, %v514, %v512
    %517 = vrot.lane.b32.xlu0 %v516, 16
    %v518 = vpop.permute.xlu0 %517
    %vm519 = vcmask 162944
    %520 = vst.msk [vmem:[#allocation0] ss:$8 sm:$0xf] %vm519, %v518
    %s521 = scalar_lea.vmem %s0, 3
    %v522 = vld [vmem:[%s521] sm:$0x1]
    %s523 = scalar_lea.vmem %s0, 34
    %v524 = vld [vmem:[%s523] sm:$0x2]
    %vm525 = vcmask 1041409
    %v526 = vsel %vm525, %v524, %v522
    %s527 = scalar_lea.vmem %s0, 65
    %v528 = vld [vmem:[%s527] sm:$0x4]
    %vm529 = vcmask 1042434
    %v530 = vsel %vm529, %v528, %v526
    %s531 = scalar_lea.vmem %s0, 96
    %v532 = vld [vmem:[%s531] sm:$0x8]
    %vm533 = vcmask 1043459
    %v534 = vsel %vm533, %v532, %v530
    %535 = vrot.lane.b32.xlu0 %v534, 12
    %v536 = vpop.permute.xlu0 %535
    %vm537 = vcmask 130144
    %538 = vst.msk [vmem:[#allocation0] ss:$8 sm:$0xf] %vm537, %v536
    %s539 = scalar_lea.vmem %s0, 2
    %v540 = vld [vmem:[%s539] sm:$0x1]
    %s541 = scalar_lea.vmem %s0, 33
    %v542 = vld [vmem:[%s541] sm:$0x2]
    %vm543 = vcmask 1041409
    %v544 = vsel %vm543, %v542, %v540
    %s545 = scalar_lea.vmem %s0, 64
    %v546 = vld [vmem:[%s545] sm:$0x4]
    %vm547 = vcmask 1042434
    %v548 = vsel %vm547, %v546, %v544
    %s549 = scalar_lea.vmem %s0, 95
    %v550 = vld [vmem:[%s549] sm:$0x8]
    %vm551 = vcmask 1043459
    %v552 = vsel %vm551, %v550, %v548
    %553 = vrot.lane.b32.xlu0 %v552, 8
    %v554 = vpop.permute.xlu0 %553
    %vm555 = vcmask 97344
    %556 = vst.msk [vmem:[#allocation0] ss:$8 sm:$0xf] %vm555, %v554
    %s557 = scalar_lea.vmem %s0, 1
    %v558 = vld [vmem:[%s557] sm:$0x1]
    %s559 = scalar_lea.vmem %s0, 32
    %v560 = vld [vmem:[%s559] sm:$0x2]
    %vm561 = vcmask 1041409
    %v562 = vsel %vm561, %v560, %v558
    %s563 = scalar_lea.vmem %s0, 63
    %v564 = vld [vmem:[%s563] sm:$0x4]
    %vm565 = vcmask 1042434
    %v566 = vsel %vm565, %v564, %v562
    %s567 = scalar_lea.vmem %s0, 94
    %v568 = vld [vmem:[%s567] sm:$0x8]
    %vm569 = vcmask 1043459
    %v570 = vsel %vm569, %v568, %v566
    %571 = vrot.lane.b32.xlu0 %v570, 4
    %v572 = vpop.permute.xlu0 %571
    %vm573 = vcmask 64544
    %574 = vst.msk [vmem:[#allocation0] ss:$8 sm:$0xf] %vm573, %v572
    %s576 = sshll.u32 1, 1
    %s577 = ssub.s32 %s576, 1
    %v579 = vld [vmem:[#allocation0] sm:%s577]
    %s580 = sshll.u32 1, 1
    %s581 = ssub.s32 %s580, 1
    %582 = vst [vmem:[%s1] sm:%s581] %v579
    %s583 = scalar_lea.vmem [#allocation0], 8
    %v584 = vld [vmem:[%s583] sm:%s577]
    %s585 = sshll.u32 1, 1
    %s586 = ssub.s32 %s585, 1
    %s587 = scalar_lea.vmem %s1, 1
    %588 = vst [vmem:[%s587] sm:%s586] %v584
    %s589 = scalar_lea.vmem [#allocation0], 16
    %v590 = vld [vmem:[%s589] sm:%s577]
    %s591 = sshll.u32 1, 1
    %s592 = ssub.s32 %s591, 1
    %s593 = smul.addr 1, 2
    %s594 = scalar_lea.vmem %s1, %s593
    %595 = vst [vmem:[%s594] sm:%s592] %v590
    %s596 = scalar_lea.vmem [#allocation0], 24
    %v597 = vld [vmem:[%s596] sm:%s577]
    %s598 = sshll.u32 1, 1
    %s599 = ssub.s32 %s598, 1
    %s600 = smul.addr 1, 3
    %s601 = scalar_lea.vmem %s1, %s600
    %602 = vst [vmem:[%s601] sm:%s599] %v597

// kernel: upblock3d.1
$region0: #{upblock3d.1}
  #allocation0 [shape = 'u32[]', space=smem, size = 0x4, offset = 0x4, fixed_abs, tag = 'smem constant byte address 0x4 - core index']
  #allocation1 [shape = 'u32[144,128]{1,0:T(1,128)}', space=vmem, size = 0x12000, scoped, tag = 'internal scratch']
  #allocation2 [shape = 'f32[176,128]{1,0:T(8,128)}', space=vmem, size = 0x16000, scoped, tag = 'scratch operand']
  %s0 = inlined_call_operand.vmem [shape: f32[352,128], index: 0, kind: input, shape index: {}]
  %s1 = inlined_call_operand.vmem [shape: f32[352,128], index: 1, kind: input, shape index: {}]
  %s2 = inlined_call_operand.vmem [shape: f32[9,128,128], index: 2, kind: input, shape index: {}]
  %s3 = inlined_call_operand.vmem [shape: f32[1,128], index: 3, kind: input, shape index: {}]
  %s4 = inlined_call_operand.vmem [shape: f32[9,128,128], index: 4, kind: input, shape index: {}]
  %s5 = inlined_call_operand.vmem [shape: f32[1,128], index: 5, kind: input, shape index: {}]
  %s6 = inlined_call_operand.vmem [shape: f32[128,512], index: 6, kind: input, shape index: {}]
  %s7 = inlined_call_operand.vmem [shape: f32[1,512], index: 7, kind: input, shape index: {}]
  %s8 = inlined_call_operand.vmem [shape: f32[256,512], index: 8, kind: output, shape index: {}]
  %s9 = sld [smem:[#allocation0]]
  $region65: #{upblock3d.1} parent=0
    _
  %s11 = ssub.s32 1, %s9
  %s12 = scalar_select 0, %s11, %s9
  loop: start=0, step=1, limit=4
  $region2: #{upblock3d.1} parent=0 // loop_pre_header
    _
  $region3: #{upblock3d.1} parent=0 // loop_header
    %s14 = sphi 0, %s18
    %p15 = scmp.ge.s32.totalorder %s14, 4
    %s24 = sphi 0, %s26
    %s27 = sphi 0, %s24
    %s28 = sphi 0, %s27
    %s44 = sphi 0, %s28
    %s50 = sphi 0, %s52
    %s53 = sphi 0, %s50
    %s54 = sphi 0, %s53
    %s70 = sphi 0, %s54
    %s74 = sphi 0, %s74
    %s76 = sphi 0, %s74
    %s77 = sphi 0, %s76
    %s91 = sphi 0, %s77
    %s95 = sphi 0, %s95
    %s97 = sphi 0, %s95
    %s98 = sphi 0, %s97
    %s112 = sphi 0, %s98
    %s116 = sphi 0, %s116
    %s118 = sphi 0, %s116
    %s119 = sphi 0, %s118
    %s133 = sphi 0, %s119
    %s137 = sphi 0, %s137
    %s139 = sphi 0, %s137
    %s140 = sphi 0, %s139
    %s154 = sphi 0, %s140
    %s158 = sphi 0, %s158
    %s160 = sphi 0, %s158
    %s161 = sphi 0, %s160
    %s175 = sphi 0, %s161
    %s179 = sphi 0, %s179
    %s181 = sphi 0, %s179
    %s182 = sphi 0, %s181
    %s196 = sphi 0, %s182
    %s202 = sphi 0, %s204
    %s205 = sphi 0, %s202
    %s206 = sphi 0, %s205
    %s222 = sphi 0, %s206
  $region4: #{upblock3d.1} parent=0 // loop_header_branch
    %17 = sbr.rel (%p15) target = $region8
  $region5: #{upblock3d.1} parent=0 // loop_body
    %s19 = ssub.s32 %s14, 1
    %s20 = ssub.s32 %s14, 2
    %s21 = sadd.s32 %s14, 1
    %s22 = ssub.s32 %s14, %s21
    %p23 = scmp.eq.s32.totalorder %s22, 0
    %s25 = sadd.s32 %s24, 1
    %s26 = scalar_select %p23, %s24, %s25
    %p29 = pneg %p23
    %p30 = scmp.eq.s32.totalorder %s14, 1
    %p31 = por %p29, %p30
    %p32 = scmp.ne.s32.totalorder %s24, %s27
    %p33 = scmp.eq.s32.totalorder %s14, 0
    %p34 = por %p32, %p33
    %p35 = scmp.ne.s32.totalorder %s24, %s27
    %p36 = scmp.eq.s32.totalorder %s19, 1
    %p37 = por %p35, %p36
    %p38 = scmp.ne.s32.totalorder %s27, %s28
    %p39 = scmp.eq.s32.totalorder %s19, 0
    %p40 = por %p38, %p39
    %p41 = scmp.ne.s32.totalorder %s27, %s28
    %p42 = scmp.eq.s32.totalorder %s20, 1
    %p43 = por %p41, %p42
    %p45 = scmp.ne.s32.totalorder %s28, %s44
    %p46 = scmp.eq.s32.totalorder %s20, 0
    %p47 = por %p45, %p46
    %s48 = ssub.s32 %s14, %s21
    %p49 = scmp.eq.s32.totalorder %s48, 0
    %s51 = sadd.s32 %s50, 1
    %s52 = scalar_select %p49, %s50, %s51
    %p55 = pneg %p49
    %p56 = scmp.eq.s32.totalorder %s14, 1
    %p57 = por %p55, %p56
    %p58 = scmp.ne.s32.totalorder %s50, %s53
    %p59 = scmp.eq.s32.totalorder %s14, 0
    %p60 = por %p58, %p59
    %p61 = scmp.ne.s32.totalorder %s50, %s53
    %p62 = scmp.eq.s32.totalorder %s19, 1
    %p63 = por %p61, %p62
    %p64 = scmp.ne.s32.totalorder %s53, %s54
    %p65 = scmp.eq.s32.totalorder %s19, 0
    %p66 = por %p64, %p65
    %p67 = scmp.ne.s32.totalorder %s53, %s54
    %p68 = scmp.eq.s32.totalorder %s20, 1
    %p69 = por %p67, %p68
    %p71 = scmp.ne.s32.totalorder %s54, %s70
    %p72 = scmp.eq.s32.totalorder %s20, 0
    %p73 = por %p71, %p72
    %s75 = sadd.s32 %s74, 1
    %p78 = scmp.eq.s32.totalorder %s14, 1
    %p79 = scmp.ne.s32.totalorder %s74, %s76
    %p80 = scmp.eq.s32.totalorder %s14, 0
    %p81 = por %p79, %p80
    %p82 = scmp.ne.s32.totalorder %s74, %s76
    %p83 = scmp.eq.s32.totalorder %s19, 1
    %p84 = por %p82, %p83
    %p85 = scmp.ne.s32.totalorder %s76, %s77
    %p86 = scmp.eq.s32.totalorder %s19, 0
    %p87 = por %p85, %p86
    %p88 = scmp.ne.s32.totalorder %s76, %s77
    %p89 = scmp.eq.s32.totalorder %s20, 1
    %p90 = por %p88, %p89
    %p92 = scmp.ne.s32.totalorder %s77, %s91
    %p93 = scmp.eq.s32.totalorder %s20, 0
    %p94 = por %p92, %p93
    %s96 = sadd.s32 %s95, 1
    %p99 = scmp.eq.s32.totalorder %s14, 1
    %p100 = scmp.ne.s32.totalorder %s95, %s97
    %p101 = scmp.eq.s32.totalorder %s14, 0
    %p102 = por %p100, %p101
    %p103 = scmp.ne.s32.totalorder %s95, %s97
    %p104 = scmp.eq.s32.totalorder %s19, 1
    %p105 = por %p103, %p104
    %p106 = scmp.ne.s32.totalorder %s97, %s98
    %p107 = scmp.eq.s32.totalorder %s19, 0
    %p108 = por %p106, %p107
    %p109 = scmp.ne.s32.totalorder %s97, %s98
    %p110 = scmp.eq.s32.totalorder %s20, 1
    %p111 = por %p109, %p110
    %p113 = scmp.ne.s32.totalorder %s98, %s112
    %p114 = scmp.eq.s32.totalorder %s20, 0
    %p115 = por %p113, %p114
    %s117 = sadd.s32 %s116, 1
    %p120 = scmp.eq.s32.totalorder %s14, 1
    %p121 = scmp.ne.s32.totalorder %s116, %s118
    %p122 = scmp.eq.s32.totalorder %s14, 0
    %p123 = por %p121, %p122
    %p124 = scmp.ne.s32.totalorder %s116, %s118
    %p125 = scmp.eq.s32.totalorder %s19, 1
    %p126 = por %p124, %p125
    %p127 = scmp.ne.s32.totalorder %s118, %s119
    %p128 = scmp.eq.s32.totalorder %s19, 0
    %p129 = por %p127, %p128
    %p130 = scmp.ne.s32.totalorder %s118, %s119
    %p131 = scmp.eq.s32.totalorder %s20, 1
    %p132 = por %p130, %p131
    %p134 = scmp.ne.s32.totalorder %s119, %s133
    %p135 = scmp.eq.s32.totalorder %s20, 0
    %p136 = por %p134, %p135
    %s138 = sadd.s32 %s137, 1
    %p141 = scmp.eq.s32.totalorder %s14, 1
    %p142 = scmp.ne.s32.totalorder %s137, %s139
    %p143 = scmp.eq.s32.totalorder %s14, 0
    %p144 = por %p142, %p143
    %p145 = scmp.ne.s32.totalorder %s137, %s139
    %p146 = scmp.eq.s32.totalorder %s19, 1
    %p147 = por %p145, %p146
    %p148 = scmp.ne.s32.totalorder %s139, %s140
    %p149 = scmp.eq.s32.totalorder %s19, 0
    %p150 = por %p148, %p149
    %p151 = scmp.ne.s32.totalorder %s139, %s140
    %p152 = scmp.eq.s32.totalorder %s20, 1
    %p153 = por %p151, %p152
    %p155 = scmp.ne.s32.totalorder %s140, %s154
    %p156 = scmp.eq.s32.totalorder %s20, 0
    %p157 = por %p155, %p156
    %s159 = sadd.s32 %s158, 1
    %p162 = scmp.eq.s32.totalorder %s14, 1
    %p163 = scmp.ne.s32.totalorder %s158, %s160
    %p164 = scmp.eq.s32.totalorder %s14, 0
    %p165 = por %p163, %p164
    %p166 = scmp.ne.s32.totalorder %s158, %s160
    %p167 = scmp.eq.s32.totalorder %s19, 1
    %p168 = por %p166, %p167
    %p169 = scmp.ne.s32.totalorder %s160, %s161
    %p170 = scmp.eq.s32.totalorder %s19, 0
    %p171 = por %p169, %p170
    %p172 = scmp.ne.s32.totalorder %s160, %s161
    %p173 = scmp.eq.s32.totalorder %s20, 1
    %p174 = por %p172, %p173
    %p176 = scmp.ne.s32.totalorder %s161, %s175
    %p177 = scmp.eq.s32.totalorder %s20, 0
    %p178 = por %p176, %p177
    %s180 = sadd.s32 %s179, 1
    %p183 = scmp.eq.s32.totalorder %s14, 1
    %p184 = scmp.ne.s32.totalorder %s179, %s181
    %p185 = scmp.eq.s32.totalorder %s14, 0
    %p186 = por %p184, %p185
    %p187 = scmp.ne.s32.totalorder %s179, %s181
    %p188 = scmp.eq.s32.totalorder %s19, 1
    %p189 = por %p187, %p188
    %p190 = scmp.ne.s32.totalorder %s181, %s182
    %p191 = scmp.eq.s32.totalorder %s19, 0
    %p192 = por %p190, %p191
    %p193 = scmp.ne.s32.totalorder %s181, %s182
    %p194 = scmp.eq.s32.totalorder %s20, 1
    %p195 = por %p193, %p194
    %p197 = scmp.ne.s32.totalorder %s182, %s196
    %p198 = scmp.eq.s32.totalorder %s20, 0
    %p199 = por %p197, %p198
    %s200 = ssub.s32 %s14, %s21
    %p201 = scmp.eq.s32.totalorder %s200, 0
    %s203 = sadd.s32 %s202, 1
    %s204 = scalar_select %p201, %s202, %s203
    %p207 = pneg %p201
    %p208 = scmp.eq.s32.totalorder %s14, 1
    %p209 = por %p207, %p208
    %p210 = scmp.ne.s32.totalorder %s202, %s205
    %p211 = scmp.eq.s32.totalorder %s14, 0
    %p212 = por %p210, %p211
    %p213 = scmp.ne.s32.totalorder %s202, %s205
    %p214 = scmp.eq.s32.totalorder %s19, 1
    %p215 = por %p213, %p214
    %p216 = scmp.ne.s32.totalorder %s205, %s206
    %p217 = scmp.eq.s32.totalorder %s19, 0
    %p218 = por %p216, %p217
    %p219 = scmp.ne.s32.totalorder %s205, %s206
    %p220 = scmp.eq.s32.totalorder %s20, 1
    %p221 = por %p219, %p220
    %p223 = scmp.ne.s32.totalorder %s206, %s222
    %p224 = scmp.eq.s32.totalorder %s20, 0
    %p225 = por %p223, %p224
    %p226 = scmp.le.s32.totalorder 1, %s14
    %p227 = scmp.lt.s32.totalorder %s14, 3
    %p228 = pnand %p226, %p227
    %p229 = pneg %p228
    // Predicated region
    $region9: #{upblock3d.1} parent=5 // pred_check
      _
    $region10: #{upblock3d.1} parent=5 // pred_check_branch
      %231 = sbr.rel (%p228) target = $region12
    $region11: #{upblock3d.1} parent=5 // pred_region
      %s232 = ssub.s32 %s14, 1
      // Predicated region
      $region13: #{upblock3d.1} parent=11 // pred_check
        %p233 = pneg %p87
      $region14: #{upblock3d.1} parent=11 // pred_check_branch
        %235 = sbr.rel (%p233) target = $region16
      $region15: #{upblock3d.1} parent=11 // pred_region
        _
      $region16: #{upblock3d.1} parent=11 // pred_fallthru
        _
      // Predicated region
      $region17: #{upblock3d.1} parent=11 // pred_check
        %p236 = pneg %p108
      $region18: #{upblock3d.1} parent=11 // pred_check_branch
        %238 = sbr.rel (%p236) target = $region20
      $region19: #{upblock3d.1} parent=11 // pred_region
        _
      $region20: #{upblock3d.1} parent=11 // pred_fallthru
        _
      // Predicated region
      $region21: #{upblock3d.1} parent=11 // pred_check
        %p239 = pneg %p129
      $region22: #{upblock3d.1} parent=11 // pred_check_branch
        %241 = sbr.rel (%p239) target = $region24
      $region23: #{upblock3d.1} parent=11 // pred_region
        _
      $region24: #{upblock3d.1} parent=11 // pred_fallthru
        _
      // Predicated region
      $region25: #{upblock3d.1} parent=11 // pred_check
        %p242 = pneg %p150
      $region26: #{upblock3d.1} parent=11 // pred_check_branch
        %244 = sbr.rel (%p242) target = $region28
      $region27: #{upblock3d.1} parent=11 // pred_region
        _
      $region28: #{upblock3d.1} parent=11 // pred_fallthru
        _
      // Predicated region
      $region29: #{upblock3d.1} parent=11 // pred_check
        %p245 = pneg %p171
      $region30: #{upblock3d.1} parent=11 // pred_check_branch
        %247 = sbr.rel (%p245) target = $region32
      $region31: #{upblock3d.1} parent=11 // pred_region
        _
      $region32: #{upblock3d.1} parent=11 // pred_fallthru
        _
      // Predicated region
      $region33: #{upblock3d.1} parent=11 // pred_check
        %p248 = pneg %p192
      $region34: #{upblock3d.1} parent=11 // pred_check_branch
        %250 = sbr.rel (%p248) target = $region36
      $region35: #{upblock3d.1} parent=11 // pred_region
        _
      $region36: #{upblock3d.1} parent=11 // pred_fallthru
        _
    $region12: #{upblock3d.1} parent=5 // pred_fallthru
      _
    %p251 = scmp.lt.s32.totalorder %s14, 2
    // Predicated region
    $region37: #{upblock3d.1} parent=5 // pred_check
      %p252 = pneg %p251
    $region38: #{upblock3d.1} parent=5 // pred_check_branch
      %254 = sbr.rel (%p252) target = $region40
    $region39: #{upblock3d.1} parent=5 // pred_region
      // Predicated region
      $region41: #{upblock3d.1} parent=39 // pred_check
        %p255 = pneg %p34
      $region42: #{upblock3d.1} parent=39 // pred_check_branch
        %257 = sbr.rel (%p255) target = $region44
      $region43: #{upblock3d.1} parent=39 // pred_region
        %s258 = smul.u32 22, %s14
        %p259 = scmp.lt.s32.totalorder %s258, 43
        %s260 = scalar_select %p259, %s258, 43
        %s261 = smul.addr %s260, 8
        %s262 = scalar_lea.vmem %s0, %s261
        %s263 = smul.u32 22, %s14
      $region44: #{upblock3d.1} parent=39 // pred_fallthru
        _
      // Predicated region
      $region45: #{upblock3d.1} parent=39 // pred_check
        %p264 = pneg %p60
      $region46: #{upblock3d.1} parent=39 // pred_check_branch
        %266 = sbr.rel (%p264) target = $region48
      $region47: #{upblock3d.1} parent=39 // pred_region
        %s267 = smul.u32 22, %s14
        %p268 = scmp.lt.s32.totalorder %s267, 43
        %s269 = scalar_select %p268, %s267, 43
        %s270 = smul.addr %s269, 8
        %s271 = scalar_lea.vmem %s1, %s270
        %s272 = smul.u32 22, %s14
      $region48: #{upblock3d.1} parent=39 // pred_fallthru
        _
    $region40: #{upblock3d.1} parent=5 // pred_fallthru
      _
    %p273 = scmp.le.s32.totalorder 1, %s14
    %p274 = scmp.lt.s32.totalorder %s14, 3
    %p275 = pnand %p273, %p274
    %p276 = pneg %p275
    // Predicated region
    $region49: #{upblock3d.1} parent=5 // pred_check
      _
    $region50: #{upblock3d.1} parent=5 // pred_check_branch
      %278 = sbr.rel (%p275) target = $region52
    $region51: #{upblock3d.1} parent=5 // pred_region
      %s279 = ssub.s32 %s14, 1
      %s280 = smul.u32 22, %s19
      %p281 = scmp.lt.s32.totalorder %s280, 43
      %s282 = scalar_select %p281, %s280, 43
      %s283 = smul.addr %s282, 8
      %s284 = scalar_lea.vmem %s0, %s283
      %p285 = pneg %p40
      %p286 = pneg %p37
      %s287 = smul.u32 22, %s19
      %p288 = scmp.lt.s32.totalorder %s287, 43
      %s289 = scalar_select %p288, %s287, 43
      %s290 = smul.addr %s289, 8
      %s291 = scalar_lea.vmem %s1, %s290
      %p292 = pneg %p66
      %p293 = pneg %p63
      %p294 = pneg %p87
      %p295 = pneg %p84
      %p296 = pneg %p108
      %p297 = pneg %p105
      %p298 = pneg %p129
      %p299 = pneg %p126
      %p300 = pneg %p150
      %p301 = pneg %p147
      %p302 = pneg %p171
      %p303 = pneg %p168
      %p304 = pneg %p192
      %p305 = pneg %p189
      %p306 = pneg %p218
      %p307 = pneg %p215
      %s308 = smul.u32 16, %s19
      %p309 = scmp.lt.s32.totalorder %s308, 31
      %s310 = scalar_select %p309, %s308, 31
      %s311 = smul.addr %s310, 4
      %s312 = smul.addr %s311, 8
      %s313 = scalar_lea.vmem %s8, %s312
      %s314 = smul.u32 22, %s19
      %p315 = scmp.lt.s32.totalorder %s314, 43
      %s316 = scalar_select %p315, %s314, 43
      %s317 = smul.addr %s316, 8
      %s318 = scalar_lea.vmem %s0, %s317
      %s319 = smul.u32 22, %s19
      %s320 = smul.u32 22, %s19
      %p321 = scmp.lt.s32.totalorder %s320, 43
      %s322 = scalar_select %p321, %s320, 43
      %s323 = smul.addr %s322, 8
      %s324 = scalar_lea.vmem %s1, %s323
      %s325 = smul.u32 22, %s19
      %s326 = smul.u32 16, %s19
      %p327 = scmp.lt.s32.totalorder %s326, 31
      %s328 = scalar_select %p327, %s326, 31
      %s329 = smul.addr %s328, 4
      %s330 = smul.addr %s329, 8
      %s331 = scalar_lea.vmem %s8, %s330
      %s332 = smul.u32 16, %s19
      %v333 = vld [vmem:[%s324] sm:$0xff]
      %v334 = vld [vmem:[%s324 + $0x8] sm:$0xff]
      %v335 = vld [vmem:[%s324 + $0x10] sm:$0xff]
      %v336 = vld [vmem:[%s324 + $0x18] sm:$0xff]
      %v337 = vld [vmem:[%s324 + $0x20] sm:$0xff]
      %v338 = vld [vmem:[%s324 + $0x28] sm:$0xff]
      %v339 = vld [vmem:[%s324 + $0x30] sm:$0xff]
      %v340 = vld [vmem:[%s324 + $0x38] sm:$0xff]
      %v341 = vld [vmem:[%s324 + $0x40] sm:$0xff]
      %v342 = vld [vmem:[%s324 + $0x48] sm:$0xff]
      %v343 = vld [vmem:[%s324 + $0x50] sm:$0xff]
      %v344 = vld [vmem:[%s324 + $0x58] sm:$0xff]
      %v345 = vld [vmem:[%s324 + $0x60] sm:$0xff]
      %v346 = vld [vmem:[%s324 + $0x68] sm:$0xff]
      %v347 = vld [vmem:[%s324 + $0x70] sm:$0xff]
      %v348 = vld [vmem:[%s324 + $0x78] sm:$0xff]
      %v349 = vld [vmem:[%s2] sm:$0xff]
      %v350 = vld [vmem:[%s2 + $0x8] sm:$0xff]
      %v351 = vld [vmem:[%s2 + $0x10] sm:$0xff]
      %v352 = vld [vmem:[%s2 + $0x18] sm:$0xff]
      %v353 = vld [vmem:[%s2 + $0x20] sm:$0xff]
      %v354 = vld [vmem:[%s2 + $0x28] sm:$0xff]
      %v355 = vld [vmem:[%s2 + $0x30] sm:$0xff]
      %v356 = vld [vmem:[%s2 + $0x38] sm:$0xff]
      %v357 = vld [vmem:[%s2 + $0x40] sm:$0xff]
      %v358 = vld [vmem:[%s2 + $0x48] sm:$0xff]
      %v359 = vld [vmem:[%s2 + $0x50] sm:$0xff]
      %v360 = vld [vmem:[%s2 + $0x58] sm:$0xff]
      %v361 = vld [vmem:[%s2 + $0x60] sm:$0xff]
      %v362 = vld [vmem:[%s2 + $0x68] sm:$0xff]
      %v363 = vld [vmem:[%s2 + $0x70] sm:$0xff]
      %v364 = vld [vmem:[%s2 + $0x78] sm:$0xff]
      %v365 = vld [vmem:[%s324 + $0x1] sm:$0xff]
      %v366 = vld [vmem:[%s324 + $0x9] sm:$0xff]
      %v367 = vld [vmem:[%s324 + $0x11] sm:$0xff]
      %v368 = vld [vmem:[%s324 + $0x19] sm:$0xff]
      %v369 = vld [vmem:[%s324 + $0x21] sm:$0xff]
      %v370 = vld [vmem:[%s324 + $0x29] sm:$0xff]
      %v371 = vld [vmem:[%s324 + $0x31] sm:$0xff]
      %v372 = vld [vmem:[%s324 + $0x39] sm:$0xff]
      %v373 = vld [vmem:[%s324 + $0x41] sm:$0xff]
      %v374 = vld [vmem:[%s324 + $0x49] sm:$0xff]
      %v375 = vld [vmem:[%s324 + $0x51] sm:$0xff]
      %v376 = vld [vmem:[%s324 + $0x59] sm:$0xff]
      %v377 = vld [vmem:[%s324 + $0x61] sm:$0xff]
      %v378 = vld [vmem:[%s324 + $0x69] sm:$0xff]
      %v379 = vld [vmem:[%s324 + $0x71] sm:$0xff]
      %v380 = vld [vmem:[%s324 + $0x79] sm:$0xff]
      %s381 = scalar_lea.vmem %s2, 128
      %v382 = vld [vmem:[%s381] sm:$0xff]
      %v383 = vld [vmem:[%s381 + $0x8] sm:$0xff]
      %v384 = vld [vmem:[%s381 + $0x10] sm:$0xff]
      %v385 = vld [vmem:[%s381 + $0x18] sm:$0xff]
      %v386 = vld [vmem:[%s381 + $0x20] sm:$0xff]
      %v387 = vld [vmem:[%s381 + $0x28] sm:$0xff]
      %v388 = vld [vmem:[%s381 + $0x30] sm:$0xff]
      %v389 = vld [vmem:[%s381 + $0x38] sm:$0xff]
      %v390 = vld [vmem:[%s381 + $0x40] sm:$0xff]
      %v391 = vld [vmem:[%s381 + $0x48] sm:$0xff]
      %v392 = vld [vmem:[%s381 + $0x50] sm:$0xff]
      %v393 = vld [vmem:[%s381 + $0x58] sm:$0xff]
      %v394 = vld [vmem:[%s381 + $0x60] sm:$0xff]
      %v395 = vld [vmem:[%s381 + $0x68] sm:$0xff]
      %v396 = vld [vmem:[%s381 + $0x70] sm:$0xff]
      %v397 = vld [vmem:[%s381 + $0x78] sm:$0xff]
      %398 = vmatprep.subr.mxu0 0.0
      %399 = vmatpush1.msra.mxu0 %v397
      %400 = vmatprep.subr.mxu0 0.0
      %401 = vmatpush1.msra.mxu0 %v396
      %402 = vmatprep.subr.mxu0 0.0
      %403 = vmatpush1.msra.mxu0 %v395
      %404 = vmatprep.subr.mxu0 0.0
      %405 = vmatpush1.msra.mxu0 %v394
      %406 = vmatprep.subr.mxu0 0.0
      %407 = vmatpush1.msra.mxu0 %v393
      %408 = vmatprep.subr.mxu0 0.0
      %409 = vmatpush1.msra.mxu0 %v392
      %410 = vmatprep.subr.mxu0 0.0
      %411 = vmatpush1.msra.mxu0 %v391
      %412 = vmatprep.subr.mxu0 0.0
      %413 = vmatpush1.msra.mxu0 %v390
      %414 = vmatprep.subr.mxu0 0.0
      %415 = vmatpush1.msra.mxu0 %v389
      %416 = vmatprep.subr.mxu0 0.0
      %417 = vmatpush1.msra.mxu0 %v388
      %418 = vmatprep.subr.mxu0 0.0
      %419 = vmatpush1.msra.mxu0 %v387
      %420 = vmatprep.subr.mxu0 0.0
      %421 = vmatpush1.msra.mxu0 %v386
      %422 = vmatprep.subr.mxu0 0.0
      %423 = vmatpush1.msra.mxu0 %v385
      %424 = vmatprep.subr.mxu0 0.0
      %425 = vmatpush1.msra.mxu0 %v384
      %426 = vmatprep.subr.mxu0 0.0
      %427 = vmatpush1.msra.mxu0 %v383
      %428 = vmatprep.subr.mxu0 0.0
      %429 = vmatpush1.msra.mxu0 %v382
      %430 = vmatprep.subr.mxu0 0.0
      %431 = vmatpush2.msra.mxu0 0.0
      %432 = vmatprep.subr.mxu0 0.0
      %433 = vmatpush2.msra.mxu0 0.0
      %434 = vmatprep.subr.mxu0 0.0
      %435 = vmatpush2.msra.mxu0 0.0
      %436 = vmatprep.subr.mxu0 0.0
      %437 = vmatpush2.msra.mxu0 0.0
      %438 = vmatprep.subr.mxu0 0.0
      %439 = vmatpush2.msra.mxu0 0.0
      %440 = vmatprep.subr.mxu0 0.0
      %441 = vmatpush2.msra.mxu0 0.0
      %442 = vmatprep.subr.mxu0 0.0
      %443 = vmatpush2.msra.mxu0 0.0
      %444 = vmatprep.subr.mxu0 0.0
      %445 = vmatpush2.msra.mxu0 0.0
      %446 = vmatprep.subr.mxu0 0.0
      %447 = vmatpush2.msra.mxu0 0.0
      %448 = vmatprep.subr.mxu0 0.0
      %449 = vmatpush2.msra.mxu0 0.0
      %450 = vmatprep.subr.mxu0 0.0
      %451 = vmatpush2.msra.mxu0 0.0
      %452 = vmatprep.subr.mxu0 0.0
      %453 = vmatpush2.msra.mxu0 0.0
      %454 = vmatprep.subr.mxu0 0.0
      %455 = vmatpush2.msra.mxu0 0.0
      %456 = vmatprep.subr.mxu0 0.0
      %457 = vmatpush2.msra.mxu0 0.0
      %458 = vmatprep.subr.mxu0 0.0
      %459 = vmatpush2.msra.mxu0 0.0
      %460 = vmatprep.subr.mxu0 0.0
      %461 = vmatpush2.msra.mxu0 0.0
      %462 = vmatprep.mubr.f32.mxu0 0.0
      %463 = vmatmul.mubr.f32.gmra.mxu0 %v365
      %v464 = vpop.f32.mrf.mxu0
      %v465 = vadd.f32 0.0, %v464
      %v466 = vpop.f32.mrf.mxu0
      %467 = vmatprep.mubr.f32.mxu0 0.0
      %468 = vmatmul.mubr.f32.gmra.mxu0 %v366
      %v469 = vpop.f32.mrf.mxu0
      %v470 = vadd.f32 0.0, %v469
      %v471 = vpop.f32.mrf.mxu0
      %472 = vmatprep.mubr.f32.mxu0 0.0
      %473 = vmatmul.mubr.f32.gmra.mxu0 %v367
      %v474 = vpop.f32.mrf.mxu0
      %v475 = vadd.f32 0.0, %v474
      %v476 = vpop.f32.mrf.mxu0
      %477 = vmatprep.mubr.f32.mxu0 0.0
      %478 = vmatmul.mubr.f32.gmra.mxu0 %v368
      %v479 = vpop.f32.mrf.mxu0
      %v480 = vadd.f32 0.0, %v479
      %v481 = vpop.f32.mrf.mxu0
      %482 = vmatprep.mubr.f32.mxu0 0.0
      %483 = vmatmul.mubr.f32.gmra.mxu0 %v369
      %v484 = vpop.f32.mrf.mxu0
      %v485 = vadd.f32 0.0, %v484
      %v486 = vpop.f32.mrf.mxu0
      %487 = vmatprep.mubr.f32.mxu0 0.0
      %488 = vmatmul.mubr.f32.gmra.mxu0 %v370
      %v489 = vpop.f32.mrf.mxu0
      %v490 = vadd.f32 0.0, %v489
      %v491 = vpop.f32.mrf.mxu0
      %492 = vmatprep.mubr.f32.mxu0 0.0
      %493 = vmatmul.mubr.f32.gmra.mxu0 %v371
      %v494 = vpop.f32.mrf.mxu0
      %v495 = vadd.f32 0.0, %v494
      %v496 = vpop.f32.mrf.mxu0
      %497 = vmatprep.mubr.f32.mxu0 0.0
      %498 = vmatmul.mubr.f32.gmra.mxu0 %v372
      %v499 = vpop.f32.mrf.mxu0
      %v500 = vadd.f32 0.0, %v499
      %v501 = vpop.f32.mrf.mxu0
      %502 = vmatprep.mubr.f32.mxu0 0.0
      %503 = vmatmul.mubr.f32.gmra.mxu0 %v373
      %v504 = vpop.f32.mrf.mxu0
      %v505 = vadd.f32 0.0, %v504
      %v506 = vpop.f32.mrf.mxu0
      %507 = vmatprep.mubr.f32.mxu0 0.0
      %508 = vmatmul.mubr.f32.gmra.mxu0 %v374
      %v509 = vpop.f32.mrf.mxu0
      %v510 = vadd.f32 0.0, %v509
      %v511 = vpop.f32.mrf.mxu0
      %512 = vmatprep.mubr.f32.mxu0 0.0
      %513 = vmatmul.mubr.f32.gmra.mxu0 %v375
      %v514 = vpop.f32.mrf.mxu0
      %v515 = vadd.f32 0.0, %v514
      %v516 = vpop.f32.mrf.mxu0
      %517 = vmatprep.mubr.f32.mxu0 0.0
      %518 = vmatmul.mubr.f32.gmra.mxu0 %v376
      %v519 = vpop.f32.mrf.mxu0
      %v520 = vadd.f32 0.0, %v519
      %v521 = vpop.f32.mrf.mxu0
      %522 = vmatprep.mubr.f32.mxu0 0.0
      %523 = vmatmul.mubr.f32.gmra.mxu0 %v377
      %v524 = vpop.f32.mrf.mxu0
      %v525 = vadd.f32 0.0, %v524
      %v526 = vpop.f32.mrf.mxu0
      %527 = vmatprep.mubr.f32.mxu0 0.0
      %528 = vmatmul.mubr.f32.gmra.mxu0 %v378
      %v529 = vpop.f32.mrf.mxu0
      %v530 = vadd.f32 0.0, %v529
      %v531 = vpop.f32.mrf.mxu0
      %532 = vmatprep.mubr.f32.mxu0 0.0
      %533 = vmatmul.mubr.f32.gmra.mxu0 %v379
      %v534 = vpop.f32.mrf.mxu0
      %v535 = vadd.f32 0.0, %v534
      %v536 = vpop.f32.mrf.mxu0
      %537 = vmatprep.mubr.f32.mxu0 0.0
      %538 = vmatmul.mubr.f32.gmra.mxu0 %v380
      %v539 = vpop.f32.mrf.mxu0
      %v540 = vadd.f32 0.0, %v539
      %v541 = vpop.f32.mrf.mxu0
      %542 = vdwg.mxu0
      %543 = vmatprep.subr.mxu0 0.0
      %544 = vmatpush1.msra.mxu0 %v364
      %545 = vmatprep.subr.mxu0 0.0
      %546 = vmatpush1.msra.mxu0 %v363
      %547 = vmatprep.subr.mxu0 0.0
      %548 = vmatpush1.msra.mxu0 %v362
      %549 = vmatprep.subr.mxu0 0.0
      %550 = vmatpush1.msra.mxu0 %v361
      %551 = vmatprep.subr.mxu0 0.0
      %552 = vmatpush1.msra.mxu0 %v360
      %553 = vmatprep.subr.mxu0 0.0
      %554 = vmatpush1.msra.mxu0 %v359
      %555 = vmatprep.subr.mxu0 0.0
      %556 = vmatpush1.msra.mxu0 %v358
      %557 = vmatprep.subr.mxu0 0.0
      %558 = vmatpush1.msra.mxu0 %v357
      %559 = vmatprep.subr.mxu0 0.0
      %560 = vmatpush1.msra.mxu0 %v356
      %561 = vmatprep.subr.mxu0 0.0
      %562 = vmatpush1.msra.mxu0 %v355
      %563 = vmatprep.subr.mxu0 0.0
      %564 = vmatpush1.msra.mxu0 %v354
      %565 = vmatprep.subr.mxu0 0.0
      %566 = vmatpush1.msra.mxu0 %v353
      %567 = vmatprep.subr.mxu0 0.0
      %568 = vmatpush1.msra.mxu0 %v352
      %569 = vmatprep.subr.mxu0 0.0
      %570 = vmatpush1.msra.mxu0 %v351
      %571 = vmatprep.subr.mxu0 0.0
      %572 = vmatpush1.msra.mxu0 %v350
      %573 = vmatprep.subr.mxu0 0.0
      %574 = vmatpush1.msra.mxu0 %v349
      %575 = vmatprep.subr.mxu0 0.0
      %576 = vmatpush2.msra.mxu0 0.0
      %577 = vmatprep.subr.mxu0 0.0
      %578 = vmatpush2.msra.mxu0 0.0
      %579 = vmatprep.subr.mxu0 0.0
      %580 = vmatpush2.msra.mxu0 0.0
      %581 = vmatprep.subr.mxu0 0.0
      %582 = vmatpush2.msra.mxu0 0.0
      %583 = vmatprep.subr.mxu0 0.0
      %584 = vmatpush2.msra.mxu0 0.0
      %585 = vmatprep.subr.mxu0 0.0
      %586 = vmatpush2.msra.mxu0 0.0
      %587 = vmatprep.subr.mxu0 0.0
      %588 = vmatpush2.msra.mxu0 0.0
      %589 = vmatprep.subr.mxu0 0.0
      %590 = vmatpush2.msra.mxu0 0.0
      %591 = vmatprep.subr.mxu0 0.0
      %592 = vmatpush2.msra.mxu0 0.0
      %593 = vmatprep.subr.mxu0 0.0
      %594 = vmatpush2.msra.mxu0 0.0
      %595 = vmatprep.subr.mxu0 0.0
      %596 = vmatpush2.msra.mxu0 0.0
      %597 = vmatprep.subr.mxu0 0.0
      %598 = vmatpush2.msra.mxu0 0.0
      %599 = vmatprep.subr.mxu0 0.0
      %600 = vmatpush2.msra.mxu0 0.0
      %601 = vmatprep.subr.mxu0 0.0
      %602 = vmatpush2.msra.mxu0 0.0
      %603 = vmatprep.subr.mxu0 0.0
      %604 = vmatpush2.msra.mxu0 0.0
      %605 = vmatprep.subr.mxu0 0.0
      %606 = vmatpush2.msra.mxu0 0.0
      %607 = vmatprep.mubr.f32.mxu0 0.0
      %608 = vmatmul.mubr.f32.gmra.mxu0 %v333
      %v609 = vpop.f32.mrf.mxu0
      %v610 = vadd.f32 %v465, %v609
      %v611 = vpop.f32.mrf.mxu0
      %612 = vmatprep.mubr.f32.mxu0 0.0
      %613 = vmatmul.mubr.f32.gmra.mxu0 %v334
      %v614 = vpop.f32.mrf.mxu0
      %v615 = vadd.f32 %v470, %v614
      %v616 = vpop.f32.mrf.mxu0
      %617 = vmatprep.mubr.f32.mxu0 0.0
      %618 = vmatmul.mubr.f32.gmra.mxu0 %v335
      %v619 = vpop.f32.mrf.mxu0
      %v620 = vadd.f32 %v475, %v619
      %v621 = vpop.f32.mrf.mxu0
      %622 = vmatprep.mubr.f32.mxu0 0.0
      %623 = vmatmul.mubr.f32.gmra.mxu0 %v336
      %v624 = vpop.f32.mrf.mxu0
      %v625 = vadd.f32 %v480, %v624
      %v626 = vpop.f32.mrf.mxu0
      %627 = vmatprep.mubr.f32.mxu0 0.0
      %628 = vmatmul.mubr.f32.gmra.mxu0 %v337
      %v629 = vpop.f32.mrf.mxu0
      %v630 = vadd.f32 %v485, %v629
      %v631 = vpop.f32.mrf.mxu0
      %632 = vmatprep.mubr.f32.mxu0 0.0
      %633 = vmatmul.mubr.f32.gmra.mxu0 %v338
      %v634 = vpop.f32.mrf.mxu0
      %v635 = vadd.f32 %v490, %v634
      %v636 = vpop.f32.mrf.mxu0
      %637 = vmatprep.mubr.f32.mxu0 0.0
      %638 = vmatmul.mubr.f32.gmra.mxu0 %v339
      %v639 = vpop.f32.mrf.mxu0
      %v640 = vadd.f32 %v495, %v639
      %v641 = vpop.f32.mrf.mxu0
      %642 = vmatprep.mubr.f32.mxu0 0.0
      %643 = vmatmul.mubr.f32.gmra.mxu0 %v340
      %v644 = vpop.f32.mrf.mxu0
      %v645 = vadd.f32 %v500, %v644
      %v646 = vpop.f32.mrf.mxu0
      %647 = vmatprep.mubr.f32.mxu0 0.0
      %648 = vmatmul.mubr.f32.gmra.mxu0 %v341
      %v649 = vpop.f32.mrf.mxu0
      %v650 = vadd.f32 %v505, %v649
      %v651 = vpop.f32.mrf.mxu0
      %652 = vmatprep.mubr.f32.mxu0 0.0
      %653 = vmatmul.mubr.f32.gmra.mxu0 %v342
      %v654 = vpop.f32.mrf.mxu0
      %v655 = vadd.f32 %v510, %v654
      %v656 = vpop.f32.mrf.mxu0
      %657 = vmatprep.mubr.f32.mxu0 0.0
      %658 = vmatmul.mubr.f32.gmra.mxu0 %v343
      %v659 = vpop.f32.mrf.mxu0
      %v660 = vadd.f32 %v515, %v659
      %v661 = vpop.f32.mrf.mxu0
      %662 = vmatprep.mubr.f32.mxu0 0.0
      %663 = vmatmul.mubr.f32.gmra.mxu0 %v344
      %v664 = vpop.f32.mrf.mxu0
      %v665 = vadd.f32 %v520, %v664
      %v666 = vpop.f32.mrf.mxu0
      %667 = vmatprep.mubr.f32.mxu0 0.0
      %668 = vmatmul.mubr.f32.gmra.mxu0 %v345
      %v669 = vpop.f32.mrf.mxu0
      %v670 = vadd.f32 %v525, %v669
      %v671 = vpop.f32.mrf.mxu0
      %672 = vmatprep.mubr.f32.mxu0 0.0
      %673 = vmatmul.mubr.f32.gmra.mxu0 %v346
      %v674 = vpop.f32.mrf.mxu0
      %v675 = vadd.f32 %v530, %v674
      %v676 = vpop.f32.mrf.mxu0
      %677 = vmatprep.mubr.f32.mxu0 0.0
      %678 = vmatmul.mubr.f32.gmra.mxu0 %v347
      %v679 = vpop.f32.mrf.mxu0
      %v680 = vadd.f32 %v535, %v679
      %v681 = vpop.f32.mrf.mxu0
      %682 = vmatprep.mubr.f32.mxu0 0.0
      %683 = vmatmul.mubr.f32.gmra.mxu0 %v348
      %v684 = vpop.f32.mrf.mxu0
      %v685 = vadd.f32 %v540, %v684
      %v686 = vpop.f32.mrf.mxu0
      %687 = vdwg.mxu0
      %v688 = vld [vmem:[%s324 + $0x2] sm:$0xff]
      %v689 = vld [vmem:[%s324 + $0xa] sm:$0xff]
      %v690 = vld [vmem:[%s324 + $0x12] sm:$0xff]
      %v691 = vld [vmem:[%s324 + $0x1a] sm:$0xff]
      %v692 = vld [vmem:[%s324 + $0x22] sm:$0xff]
      %v693 = vld [vmem:[%s324 + $0x2a] sm:$0xff]
      %v694 = vld [vmem:[%s324 + $0x32] sm:$0xff]
      %v695 = vld [vmem:[%s324 + $0x3a] sm:$0xff]
      %v696 = vld [vmem:[%s324 + $0x42] sm:$0xff]
      %v697 = vld [vmem:[%s324 + $0x4a] sm:$0xff]
      %v698 = vld [vmem:[%s324 + $0x52] sm:$0xff]
      %v699 = vld [vmem:[%s324 + $0x5a] sm:$0xff]
      %v700 = vld [vmem:[%s324 + $0x62] sm:$0xff]
      %v701 = vld [vmem:[%s324 + $0x6a] sm:$0xff]
      %v702 = vld [vmem:[%s324 + $0x72] sm:$0xff]
      %v703 = vld [vmem:[%s324 + $0x7a] sm:$0xff]
      %s704 = scalar_lea.vmem %s2, 256
      %v705 = vld [vmem:[%s704] sm:$0xff]
      %v706 = vld [vmem:[%s704 + $0x8] sm:$0xff]
      %v707 = vld [vmem:[%s704 + $0x10] sm:$0xff]
      %v708 = vld [vmem:[%s704 + $0x18] sm:$0xff]
      %v709 = vld [vmem:[%s704 + $0x20] sm:$0xff]
      %v710 = vld [vmem:[%s704 + $0x28] sm:$0xff]
      %v711 = vld [vmem:[%s704 + $0x30] sm:$0xff]
      %v712 = vld [vmem:[%s704 + $0x38] sm:$0xff]
      %v713 = vld [vmem:[%s704 + $0x40] sm:$0xff]
      %v714 = vld [vmem:[%s704 + $0x48] sm:$0xff]
      %v715 = vld [vmem:[%s704 + $0x50] sm:$0xff]
      %v716 = vld [vmem:[%s704 + $0x58] sm:$0xff]
      %v717 = vld [vmem:[%s704 + $0x60] sm:$0xff]
      %v718 = vld [vmem:[%s704 + $0x68] sm:$0xff]
      %v719 = vld [vmem:[%s704 + $0x70] sm:$0xff]
      %v720 = vld [vmem:[%s704 + $0x78] sm:$0xff]
      %721 = vmatprep.subr.mxu0 0.0
      %722 = vmatpush1.msra.mxu0 %v720
      %723 = vmatprep.subr.mxu0 0.0
      %724 = vmatpush1.msra.mxu0 %v719
      %725 = vmatprep.subr.mxu0 0.0
      %726 = vmatpush1.msra.mxu0 %v718
      %727 = vmatprep.subr.mxu0 0.0
      %728 = vmatpush1.msra.mxu0 %v717
      %729 = vmatprep.subr.mxu0 0.0
      %730 = vmatpush1.msra.mxu0 %v716
      %731 = vmatprep.subr.mxu0 0.0
      %732 = vmatpush1.msra.mxu0 %v715
      %733 = vmatprep.subr.mxu0 0.0
      %734 = vmatpush1.msra.mxu0 %v714
      %735 = vmatprep.subr.mxu0 0.0
      %736 = vmatpush1.msra.mxu0 %v713
      %737 = vmatprep.subr.mxu0 0.0
      %738 = vmatpush1.msra.mxu0 %v712
      %739 = vmatprep.subr.mxu0 0.0
      %740 = vmatpush1.msra.mxu0 %v711
      %741 = vmatprep.subr.mxu0 0.0
      %742 = vmatpush1.msra.mxu0 %v710
      %743 = vmatprep.subr.mxu0 0.0
      %744 = vmatpush1.msra.mxu0 %v709
      %745 = vmatprep.subr.mxu0 0.0
      %746 = vmatpush1.msra.mxu0 %v708
      %747 = vmatprep.subr.mxu0 0.0
      %748 = vmatpush1.msra.mxu0 %v707
      %749 = vmatprep.subr.mxu0 0.0
      %750 = vmatpush1.msra.mxu0 %v706
      %751 = vmatprep.subr.mxu0 0.0
      %752 = vmatpush1.msra.mxu0 %v705
      %753 = vmatprep.subr.mxu0 0.0
      %754 = vmatpush2.msra.mxu0 0.0
      %755 = vmatprep.subr.mxu0 0.0
      %756 = vmatpush2.msra.mxu0 0.0
      %757 = vmatprep.subr.mxu0 0.0
      %758 = vmatpush2.msra.mxu0 0.0
      %759 = vmatprep.subr.mxu0 0.0
      %760 = vmatpush2.msra.mxu0 0.0
      %761 = vmatprep.subr.mxu0 0.0
      %762 = vmatpush2.msra.mxu0 0.0
      %763 = vmatprep.subr.mxu0 0.0
      %764 = vmatpush2.msra.mxu0 0.0
      %765 = vmatprep.subr.mxu0 0.0
      %766 = vmatpush2.msra.mxu0 0.0
      %767 = vmatprep.subr.mxu0 0.0
      %768 = vmatpush2.msra.mxu0 0.0
      %769 = vmatprep.subr.mxu0 0.0
      %770 = vmatpush2.msra.mxu0 0.0
      %771 = vmatprep.subr.mxu0 0.0
      %772 = vmatpush2.msra.mxu0 0.0
      %773 = vmatprep.subr.mxu0 0.0
      %774 = vmatpush2.msra.mxu0 0.0
      %775 = vmatprep.subr.mxu0 0.0
      %776 = vmatpush2.msra.mxu0 0.0
      %777 = vmatprep.subr.mxu0 0.0
      %778 = vmatpush2.msra.mxu0 0.0
      %779 = vmatprep.subr.mxu0 0.0
      %780 = vmatpush2.msra.mxu0 0.0
      %781 = vmatprep.subr.mxu0 0.0
      %782 = vmatpush2.msra.mxu0 0.0
      %783 = vmatprep.subr.mxu0 0.0
      %784 = vmatpush2.msra.mxu0 0.0
      %785 = vmatprep.mubr.f32.mxu0 0.0
      %786 = vmatmul.mubr.f32.gmra.mxu0 %v688
      %v787 = vpop.f32.mrf.mxu0
      %v788 = vadd.f32 0.0, %v787
      %v789 = vpop.f32.mrf.mxu0
      %790 = vmatprep.mubr.f32.mxu0 0.0
      %791 = vmatmul.mubr.f32.gmra.mxu0 %v689
      %v792 = vpop.f32.mrf.mxu0
      %v793 = vadd.f32 0.0, %v792
      %v794 = vpop.f32.mrf.mxu0
      %795 = vmatprep.mubr.f32.mxu0 0.0
      %796 = vmatmul.mubr.f32.gmra.mxu0 %v690
      %v797 = vpop.f32.mrf.mxu0
      %v798 = vadd.f32 0.0, %v797
      %v799 = vpop.f32.mrf.mxu0
      %800 = vmatprep.mubr.f32.mxu0 0.0
      %801 = vmatmul.mubr.f32.gmra.mxu0 %v691
      %v802 = vpop.f32.mrf.mxu0
      %v803 = vadd.f32 0.0, %v802
      %v804 = vpop.f32.mrf.mxu0
      %805 = vmatprep.mubr.f32.mxu0 0.0
      %806 = vmatmul.mubr.f32.gmra.mxu0 %v692
      %v807 = vpop.f32.mrf.mxu0
      %v808 = vadd.f32 0.0, %v807
      %v809 = vpop.f32.mrf.mxu0
      %810 = vmatprep.mubr.f32.mxu0 0.0
      %811 = vmatmul.mubr.f32.gmra.mxu0 %v693
      %v812 = vpop.f32.mrf.mxu0
      %v813 = vadd.f32 0.0, %v812
      %v814 = vpop.f32.mrf.mxu0
      %815 = vmatprep.mubr.f32.mxu0 0.0
      %816 = vmatmul.mubr.f32.gmra.mxu0 %v694
      %v817 = vpop.f32.mrf.mxu0
      %v818 = vadd.f32 0.0, %v817
      %v819 = vpop.f32.mrf.mxu0
      %820 = vmatprep.mubr.f32.mxu0 0.0
      %821 = vmatmul.mubr.f32.gmra.mxu0 %v695
      %v822 = vpop.f32.mrf.mxu0
      %v823 = vadd.f32 0.0, %v822
      %v824 = vpop.f32.mrf.mxu0
      %825 = vmatprep.mubr.f32.mxu0 0.0
      %826 = vmatmul.mubr.f32.gmra.mxu0 %v696
      %v827 = vpop.f32.mrf.mxu0
      %v828 = vadd.f32 0.0, %v827
      %v829 = vpop.f32.mrf.mxu0
      %830 = vmatprep.mubr.f32.mxu0 0.0
      %831 = vmatmul.mubr.f32.gmra.mxu0 %v697
      %v832 = vpop.f32.mrf.mxu0
      %v833 = vadd.f32 0.0, %v832
      %v834 = vpop.f32.mrf.mxu0
      %835 = vmatprep.mubr.f32.mxu0 0.0
      %836 = vmatmul.mubr.f32.gmra.mxu0 %v698
      %v837 = vpop.f32.mrf.mxu0
      %v838 = vadd.f32 0.0, %v837
      %v839 = vpop.f32.mrf.mxu0
      %840 = vmatprep.mubr.f32.mxu0 0.0
      %841 = vmatmul.mubr.f32.gmra.mxu0 %v699
      %v842 = vpop.f32.mrf.mxu0
      %v843 = vadd.f32 0.0, %v842
      %v844 = vpop.f32.mrf.mxu0
      %845 = vmatprep.mubr.f32.mxu0 0.0
      %846 = vmatmul.mubr.f32.gmra.mxu0 %v700
      %v847 = vpop.f32.mrf.mxu0
      %v848 = vadd.f32 0.0, %v847
      %v849 = vpop.f32.mrf.mxu0
      %850 = vmatprep.mubr.f32.mxu0 0.0
      %851 = vmatmul.mubr.f32.gmra.mxu0 %v701
      %v852 = vpop.f32.mrf.mxu0
      %v853 = vadd.f32 0.0, %v852
      %v854 = vpop.f32.mrf.mxu0
      %855 = vmatprep.mubr.f32.mxu0 0.0
      %856 = vmatmul.mubr.f32.gmra.mxu0 %v702
      %v857 = vpop.f32.mrf.mxu0
      %v858 = vadd.f32 0.0, %v857
      %v859 = vpop.f32.mrf.mxu0
      %860 = vmatprep.mubr.f32.mxu0 0.0
      %861 = vmatmul.mubr.f32.gmra.mxu0 %v703
      %v862 = vpop.f32.mrf.mxu0
      %v863 = vadd.f32 0.0, %v862
      %v864 = vpop.f32.mrf.mxu0
      %865 = vdwg.mxu0
      %v866 = vadd.f32 %v610, %v788
      %v867 = vadd.f32 %v615, %v793
      %v868 = vadd.f32 %v620, %v798
      %v869 = vadd.f32 %v625, %v803
      %v870 = vadd.f32 %v630, %v808
      %v871 = vadd.f32 %v635, %v813
      %v872 = vadd.f32 %v640, %v818
      %v873 = vadd.f32 %v645, %v823
      %v874 = vadd.f32 %v650, %v828
      %v875 = vadd.f32 %v655, %v833
      %v876 = vadd.f32 %v660, %v838
      %v877 = vadd.f32 %v665, %v843
      %v878 = vadd.f32 %v670, %v848
      %v879 = vadd.f32 %v675, %v853
      %v880 = vadd.f32 %v680, %v858
      %v881 = vadd.f32 %v685, %v863
      %v882 = vld [vmem:[%s324 + $0x10] sm:$0xff]
      %v883 = vld [vmem:[%s324 + $0x18] sm:$0xff]
      %v884 = vld [vmem:[%s324 + $0x20] sm:$0xff]
      %v885 = vld [vmem:[%s324 + $0x28] sm:$0xff]
      %v886 = vld [vmem:[%s324 + $0x30] sm:$0xff]
      %v887 = vld [vmem:[%s324 + $0x38] sm:$0xff]
      %v888 = vld [vmem:[%s324 + $0x40] sm:$0xff]
      %v889 = vld [vmem:[%s324 + $0x48] sm:$0xff]
      %v890 = vld [vmem:[%s324 + $0x50] sm:$0xff]
      %v891 = vld [vmem:[%s324 + $0x58] sm:$0xff]
      %v892 = vld [vmem:[%s324 + $0x60] sm:$0xff]
      %v893 = vld [vmem:[%s324 + $0x68] sm:$0xff]
      %v894 = vld [vmem:[%s324 + $0x70] sm:$0xff]
      %v895 = vld [vmem:[%s324 + $0x78] sm:$0xff]
      %v896 = vld [vmem:[%s324 + $0x80] sm:$0xff]
      %v897 = vld [vmem:[%s324 + $0x88] sm:$0xff]
      %s898 = scalar_lea.vmem %s2, 384
      %v899 = vld [vmem:[%s898] sm:$0xff]
      %v900 = vld [vmem:[%s898 + $0x8] sm:$0xff]
      %v901 = vld [vmem:[%s898 + $0x10] sm:$0xff]
      %v902 = vld [vmem:[%s898 + $0x18] sm:$0xff]
      %v903 = vld [vmem:[%s898 + $0x20] sm:$0xff]
      %v904 = vld [vmem:[%s898 + $0x28] sm:$0xff]
      %v905 = vld [vmem:[%s898 + $0x30] sm:$0xff]
      %v906 = vld [vmem:[%s898 + $0x38] sm:$0xff]
      %v907 = vld [vmem:[%s898 + $0x40] sm:$0xff]
      %v908 = vld [vmem:[%s898 + $0x48] sm:$0xff]
      %v909 = vld [vmem:[%s898 + $0x50] sm:$0xff]
      %v910 = vld [vmem:[%s898 + $0x58] sm:$0xff]
      %v911 = vld [vmem:[%s898 + $0x60] sm:$0xff]
      %v912 = vld [vmem:[%s898 + $0x68] sm:$0xff]
      %v913 = vld [vmem:[%s898 + $0x70] sm:$0xff]
      %v914 = vld [vmem:[%s898 + $0x78] sm:$0xff]
      %915 = vmatprep.subr.mxu0 0.0
      %916 = vmatpush1.msra.mxu0 %v914
      %917 = vmatprep.subr.mxu0 0.0
      %918 = vmatpush1.msra.mxu0 %v913
      %919 = vmatprep.subr.mxu0 0.0
      %920 = vmatpush1.msra.mxu0 %v912
      %921 = vmatprep.subr.mxu0 0.0
      %922 = vmatpush1.msra.mxu0 %v911
      %923 = vmatprep.subr.mxu0 0.0
      %924 = vmatpush1.msra.mxu0 %v910
      %925 = vmatprep.subr.mxu0 0.0
      %926 = vmatpush1.msra.mxu0 %v909
      %927 = vmatprep.subr.mxu0 0.0
      %928 = vmatpush1.msra.mxu0 %v908
      %929 = vmatprep.subr.mxu0 0.0
      %930 = vmatpush1.msra.mxu0 %v907
      %931 = vmatprep.subr.mxu0 0.0
      %932 = vmatpush1.msra.mxu0 %v906
      %933 = vmatprep.subr.mxu0 0.0
      %934 = vmatpush1.msra.mxu0 %v905
      %935 = vmatprep.subr.mxu0 0.0
      %936 = vmatpush1.msra.mxu0 %v904
      %937 = vmatprep.subr.mxu0 0.0
      %938 = vmatpush1.msra.mxu0 %v903
      %939 = vmatprep.subr.mxu0 0.0
      %940 = vmatpush1.msra.mxu0 %v902
      %941 = vmatprep.subr.mxu0 0.0
      %942 = vmatpush1.msra.mxu0 %v901
      %943 = vmatprep.subr.mxu0 0.0
      %944 = vmatpush1.msra.mxu0 %v900
      %945 = vmatprep.subr.mxu0 0.0
      %946 = vmatpush1.msra.mxu0 %v899
      %947 = vmatprep.subr.mxu0 0.0
      %948 = vmatpush2.msra.mxu0 0.0
      %949 = vmatprep.subr.mxu0 0.0
      %950 = vmatpush2.msra.mxu0 0.0
      %951 = vmatprep.subr.mxu0 0.0
      %952 = vmatpush2.msra.mxu0 0.0
      %953 = vmatprep.subr.mxu0 0.0
      %954 = vmatpush2.msra.mxu0 0.0
      %955 = vmatprep.subr.mxu0 0.0
      %956 = vmatpush2.msra.mxu0 0.0
      %957 = vmatprep.subr.mxu0 0.0
      %958 = vmatpush2.msra.mxu0 0.0
      %959 = vmatprep.subr.mxu0 0.0
      %960 = vmatpush2.msra.mxu0 0.0
      %961 = vmatprep.subr.mxu0 0.0
      %962 = vmatpush2.msra.mxu0 0.0
      %963 = vmatprep.subr.mxu0 0.0
      %964 = vmatpush2.msra.mxu0 0.0
      %965 = vmatprep.subr.mxu0 0.0
      %966 = vmatpush2.msra.mxu0 0.0
      %967 = vmatprep.subr.mxu0 0.0
      %968 = vmatpush2.msra.mxu0 0.0
      %969 = vmatprep.subr.mxu0 0.0
      %970 = vmatpush2.msra.mxu0 0.0
      %971 = vmatprep.subr.mxu0 0.0
      %972 = vmatpush2.msra.mxu0 0.0
      %973 = vmatprep.subr.mxu0 0.0
      %974 = vmatpush2.msra.mxu0 0.0
      %975 = vmatprep.subr.mxu0 0.0
      %976 = vmatpush2.msra.mxu0 0.0
      %977 = vmatprep.subr.mxu0 0.0
      %978 = vmatpush2.msra.mxu0 0.0
      %979 = vmatprep.mubr.f32.mxu0 0.0
      %980 = vmatmul.mubr.f32.gmra.mxu0 %v882
      %v981 = vpop.f32.mrf.mxu0
      %v982 = vadd.f32 0.0, %v981
      %v983 = vpop.f32.mrf.mxu0
      %984 = vmatprep.mubr.f32.mxu0 0.0
      %985 = vmatmul.mubr.f32.gmra.mxu0 %v883
      %v986 = vpop.f32.mrf.mxu0
      %v987 = vadd.f32 0.0, %v986
      %v988 = vpop.f32.mrf.mxu0
      %989 = vmatprep.mubr.f32.mxu0 0.0
      %990 = vmatmul.mubr.f32.gmra.mxu0 %v884
      %v991 = vpop.f32.mrf.mxu0
      %v992 = vadd.f32 0.0, %v991
      %v993 = vpop.f32.mrf.mxu0
      %994 = vmatprep.mubr.f32.mxu0 0.0
      %995 = vmatmul.mubr.f32.gmra.mxu0 %v885
      %v996 = vpop.f32.mrf.mxu0
      %v997 = vadd.f32 0.0, %v996
      %v998 = vpop.f32.mrf.mxu0
      %999 = vmatprep.mubr.f32.mxu0 0.0
      %1000 = vmatmul.mubr.f32.gmra.mxu0 %v886
      %v1001 = vpop.f32.mrf.mxu0
      %v1002 = vadd.f32 0.0, %v1001
      %v1003 = vpop.f32.mrf.mxu0
      %1004 = vmatprep.mubr.f32.mxu0 0.0
      %1005 = vmatmul.mubr.f32.gmra.mxu0 %v887
      %v1006 = vpop.f32.mrf.mxu0
      %v1007 = vadd.f32 0.0, %v1006
      %v1008 = vpop.f32.mrf.mxu0
      %1009 = vmatprep.mubr.f32.mxu0 0.0
      %1010 = vmatmul.mubr.f32.gmra.mxu0 %v888
      %v1011 = vpop.f32.mrf.mxu0
      %v1012 = vadd.f32 0.0, %v1011
      %v1013 = vpop.f32.mrf.mxu0
      %1014 = vmatprep.mubr.f32.mxu0 0.0
      %1015 = vmatmul.mubr.f32.gmra.mxu0 %v889
      %v1016 = vpop.f32.mrf.mxu0
      %v1017 = vadd.f32 0.0, %v1016
      %v1018 = vpop.f32.mrf.mxu0
      %1019 = vmatprep.mubr.f32.mxu0 0.0
      %1020 = vmatmul.mubr.f32.gmra.mxu0 %v890
      %v1021 = vpop.f32.mrf.mxu0
      %v1022 = vadd.f32 0.0, %v1021
      %v1023 = vpop.f32.mrf.mxu0
      %1024 = vmatprep.mubr.f32.mxu0 0.0
      %1025 = vmatmul.mubr.f32.gmra.mxu0 %v891
      %v1026 = vpop.f32.mrf.mxu0
      %v1027 = vadd.f32 0.0, %v1026
      %v1028 = vpop.f32.mrf.mxu0
      %1029 = vmatprep.mubr.f32.mxu0 0.0
      %1030 = vmatmul.mubr.f32.gmra.mxu0 %v892
      %v1031 = vpop.f32.mrf.mxu0
      %v1032 = vadd.f32 0.0, %v1031
      %v1033 = vpop.f32.mrf.mxu0
      %1034 = vmatprep.mubr.f32.mxu0 0.0
      %1035 = vmatmul.mubr.f32.gmra.mxu0 %v893
      %v1036 = vpop.f32.mrf.mxu0
      %v1037 = vadd.f32 0.0, %v1036
      %v1038 = vpop.f32.mrf.mxu0
      %1039 = vmatprep.mubr.f32.mxu0 0.0
      %1040 = vmatmul.mubr.f32.gmra.mxu0 %v894
      %v1041 = vpop.f32.mrf.mxu0
      %v1042 = vadd.f32 0.0, %v1041
      %v1043 = vpop.f32.mrf.mxu0
      %1044 = vmatprep.mubr.f32.mxu0 0.0
      %1045 = vmatmul.mubr.f32.gmra.mxu0 %v895
      %v1046 = vpop.f32.mrf.mxu0
      %v1047 = vadd.f32 0.0, %v1046
      %v1048 = vpop.f32.mrf.mxu0
      %1049 = vmatprep.mubr.f32.mxu0 0.0
      %1050 = vmatmul.mubr.f32.gmra.mxu0 %v896
      %v1051 = vpop.f32.mrf.mxu0
      %v1052 = vadd.f32 0.0, %v1051
      %v1053 = vpop.f32.mrf.mxu0
      %1054 = vmatprep.mubr.f32.mxu0 0.0
      %1055 = vmatmul.mubr.f32.gmra.mxu0 %v897
      %v1056 = vpop.f32.mrf.mxu0
      %v1057 = vadd.f32 0.0, %v1056
      %v1058 = vpop.f32.mrf.mxu0
      %1059 = vdwg.mxu0
      %v1060 = vadd.f32 %v866, %v982
      %v1061 = vadd.f32 %v867, %v987
      %v1062 = vadd.f32 %v868, %v992
      %v1063 = vadd.f32 %v869, %v997
      %v1064 = vadd.f32 %v870, %v1002
      %v1065 = vadd.f32 %v871, %v1007
      %v1066 = vadd.f32 %v872, %v1012
      %v1067 = vadd.f32 %v873, %v1017
      %v1068 = vadd.f32 %v874, %v1022
      %v1069 = vadd.f32 %v875, %v1027
      %v1070 = vadd.f32 %v876, %v1032
      %v1071 = vadd.f32 %v877, %v1037
      %v1072 = vadd.f32 %v878, %v1042
      %v1073 = vadd.f32 %v879, %v1047
      %v1074 = vadd.f32 %v880, %v1052
      %v1075 = vadd.f32 %v881, %v1057
      %v1076 = vld [vmem:[%s324 + $0x11] sm:$0xff]
      %v1077 = vld [vmem:[%s324 + $0x19] sm:$0xff]
      %v1078 = vld [vmem:[%s324 + $0x21] sm:$0xff]
      %v1079 = vld [vmem:[%s324 + $0x29] sm:$0xff]
      %v1080 = vld [vmem:[%s324 + $0x31] sm:$0xff]
      %v1081 = vld [vmem:[%s324 + $0x39] sm:$0xff]
      %v1082 = vld [vmem:[%s324 + $0x41] sm:$0xff]
      %v1083 = vld [vmem:[%s324 + $0x49] sm:$0xff]
      %v1084 = vld [vmem:[%s324 + $0x51] sm:$0xff]
      %v1085 = vld [vmem:[%s324 + $0x59] sm:$0xff]
      %v1086 = vld [vmem:[%s324 + $0x61] sm:$0xff]
      %v1087 = vld [vmem:[%s324 + $0x69] sm:$0xff]
      %v1088 = vld [vmem:[%s324 + $0x71] sm:$0xff]
      %v1089 = vld [vmem:[%s324 + $0x79] sm:$0xff]
      %v1090 = vld [vmem:[%s324 + $0x81] sm:$0xff]
      %v1091 = vld [vmem:[%s324 + $0x89] sm:$0xff]
      %s1092 = scalar_lea.vmem %s2, 512
      %v1093 = vld [vmem:[%s1092] sm:$0xff]
      %v1094 = vld [vmem:[%s1092 + $0x8] sm:$0xff]
      %v1095 = vld [vmem:[%s1092 + $0x10] sm:$0xff]
      %v1096 = vld [vmem:[%s1092 + $0x18] sm:$0xff]
      %v1097 = vld [vmem:[%s1092 + $0x20] sm:$0xff]
      %v1098 = vld [vmem:[%s1092 + $0x28] sm:$0xff]
      %v1099 = vld [vmem:[%s1092 + $0x30] sm:$0xff]
      %v1100 = vld [vmem:[%s1092 + $0x38] sm:$0xff]
      %v1101 = vld [vmem:[%s1092 + $0x40] sm:$0xff]
      %v1102 = vld [vmem:[%s1092 + $0x48] sm:$0xff]
      %v1103 = vld [vmem:[%s1092 + $0x50] sm:$0xff]
      %v1104 = vld [vmem:[%s1092 + $0x58] sm:$0xff]
      %v1105 = vld [vmem:[%s1092 + $0x60] sm:$0xff]
      %v1106 = vld [vmem:[%s1092 + $0x68] sm:$0xff]
      %v1107 = vld [vmem:[%s1092 + $0x70] sm:$0xff]
      %v1108 = vld [vmem:[%s1092 + $0x78] sm:$0xff]
      %1109 = vmatprep.subr.mxu0 0.0
      %1110 = vmatpush1.msra.mxu0 %v1108
      %1111 = vmatprep.subr.mxu0 0.0
      %1112 = vmatpush1.msra.mxu0 %v1107
      %1113 = vmatprep.subr.mxu0 0.0
      %1114 = vmatpush1.msra.mxu0 %v1106
      %1115 = vmatprep.subr.mxu0 0.0
      %1116 = vmatpush1.msra.mxu0 %v1105
      %1117 = vmatprep.subr.mxu0 0.0
      %1118 = vmatpush1.msra.mxu0 %v1104
      %1119 = vmatprep.subr.mxu0 0.0
      %1120 = vmatpush1.msra.mxu0 %v1103
      %1121 = vmatprep.subr.mxu0 0.0
      %1122 = vmatpush1.msra.mxu0 %v1102
      %1123 = vmatprep.subr.mxu0 0.0
      %1124 = vmatpush1.msra.mxu0 %v1101
      %1125 = vmatprep.subr.mxu0 0.0
      %1126 = vmatpush1.msra.mxu0 %v1100
      %1127 = vmatprep.subr.mxu0 0.0
      %1128 = vmatpush1.msra.mxu0 %v1099
      %1129 = vmatprep.subr.mxu0 0.0
      %1130 = vmatpush1.msra.mxu0 %v1098
      %1131 = vmatprep.subr.mxu0 0.0
      %1132 = vmatpush1.msra.mxu0 %v1097
      %1133 = vmatprep.subr.mxu0 0.0
      %1134 = vmatpush1.msra.mxu0 %v1096
      %1135 = vmatprep.subr.mxu0 0.0
      %1136 = vmatpush1.msra.mxu0 %v1095
      %1137 = vmatprep.subr.mxu0 0.0
      %1138 = vmatpush1.msra.mxu0 %v1094
      %1139 = vmatprep.subr.mxu0 0.0
      %1140 = vmatpush1.msra.mxu0 %v1093
      %1141 = vmatprep.subr.mxu0 0.0
      %1142 = vmatpush2.msra.mxu0 0.0
      %1143 = vmatprep.subr.mxu0 0.0
      %1144 = vmatpush2.msra.mxu0 0.0
      %1145 = vmatprep.subr.mxu0 0.0
      %1146 = vmatpush2.msra.mxu0 0.0
      %1147 = vmatprep.subr.mxu0 0.0
      %1148 = vmatpush2.msra.mxu0 0.0
      %1149 = vmatprep.subr.mxu0 0.0
      %1150 = vmatpush2.msra.mxu0 0.0
      %1151 = vmatprep.subr.mxu0 0.0
      %1152 = vmatpush2.msra.mxu0 0.0
      %1153 = vmatprep.subr.mxu0 0.0
      %1154 = vmatpush2.msra.mxu0 0.0
      %1155 = vmatprep.subr.mxu0 0.0
      %1156 = vmatpush2.msra.mxu0 0.0
      %1157 = vmatprep.subr.mxu0 0.0
      %1158 = vmatpush2.msra.mxu0 0.0
      %1159 = vmatprep.subr.mxu0 0.0
      %1160 = vmatpush2.msra.mxu0 0.0
      %1161 = vmatprep.subr.mxu0 0.0
      %1162 = vmatpush2.msra.mxu0 0.0
      %1163 = vmatprep.subr.mxu0 0.0
      %1164 = vmatpush2.msra.mxu0 0.0
      %1165 = vmatprep.subr.mxu0 0.0
      %1166 = vmatpush2.msra.mxu0 0.0
      %1167 = vmatprep.subr.mxu0 0.0
      %1168 = vmatpush2.msra.mxu0 0.0
      %1169 = vmatprep.subr.mxu0 0.0
      %1170 = vmatpush2.msra.mxu0 0.0
      %1171 = vmatprep.subr.mxu0 0.0
      %1172 = vmatpush2.msra.mxu0 0.0
      %1173 = vmatprep.mubr.f32.mxu0 0.0
      %1174 = vmatmul.mubr.f32.gmra.mxu0 %v1076
      %v1175 = vpop.f32.mrf.mxu0
      %v1176 = vadd.f32 0.0, %v1175
      %v1177 = vpop.f32.mrf.mxu0
      %1178 = vmatprep.mubr.f32.mxu0 0.0
      %1179 = vmatmul.mubr.f32.gmra.mxu0 %v1077
      %v1180 = vpop.f32.mrf.mxu0
      %v1181 = vadd.f32 0.0, %v1180
      %v1182 = vpop.f32.mrf.mxu0
      %1183 = vmatprep.mubr.f32.mxu0 0.0
      %1184 = vmatmul.mubr.f32.gmra.mxu0 %v1078
      %v1185 = vpop.f32.mrf.mxu0
      %v1186 = vadd.f32 0.0, %v1185
      %v1187 = vpop.f32.mrf.mxu0
      %1188 = vmatprep.mubr.f32.mxu0 0.0
      %1189 = vmatmul.mubr.f32.gmra.mxu0 %v1079
      %v1190 = vpop.f32.mrf.mxu0
      %v1191 = vadd.f32 0.0, %v1190
      %v1192 = vpop.f32.mrf.mxu0
      %1193 = vmatprep.mubr.f32.mxu0 0.0
      %1194 = vmatmul.mubr.f32.gmra.mxu0 %v1080
      %v1195 = vpop.f32.mrf.mxu0
      %v1196 = vadd.f32 0.0, %v1195
      %v1197 = vpop.f32.mrf.mxu0
      %1198 = vmatprep.mubr.f32.mxu0 0.0
      %1199 = vmatmul.mubr.f32.gmra.mxu0 %v1081
      %v1200 = vpop.f32.mrf.mxu0
      %v1201 = vadd.f32 0.0, %v1200
      %v1202 = vpop.f32.mrf.mxu0
      %1203 = vmatprep.mubr.f32.mxu0 0.0
      %1204 = vmatmul.mubr.f32.gmra.mxu0 %v1082
      %v1205 = vpop.f32.mrf.mxu0
      %v1206 = vadd.f32 0.0, %v1205
      %v1207 = vpop.f32.mrf.mxu0
      %1208 = vmatprep.mubr.f32.mxu0 0.0
      %1209 = vmatmul.mubr.f32.gmra.mxu0 %v1083
      %v1210 = vpop.f32.mrf.mxu0
      %v1211 = vadd.f32 0.0, %v1210
      %v1212 = vpop.f32.mrf.mxu0
      %1213 = vmatprep.mubr.f32.mxu0 0.0
      %1214 = vmatmul.mubr.f32.gmra.mxu0 %v1084
      %v1215 = vpop.f32.mrf.mxu0
      %v1216 = vadd.f32 0.0, %v1215
      %v1217 = vpop.f32.mrf.mxu0
      %1218 = vmatprep.mubr.f32.mxu0 0.0
      %1219 = vmatmul.mubr.f32.gmra.mxu0 %v1085
      %v1220 = vpop.f32.mrf.mxu0
      %v1221 = vadd.f32 0.0, %v1220
      %v1222 = vpop.f32.mrf.mxu0
      %1223 = vmatprep.mubr.f32.mxu0 0.0
      %1224 = vmatmul.mubr.f32.gmra.mxu0 %v1086
      %v1225 = vpop.f32.mrf.mxu0
      %v1226 = vadd.f32 0.0, %v1225
      %v1227 = vpop.f32.mrf.mxu0
      %1228 = vmatprep.mubr.f32.mxu0 0.0
      %1229 = vmatmul.mubr.f32.gmra.mxu0 %v1087
      %v1230 = vpop.f32.mrf.mxu0
      %v1231 = vadd.f32 0.0, %v1230
      %v1232 = vpop.f32.mrf.mxu0
      %1233 = vmatprep.mubr.f32.mxu0 0.0
      %1234 = vmatmul.mubr.f32.gmra.mxu0 %v1088
      %v1235 = vpop.f32.mrf.mxu0
      %v1236 = vadd.f32 0.0, %v1235
      %v1237 = vpop.f32.mrf.mxu0
      %1238 = vmatprep.mubr.f32.mxu0 0.0
      %1239 = vmatmul.mubr.f32.gmra.mxu0 %v1089
      %v1240 = vpop.f32.mrf.mxu0
      %v1241 = vadd.f32 0.0, %v1240
      %v1242 = vpop.f32.mrf.mxu0
      %1243 = vmatprep.mubr.f32.mxu0 0.0
      %1244 = vmatmul.mubr.f32.gmra.mxu0 %v1090
      %v1245 = vpop.f32.mrf.mxu0
      %v1246 = vadd.f32 0.0, %v1245
      %v1247 = vpop.f32.mrf.mxu0
      %1248 = vmatprep.mubr.f32.mxu0 0.0
      %1249 = vmatmul.mubr.f32.gmra.mxu0 %v1091
      %v1250 = vpop.f32.mrf.mxu0
      %v1251 = vadd.f32 0.0, %v1250
      %v1252 = vpop.f32.mrf.mxu0
      %1253 = vdwg.mxu0
      %v1254 = vadd.f32 %v1060, %v1176
      %v1255 = vadd.f32 %v1061, %v1181
      %v1256 = vadd.f32 %v1062, %v1186
      %v1257 = vadd.f32 %v1063, %v1191
      %v1258 = vadd.f32 %v1064, %v1196
      %v1259 = vadd.f32 %v1065, %v1201
      %v1260 = vadd.f32 %v1066, %v1206
      %v1261 = vadd.f32 %v1067, %v1211
      %v1262 = vadd.f32 %v1068, %v1216
      %v1263 = vadd.f32 %v1069, %v1221
      %v1264 = vadd.f32 %v1070, %v1226
      %v1265 = vadd.f32 %v1071, %v1231
      %v1266 = vadd.f32 %v1072, %v1236
      %v1267 = vadd.f32 %v1073, %v1241
      %v1268 = vadd.f32 %v1074, %v1246
      %v1269 = vadd.f32 %v1075, %v1251
      %v1270 = vld [vmem:[%s324 + $0x12] sm:$0xff]
      %v1271 = vld [vmem:[%s324 + $0x1a] sm:$0xff]
      %v1272 = vld [vmem:[%s324 + $0x22] sm:$0xff]
      %v1273 = vld [vmem:[%s324 + $0x2a] sm:$0xff]
      %v1274 = vld [vmem:[%s324 + $0x32] sm:$0xff]
      %v1275 = vld [vmem:[%s324 + $0x3a] sm:$0xff]
      %v1276 = vld [vmem:[%s324 + $0x42] sm:$0xff]
      %v1277 = vld [vmem:[%s324 + $0x4a] sm:$0xff]
      %v1278 = vld [vmem:[%s324 + $0x52] sm:$0xff]
      %v1279 = vld [vmem:[%s324 + $0x5a] sm:$0xff]
      %v1280 = vld [vmem:[%s324 + $0x62] sm:$0xff]
      %v1281 = vld [vmem:[%s324 + $0x6a] sm:$0xff]
      %v1282 = vld [vmem:[%s324 + $0x72] sm:$0xff]
      %v1283 = vld [vmem:[%s324 + $0x7a] sm:$0xff]
      %v1284 = vld [vmem:[%s324 + $0x82] sm:$0xff]
      %v1285 = vld [vmem:[%s324 + $0x8a] sm:$0xff]
      %s1286 = scalar_lea.vmem %s2, 640
      %v1287 = vld [vmem:[%s1286] sm:$0xff]
      %v1288 = vld [vmem:[%s1286 + $0x8] sm:$0xff]
      %v1289 = vld [vmem:[%s1286 + $0x10] sm:$0xff]
      %v1290 = vld [vmem:[%s1286 + $0x18] sm:$0xff]
      %v1291 = vld [vmem:[%s1286 + $0x20] sm:$0xff]
      %v1292 = vld [vmem:[%s1286 + $0x28] sm:$0xff]
      %v1293 = vld [vmem:[%s1286 + $0x30] sm:$0xff]
      %v1294 = vld [vmem:[%s1286 + $0x38] sm:$0xff]
      %v1295 = vld [vmem:[%s1286 + $0x40] sm:$0xff]
      %v1296 = vld [vmem:[%s1286 + $0x48] sm:$0xff]
      %v1297 = vld [vmem:[%s1286 + $0x50] sm:$0xff]
      %v1298 = vld [vmem:[%s1286 + $0x58] sm:$0xff]
      %v1299 = vld [vmem:[%s1286 + $0x60] sm:$0xff]
      %v1300 = vld [vmem:[%s1286 + $0x68] sm:$0xff]
      %v1301 = vld [vmem:[%s1286 + $0x70] sm:$0xff]
      %v1302 = vld [vmem:[%s1286 + $0x78] sm:$0xff]
      %1303 = vmatprep.subr.mxu0 0.0
      %1304 = vmatpush1.msra.mxu0 %v1302
      %1305 = vmatprep.subr.mxu0 0.0
      %1306 = vmatpush1.msra.mxu0 %v1301
      %1307 = vmatprep.subr.mxu0 0.0
      %1308 = vmatpush1.msra.mxu0 %v1300
      %1309 = vmatprep.subr.mxu0 0.0
      %1310 = vmatpush1.msra.mxu0 %v1299
      %1311 = vmatprep.subr.mxu0 0.0
      %1312 = vmatpush1.msra.mxu0 %v1298
      %1313 = vmatprep.subr.mxu0 0.0
      %1314 = vmatpush1.msra.mxu0 %v1297
      %1315 = vmatprep.subr.mxu0 0.0
      %1316 = vmatpush1.msra.mxu0 %v1296
      %1317 = vmatprep.subr.mxu0 0.0
      %1318 = vmatpush1.msra.mxu0 %v1295
      %1319 = vmatprep.subr.mxu0 0.0
      %1320 = vmatpush1.msra.mxu0 %v1294
      %1321 = vmatprep.subr.mxu0 0.0
      %1322 = vmatpush1.msra.mxu0 %v1293
      %1323 = vmatprep.subr.mxu0 0.0
      %1324 = vmatpush1.msra.mxu0 %v1292
      %1325 = vmatprep.subr.mxu0 0.0
      %1326 = vmatpush1.msra.mxu0 %v1291
      %1327 = vmatprep.subr.mxu0 0.0
      %1328 = vmatpush1.msra.mxu0 %v1290
      %1329 = vmatprep.subr.mxu0 0.0
      %1330 = vmatpush1.msra.mxu0 %v1289
      %1331 = vmatprep.subr.mxu0 0.0
      %1332 = vmatpush1.msra.mxu0 %v1288
      %1333 = vmatprep.subr.mxu0 0.0
      %1334 = vmatpush1.msra.mxu0 %v1287
      %1335 = vmatprep.subr.mxu0 0.0
      %1336 = vmatpush2.msra.mxu0 0.0
      %1337 = vmatprep.subr.mxu0 0.0
      %1338 = vmatpush2.msra.mxu0 0.0
      %1339 = vmatprep.subr.mxu0 0.0
      %1340 = vmatpush2.msra.mxu0 0.0
      %1341 = vmatprep.subr.mxu0 0.0
      %1342 = vmatpush2.msra.mxu0 0.0
      %1343 = vmatprep.subr.mxu0 0.0
      %1344 = vmatpush2.msra.mxu0 0.0
      %1345 = vmatprep.subr.mxu0 0.0
      %1346 = vmatpush2.msra.mxu0 0.0
      %1347 = vmatprep.subr.mxu0 0.0
      %1348 = vmatpush2.msra.mxu0 0.0
      %1349 = vmatprep.subr.mxu0 0.0
      %1350 = vmatpush2.msra.mxu0 0.0
      %1351 = vmatprep.subr.mxu0 0.0
      %1352 = vmatpush2.msra.mxu0 0.0
      %1353 = vmatprep.subr.mxu0 0.0
      %1354 = vmatpush2.msra.mxu0 0.0
      %1355 = vmatprep.subr.mxu0 0.0
      %1356 = vmatpush2.msra.mxu0 0.0
      %1357 = vmatprep.subr.mxu0 0.0
      %1358 = vmatpush2.msra.mxu0 0.0
      %1359 = vmatprep.subr.mxu0 0.0
      %1360 = vmatpush2.msra.mxu0 0.0
      %1361 = vmatprep.subr.mxu0 0.0
      %1362 = vmatpush2.msra.mxu0 0.0
      %1363 = vmatprep.subr.mxu0 0.0
      %1364 = vmatpush2.msra.mxu0 0.0
      %1365 = vmatprep.subr.mxu0 0.0
      %1366 = vmatpush2.msra.mxu0 0.0
      %1367 = vmatprep.mubr.f32.mxu0 0.0
      %1368 = vmatmul.mubr.f32.gmra.mxu0 %v1270
      %v1369 = vpop.f32.mrf.mxu0
      %v1370 = vadd.f32 0.0, %v1369
      %v1371 = vpop.f32.mrf.mxu0
      %1372 = vmatprep.mubr.f32.mxu0 0.0
      %1373 = vmatmul.mubr.f32.gmra.mxu0 %v1271
      %v1374 = vpop.f32.mrf.mxu0
      %v1375 = vadd.f32 0.0, %v1374
      %v1376 = vpop.f32.mrf.mxu0
      %1377 = vmatprep.mubr.f32.mxu0 0.0
      %1378 = vmatmul.mubr.f32.gmra.mxu0 %v1272
      %v1379 = vpop.f32.mrf.mxu0
      %v1380 = vadd.f32 0.0, %v1379
      %v1381 = vpop.f32.mrf.mxu0
      %1382 = vmatprep.mubr.f32.mxu0 0.0
      %1383 = vmatmul.mubr.f32.gmra.mxu0 %v1273
      %v1384 = vpop.f32.mrf.mxu0
      %v1385 = vadd.f32 0.0, %v1384
      %v1386 = vpop.f32.mrf.mxu0
      %1387 = vmatprep.mubr.f32.mxu0 0.0
      %1388 = vmatmul.mubr.f32.gmra.mxu0 %v1274
      %v1389 = vpop.f32.mrf.mxu0
      %v1390 = vadd.f32 0.0, %v1389
      %v1391 = vpop.f32.mrf.mxu0
      %1392 = vmatprep.mubr.f32.mxu0 0.0
      %1393 = vmatmul.mubr.f32.gmra.mxu0 %v1275
      %v1394 = vpop.f32.mrf.mxu0
      %v1395 = vadd.f32 0.0, %v1394
      %v1396 = vpop.f32.mrf.mxu0
      %1397 = vmatprep.mubr.f32.mxu0 0.0
      %1398 = vmatmul.mubr.f32.gmra.mxu0 %v1276
      %v1399 = vpop.f32.mrf.mxu0
      %v1400 = vadd.f32 0.0, %v1399
      %v1401 = vpop.f32.mrf.mxu0
      %1402 = vmatprep.mubr.f32.mxu0 0.0
      %1403 = vmatmul.mubr.f32.gmra.mxu0 %v1277
      %v1404 = vpop.f32.mrf.mxu0
      %v1405 = vadd.f32 0.0, %v1404
      %v1406 = vpop.f32.mrf.mxu0
      %1407 = vmatprep.mubr.f32.mxu0 0.0
      %1408 = vmatmul.mubr.f32.gmra.mxu0 %v1278
      %v1409 = vpop.f32.mrf.mxu0
      %v1410 = vadd.f32 0.0, %v1409
      %v1411 = vpop.f32.mrf.mxu0
      %1412 = vmatprep.mubr.f32.mxu0 0.0
      %1413 = vmatmul.mubr.f32.gmra.mxu0 %v1279
      %v1414 = vpop.f32.mrf.mxu0
      %v1415 = vadd.f32 0.0, %v1414
      %v1416 = vpop.f32.mrf.mxu0
      %1417 = vmatprep.mubr.f32.mxu0 0.0
      %1418 = vmatmul.mubr.f32.gmra.mxu0 %v1280
      %v1419 = vpop.f32.mrf.mxu0
      %v1420 = vadd.f32 0.0, %v1419
      %v1421 = vpop.f32.mrf.mxu0
      %1422 = vmatprep.mubr.f32.mxu0 0.0
      %1423 = vmatmul.mubr.f32.gmra.mxu0 %v1281
      %v1424 = vpop.f32.mrf.mxu0
      %v1425 = vadd.f32 0.0, %v1424
      %v1426 = vpop.f32.mrf.mxu0
      %1427 = vmatprep.mubr.f32.mxu0 0.0
      %1428 = vmatmul.mubr.f32.gmra.mxu0 %v1282
      %v1429 = vpop.f32.mrf.mxu0
      %v1430 = vadd.f32 0.0, %v1429
      %v1431 = vpop.f32.mrf.mxu0
      %1432 = vmatprep.mubr.f32.mxu0 0.0
      %1433 = vmatmul.mubr.f32.gmra.mxu0 %v1283
      %v1434 = vpop.f32.mrf.mxu0
      %v1435 = vadd.f32 0.0, %v1434
      %v1436 = vpop.f32.mrf.mxu0
      %1437 = vmatprep.mubr.f32.mxu0 0.0
      %1438 = vmatmul.mubr.f32.gmra.mxu0 %v1284
      %v1439 = vpop.f32.mrf.mxu0
      %v1440 = vadd.f32 0.0, %v1439
      %v1441 = vpop.f32.mrf.mxu0
      %1442 = vmatprep.mubr.f32.mxu0 0.0
      %1443 = vmatmul.mubr.f32.gmra.mxu0 %v1285
      %v1444 = vpop.f32.mrf.mxu0
      %v1445 = vadd.f32 0.0, %v1444
      %v1446 = vpop.f32.mrf.mxu0
      %1447 = vdwg.mxu0
      %v1448 = vadd.f32 %v1254, %v1370
      %v1449 = vadd.f32 %v1255, %v1375
      %v1450 = vadd.f32 %v1256, %v1380
      %v1451 = vadd.f32 %v1257, %v1385
      %v1452 = vadd.f32 %v1258, %v1390
      %v1453 = vadd.f32 %v1259, %v1395
      %v1454 = vadd.f32 %v1260, %v1400
      %v1455 = vadd.f32 %v1261, %v1405
      %v1456 = vadd.f32 %v1262, %v1410
      %v1457 = vadd.f32 %v1263, %v1415
      %v1458 = vadd.f32 %v1264, %v1420
      %v1459 = vadd.f32 %v1265, %v1425
      %v1460 = vadd.f32 %v1266, %v1430
      %v1461 = vadd.f32 %v1267, %v1435
      %v1462 = vadd.f32 %v1268, %v1440
      %v1463 = vadd.f32 %v1269, %v1445
      %v1464 = vld [vmem:[%s324 + $0x20] sm:$0xff]
      %v1465 = vld [vmem:[%s324 + $0x28] sm:$0xff]
      %v1466 = vld [vmem:[%s324 + $0x30] sm:$0xff]
      %v1467 = vld [vmem:[%s324 + $0x38] sm:$0xff]
      %v1468 = vld [vmem:[%s324 + $0x40] sm:$0xff]
      %v1469 = vld [vmem:[%s324 + $0x48] sm:$0xff]
      %v1470 = vld [vmem:[%s324 + $0x50] sm:$0xff]
      %v1471 = vld [vmem:[%s324 + $0x58] sm:$0xff]
      %v1472 = vld [vmem:[%s324 + $0x60] sm:$0xff]
      %v1473 = vld [vmem:[%s324 + $0x68] sm:$0xff]
      %v1474 = vld [vmem:[%s324 + $0x70] sm:$0xff]
      %v1475 = vld [vmem:[%s324 + $0x78] sm:$0xff]
      %v1476 = vld [vmem:[%s324 + $0x80] sm:$0xff]
      %v1477 = vld [vmem:[%s324 + $0x88] sm:$0xff]
      %v1478 = vld [vmem:[%s324 + $0x90] sm:$0xff]
      %v1479 = vld [vmem:[%s324 + $0x98] sm:$0xff]
      %s1480 = scalar_lea.vmem %s2, 768
      %v1481 = vld [vmem:[%s1480] sm:$0xff]
      %v1482 = vld [vmem:[%s1480 + $0x8] sm:$0xff]
      %v1483 = vld [vmem:[%s1480 + $0x10] sm:$0xff]
      %v1484 = vld [vmem:[%s1480 + $0x18] sm:$0xff]
      %v1485 = vld [vmem:[%s1480 + $0x20] sm:$0xff]
      %v1486 = vld [vmem:[%s1480 + $0x28] sm:$0xff]
      %v1487 = vld [vmem:[%s1480 + $0x30] sm:$0xff]
      %v1488 = vld [vmem:[%s1480 + $0x38] sm:$0xff]
      %v1489 = vld [vmem:[%s1480 + $0x40] sm:$0xff]
      %v1490 = vld [vmem:[%s1480 + $0x48] sm:$0xff]
      %v1491 = vld [vmem:[%s1480 + $0x50] sm:$0xff]
      %v1492 = vld [vmem:[%s1480 + $0x58] sm:$0xff]
      %v1493 = vld [vmem:[%s1480 + $0x60] sm:$0xff]
      %v1494 = vld [vmem:[%s1480 + $0x68] sm:$0xff]
      %v1495 = vld [vmem:[%s1480 + $0x70] sm:$0xff]
      %v1496 = vld [vmem:[%s1480 + $0x78] sm:$0xff]
      %1497 = vmatprep.subr.mxu0 0.0
      %1498 = vmatpush1.msra.mxu0 %v1496
      %1499 = vmatprep.subr.mxu0 0.0
      %1500 = vmatpush1.msra.mxu0 %v1495
      %1501 = vmatprep.subr.mxu0 0.0
      %1502 = vmatpush1.msra.mxu0 %v1494
      %1503 = vmatprep.subr.mxu0 0.0
      %1504 = vmatpush1.msra.mxu0 %v1493
      %1505 = vmatprep.subr.mxu0 0.0
      %1506 = vmatpush1.msra.mxu0 %v1492
      %1507 = vmatprep.subr.mxu0 0.0
      %1508 = vmatpush1.msra.mxu0 %v1491
      %1509 = vmatprep.subr.mxu0 0.0
      %1510 = vmatpush1.msra.mxu0 %v1490
      %1511 = vmatprep.subr.mxu0 0.0
      %1512 = vmatpush1.msra.mxu0 %v1489
      %1513 = vmatprep.subr.mxu0 0.0
      %1514 = vmatpush1.msra.mxu0 %v1488
      %1515 = vmatprep.subr.mxu0 0.0
      %1516 = vmatpush1.msra.mxu0 %v1487
      %1517 = vmatprep.subr.mxu0 0.0
      %1518 = vmatpush1.msra.mxu0 %v1486
      %1519 = vmatprep.subr.mxu0 0.0
      %1520 = vmatpush1.msra.mxu0 %v1485
      %1521 = vmatprep.subr.mxu0 0.0
      %1522 = vmatpush1.msra.mxu0 %v1484
      %1523 = vmatprep.subr.mxu0 0.0
      %1524 = vmatpush1.msra.mxu0 %v1483
      %1525 = vmatprep.subr.mxu0 0.0
      %1526 = vmatpush1.msra.mxu0 %v1482
      %1527 = vmatprep.subr.mxu0 0.0
      %1528 = vmatpush1.msra.mxu0 %v1481
      %1529 = vmatprep.subr.mxu0 0.0
      %1530 = vmatpush2.msra.mxu0 0.0
      %1531 = vmatprep.subr.mxu0 0.0
      %1532 = vmatpush2.msra.mxu0 0.0
      %1533 = vmatprep.subr.mxu0 0.0
      %1534 = vmatpush2.msra.mxu0 0.0
      %1535 = vmatprep.subr.mxu0 0.0
      %1536 = vmatpush2.msra.mxu0 0.0
      %1537 = vmatprep.subr.mxu0 0.0
      %1538 = vmatpush2.msra.mxu0 0.0
      %1539 = vmatprep.subr.mxu0 0.0
      %1540 = vmatpush2.msra.mxu0 0.0
      %1541 = vmatprep.subr.mxu0 0.0
      %1542 = vmatpush2.msra.mxu0 0.0
      %1543 = vmatprep.subr.mxu0 0.0
      %1544 = vmatpush2.msra.mxu0 0.0
      %1545 = vmatprep.subr.mxu0 0.0
      %1546 = vmatpush2.msra.mxu0 0.0
      %1547 = vmatprep.subr.mxu0 0.0
      %1548 = vmatpush2.msra.mxu0 0.0
      %1549 = vmatprep.subr.mxu0 0.0
      %1550 = vmatpush2.msra.mxu0 0.0
      %1551 = vmatprep.subr.mxu0 0.0
      %1552 = vmatpush2.msra.mxu0 0.0
      %1553 = vmatprep.subr.mxu0 0.0
      %1554 = vmatpush2.msra.mxu0 0.0
      %1555 = vmatprep.subr.mxu0 0.0
      %1556 = vmatpush2.msra.mxu0 0.0
      %1557 = vmatprep.subr.mxu0 0.0
      %1558 = vmatpush2.msra.mxu0 0.0
      %1559 = vmatprep.subr.mxu0 0.0
      %1560 = vmatpush2.msra.mxu0 0.0
      %1561 = vmatprep.mubr.f32.mxu0 0.0
      %1562 = vmatmul.mubr.f32.gmra.mxu0 %v1464
      %v1563 = vpop.f32.mrf.mxu0
      %v1564 = vadd.f32 0.0, %v1563
      %v1565 = vpop.f32.mrf.mxu0
      %1566 = vmatprep.mubr.f32.mxu0 0.0
      %1567 = vmatmul.mubr.f32.gmra.mxu0 %v1465
      %v1568 = vpop.f32.mrf.mxu0
      %v1569 = vadd.f32 0.0, %v1568
      %v1570 = vpop.f32.mrf.mxu0
      %1571 = vmatprep.mubr.f32.mxu0 0.0
      %1572 = vmatmul.mubr.f32.gmra.mxu0 %v1466
      %v1573 = vpop.f32.mrf.mxu0
      %v1574 = vadd.f32 0.0, %v1573
      %v1575 = vpop.f32.mrf.mxu0
      %1576 = vmatprep.mubr.f32.mxu0 0.0
      %1577 = vmatmul.mubr.f32.gmra.mxu0 %v1467
      %v1578 = vpop.f32.mrf.mxu0
      %v1579 = vadd.f32 0.0, %v1578
      %v1580 = vpop.f32.mrf.mxu0
      %1581 = vmatprep.mubr.f32.mxu0 0.0
      %1582 = vmatmul.mubr.f32.gmra.mxu0 %v1468
      %v1583 = vpop.f32.mrf.mxu0
      %v1584 = vadd.f32 0.0, %v1583
      %v1585 = vpop.f32.mrf.mxu0
      %1586 = vmatprep.mubr.f32.mxu0 0.0
      %1587 = vmatmul.mubr.f32.gmra.mxu0 %v1469
      %v1588 = vpop.f32.mrf.mxu0
      %v1589 = vadd.f32 0.0, %v1588
      %v1590 = vpop.f32.mrf.mxu0
      %1591 = vmatprep.mubr.f32.mxu0 0.0
      %1592 = vmatmul.mubr.f32.gmra.mxu0 %v1470
      %v1593 = vpop.f32.mrf.mxu0
      %v1594 = vadd.f32 0.0, %v1593
      %v1595 = vpop.f32.mrf.mxu0
      %1596 = vmatprep.mubr.f32.mxu0 0.0
      %1597 = vmatmul.mubr.f32.gmra.mxu0 %v1471
      %v1598 = vpop.f32.mrf.mxu0
      %v1599 = vadd.f32 0.0, %v1598
      %v1600 = vpop.f32.mrf.mxu0
      %1601 = vmatprep.mubr.f32.mxu0 0.0
      %1602 = vmatmul.mubr.f32.gmra.mxu0 %v1472
      %v1603 = vpop.f32.mrf.mxu0
      %v1604 = vadd.f32 0.0, %v1603
      %v1605 = vpop.f32.mrf.mxu0
      %1606 = vmatprep.mubr.f32.mxu0 0.0
      %1607 = vmatmul.mubr.f32.gmra.mxu0 %v1473
      %v1608 = vpop.f32.mrf.mxu0
      %v1609 = vadd.f32 0.0, %v1608
      %v1610 = vpop.f32.mrf.mxu0
      %1611 = vmatprep.mubr.f32.mxu0 0.0
      %1612 = vmatmul.mubr.f32.gmra.mxu0 %v1474
      %v1613 = vpop.f32.mrf.mxu0
      %v1614 = vadd.f32 0.0, %v1613
      %v1615 = vpop.f32.mrf.mxu0
      %1616 = vmatprep.mubr.f32.mxu0 0.0
      %1617 = vmatmul.mubr.f32.gmra.mxu0 %v1475
      %v1618 = vpop.f32.mrf.mxu0
      %v1619 = vadd.f32 0.0, %v1618
      %v1620 = vpop.f32.mrf.mxu0
      %1621 = vmatprep.mubr.f32.mxu0 0.0
      %1622 = vmatmul.mubr.f32.gmra.mxu0 %v1476
      %v1623 = vpop.f32.mrf.mxu0
      %v1624 = vadd.f32 0.0, %v1623
      %v1625 = vpop.f32.mrf.mxu0
      %1626 = vmatprep.mubr.f32.mxu0 0.0
      %1627 = vmatmul.mubr.f32.gmra.mxu0 %v1477
      %v1628 = vpop.f32.mrf.mxu0
      %v1629 = vadd.f32 0.0, %v1628
      %v1630 = vpop.f32.mrf.mxu0
      %1631 = vmatprep.mubr.f32.mxu0 0.0
      %1632 = vmatmul.mubr.f32.gmra.mxu0 %v1478
      %v1633 = vpop.f32.mrf.mxu0
      %v1634 = vadd.f32 0.0, %v1633
      %v1635 = vpop.f32.mrf.mxu0
      %1636 = vmatprep.mubr.f32.mxu0 0.0
      %1637 = vmatmul.mubr.f32.gmra.mxu0 %v1479
      %v1638 = vpop.f32.mrf.mxu0
      %v1639 = vadd.f32 0.0, %v1638
      %v1640 = vpop.f32.mrf.mxu0
      %1641 = vdwg.mxu0
      %v1642 = vadd.f32 %v1448, %v1564
      %v1643 = vadd.f32 %v1449, %v1569
      %v1644 = vadd.f32 %v1450, %v1574
      %v1645 = vadd.f32 %v1451, %v1579
      %v1646 = vadd.f32 %v1452, %v1584
      %v1647 = vadd.f32 %v1453, %v1589
      %v1648 = vadd.f32 %v1454, %v1594
      %v1649 = vadd.f32 %v1455, %v1599
      %v1650 = vadd.f32 %v1456, %v1604
      %v1651 = vadd.f32 %v1457, %v1609
      %v1652 = vadd.f32 %v1458, %v1614
      %v1653 = vadd.f32 %v1459, %v1619
      %v1654 = vadd.f32 %v1460, %v1624
      %v1655 = vadd.f32 %v1461, %v1629
      %v1656 = vadd.f32 %v1462, %v1634
      %v1657 = vadd.f32 %v1463, %v1639
      %v1658 = vld [vmem:[%s324 + $0x21] sm:$0xff]
      %v1659 = vld [vmem:[%s324 + $0x29] sm:$0xff]
      %v1660 = vld [vmem:[%s324 + $0x31] sm:$0xff]
      %v1661 = vld [vmem:[%s324 + $0x39] sm:$0xff]
      %v1662 = vld [vmem:[%s324 + $0x41] sm:$0xff]
      %v1663 = vld [vmem:[%s324 + $0x49] sm:$0xff]
      %v1664 = vld [vmem:[%s324 + $0x51] sm:$0xff]
      %v1665 = vld [vmem:[%s324 + $0x59] sm:$0xff]
      %v1666 = vld [vmem:[%s324 + $0x61] sm:$0xff]
      %v1667 = vld [vmem:[%s324 + $0x69] sm:$0xff]
      %v1668 = vld [vmem:[%s324 + $0x71] sm:$0xff]
      %v1669 = vld [vmem:[%s324 + $0x79] sm:$0xff]
      %v1670 = vld [vmem:[%s324 + $0x81] sm:$0xff]
      %v1671 = vld [vmem:[%s324 + $0x89] sm:$0xff]
      %v1672 = vld [vmem:[%s324 + $0x91] sm:$0xff]
      %v1673 = vld [vmem:[%s324 + $0x99] sm:$0xff]
      %s1674 = scalar_lea.vmem %s2, 896
      %v1675 = vld [vmem:[%s1674] sm:$0xff]
      %v1676 = vld [vmem:[%s1674 + $0x8] sm:$0xff]
      %v1677 = vld [vmem:[%s1674 + $0x10] sm:$0xff]
      %v1678 = vld [vmem:[%s1674 + $0x18] sm:$0xff]
      %v1679 = vld [vmem:[%s1674 + $0x20] sm:$0xff]
      %v1680 = vld [vmem:[%s1674 + $0x28] sm:$0xff]
      %v1681 = vld [vmem:[%s1674 + $0x30] sm:$0xff]
      %v1682 = vld [vmem:[%s1674 + $0x38] sm:$0xff]
      %v1683 = vld [vmem:[%s1674 + $0x40] sm:$0xff]
      %v1684 = vld [vmem:[%s1674 + $0x48] sm:$0xff]
      %v1685 = vld [vmem:[%s1674 + $0x50] sm:$0xff]
      %v1686 = vld [vmem:[%s1674 + $0x58] sm:$0xff]
      %v1687 = vld [vmem:[%s1674 + $0x60] sm:$0xff]
      %v1688 = vld [vmem:[%s1674 + $0x68] sm:$0xff]
      %v1689 = vld [vmem:[%s1674 + $0x70] sm:$0xff]
      %v1690 = vld [vmem:[%s1674 + $0x78] sm:$0xff]
      %1691 = vmatprep.subr.mxu0 0.0
      %1692 = vmatpush1.msra.mxu0 %v1690
      %1693 = vmatprep.subr.mxu0 0.0
      %1694 = vmatpush1.msra.mxu0 %v1689
      %1695 = vmatprep.subr.mxu0 0.0
      %1696 = vmatpush1.msra.mxu0 %v1688
      %1697 = vmatprep.subr.mxu0 0.0
      %1698 = vmatpush1.msra.mxu0 %v1687
      %1699 = vmatprep.subr.mxu0 0.0
      %1700 = vmatpush1.msra.mxu0 %v1686
      %1701 = vmatprep.subr.mxu0 0.0
      %1702 = vmatpush1.msra.mxu0 %v1685
      %1703 = vmatprep.subr.mxu0 0.0
      %1704 = vmatpush1.msra.mxu0 %v1684
      %1705 = vmatprep.subr.mxu0 0.0
      %1706 = vmatpush1.msra.mxu0 %v1683
      %1707 = vmatprep.subr.mxu0 0.0
      %1708 = vmatpush1.msra.mxu0 %v1682
      %1709 = vmatprep.subr.mxu0 0.0
      %1710 = vmatpush1.msra.mxu0 %v1681
      %1711 = vmatprep.subr.mxu0 0.0
      %1712 = vmatpush1.msra.mxu0 %v1680
      %1713 = vmatprep.subr.mxu0 0.0
      %1714 = vmatpush1.msra.mxu0 %v1679
      %1715 = vmatprep.subr.mxu0 0.0
      %1716 = vmatpush1.msra.mxu0 %v1678
      %1717 = vmatprep.subr.mxu0 0.0
      %1718 = vmatpush1.msra.mxu0 %v1677
      %1719 = vmatprep.subr.mxu0 0.0
      %1720 = vmatpush1.msra.mxu0 %v1676
      %1721 = vmatprep.subr.mxu0 0.0
      %1722 = vmatpush1.msra.mxu0 %v1675
      %1723 = vmatprep.subr.mxu0 0.0
      %1724 = vmatpush2.msra.mxu0 0.0
      %1725 = vmatprep.subr.mxu0 0.0
      %1726 = vmatpush2.msra.mxu0 0.0
      %1727 = vmatprep.subr.mxu0 0.0
      %1728 = vmatpush2.msra.mxu0 0.0
      %1729 = vmatprep.subr.mxu0 0.0
      %1730 = vmatpush2.msra.mxu0 0.0
      %1731 = vmatprep.subr.mxu0 0.0
      %1732 = vmatpush2.msra.mxu0 0.0
      %1733 = vmatprep.subr.mxu0 0.0
      %1734 = vmatpush2.msra.mxu0 0.0
      %1735 = vmatprep.subr.mxu0 0.0
      %1736 = vmatpush2.msra.mxu0 0.0
      %1737 = vmatprep.subr.mxu0 0.0
      %1738 = vmatpush2.msra.mxu0 0.0
      %1739 = vmatprep.subr.mxu0 0.0
      %1740 = vmatpush2.msra.mxu0 0.0
      %1741 = vmatprep.subr.mxu0 0.0
      %1742 = vmatpush2.msra.mxu0 0.0
      %1743 = vmatprep.subr.mxu0 0.0
      %1744 = vmatpush2.msra.mxu0 0.0
      %1745 = vmatprep.subr.mxu0 0.0
      %1746 = vmatpush2.msra.mxu0 0.0
      %1747 = vmatprep.subr.mxu0 0.0
      %1748 = vmatpush2.msra.mxu0 0.0
      %1749 = vmatprep.subr.mxu0 0.0
      %1750 = vmatpush2.msra.mxu0 0.0
      %1751 = vmatprep.subr.mxu0 0.0
      %1752 = vmatpush2.msra.mxu0 0.0
      %1753 = vmatprep.subr.mxu0 0.0
      %1754 = vmatpush2.msra.mxu0 0.0
      %1755 = vmatprep.mubr.f32.mxu0 0.0
      %1756 = vmatmul.mubr.f32.gmra.mxu0 %v1658
      %v1757 = vpop.f32.mrf.mxu0
      %v1758 = vadd.f32 0.0, %v1757
      %v1759 = vpop.f32.mrf.mxu0
      %1760 = vmatprep.mubr.f32.mxu0 0.0
      %1761 = vmatmul.mubr.f32.gmra.mxu0 %v1659
      %v1762 = vpop.f32.mrf.mxu0
      %v1763 = vadd.f32 0.0, %v1762
      %v1764 = vpop.f32.mrf.mxu0
      %1765 = vmatprep.mubr.f32.mxu0 0.0
      %1766 = vmatmul.mubr.f32.gmra.mxu0 %v1660
      %v1767 = vpop.f32.mrf.mxu0
      %v1768 = vadd.f32 0.0, %v1767
      %v1769 = vpop.f32.mrf.mxu0
      %1770 = vmatprep.mubr.f32.mxu0 0.0
      %1771 = vmatmul.mubr.f32.gmra.mxu0 %v1661
      %v1772 = vpop.f32.mrf.mxu0
      %v1773 = vadd.f32 0.0, %v1772
      %v1774 = vpop.f32.mrf.mxu0
      %1775 = vmatprep.mubr.f32.mxu0 0.0
      %1776 = vmatmul.mubr.f32.gmra.mxu0 %v1662
      %v1777 = vpop.f32.mrf.mxu0
      %v1778 = vadd.f32 0.0, %v1777
      %v1779 = vpop.f32.mrf.mxu0
      %1780 = vmatprep.mubr.f32.mxu0 0.0
      %1781 = vmatmul.mubr.f32.gmra.mxu0 %v1663
      %v1782 = vpop.f32.mrf.mxu0
      %v1783 = vadd.f32 0.0, %v1782
      %v1784 = vpop.f32.mrf.mxu0
      %1785 = vmatprep.mubr.f32.mxu0 0.0
      %1786 = vmatmul.mubr.f32.gmra.mxu0 %v1664
      %v1787 = vpop.f32.mrf.mxu0
      %v1788 = vadd.f32 0.0, %v1787
      %v1789 = vpop.f32.mrf.mxu0
      %1790 = vmatprep.mubr.f32.mxu0 0.0
      %1791 = vmatmul.mubr.f32.gmra.mxu0 %v1665
      %v1792 = vpop.f32.mrf.mxu0
      %v1793 = vadd.f32 0.0, %v1792
      %v1794 = vpop.f32.mrf.mxu0
      %1795 = vmatprep.mubr.f32.mxu0 0.0
      %1796 = vmatmul.mubr.f32.gmra.mxu0 %v1666
      %v1797 = vpop.f32.mrf.mxu0
      %v1798 = vadd.f32 0.0, %v1797
      %v1799 = vpop.f32.mrf.mxu0
      %1800 = vmatprep.mubr.f32.mxu0 0.0
      %1801 = vmatmul.mubr.f32.gmra.mxu0 %v1667
      %v1802 = vpop.f32.mrf.mxu0
      %v1803 = vadd.f32 0.0, %v1802
      %v1804 = vpop.f32.mrf.mxu0
      %1805 = vmatprep.mubr.f32.mxu0 0.0
      %1806 = vmatmul.mubr.f32.gmra.mxu0 %v1668
      %v1807 = vpop.f32.mrf.mxu0
      %v1808 = vadd.f32 0.0, %v1807
      %v1809 = vpop.f32.mrf.mxu0
      %1810 = vmatprep.mubr.f32.mxu0 0.0
      %1811 = vmatmul.mubr.f32.gmra.mxu0 %v1669
      %v1812 = vpop.f32.mrf.mxu0
      %v1813 = vadd.f32 0.0, %v1812
      %v1814 = vpop.f32.mrf.mxu0
      %1815 = vmatprep.mubr.f32.mxu0 0.0
      %1816 = vmatmul.mubr.f32.gmra.mxu0 %v1670
      %v1817 = vpop.f32.mrf.mxu0
      %v1818 = vadd.f32 0.0, %v1817
      %v1819 = vpop.f32.mrf.mxu0
      %1820 = vmatprep.mubr.f32.mxu0 0.0
      %1821 = vmatmul.mubr.f32.gmra.mxu0 %v1671
      %v1822 = vpop.f32.mrf.mxu0
      %v1823 = vadd.f32 0.0, %v1822
      %v1824 = vpop.f32.mrf.mxu0
      %1825 = vmatprep.mubr.f32.mxu0 0.0
      %1826 = vmatmul.mubr.f32.gmra.mxu0 %v1672
      %v1827 = vpop.f32.mrf.mxu0
      %v1828 = vadd.f32 0.0, %v1827
      %v1829 = vpop.f32.mrf.mxu0
      %1830 = vmatprep.mubr.f32.mxu0 0.0
      %1831 = vmatmul.mubr.f32.gmra.mxu0 %v1673
      %v1832 = vpop.f32.mrf.mxu0
      %v1833 = vadd.f32 0.0, %v1832
      %v1834 = vpop.f32.mrf.mxu0
      %1835 = vdwg.mxu0
      %v1836 = vadd.f32 %v1642, %v1758
      %v1837 = vadd.f32 %v1643, %v1763
      %v1838 = vadd.f32 %v1644, %v1768
      %v1839 = vadd.f32 %v1645, %v1773
      %v1840 = vadd.f32 %v1646, %v1778
      %v1841 = vadd.f32 %v1647, %v1783
      %v1842 = vadd.f32 %v1648, %v1788
      %v1843 = vadd.f32 %v1649, %v1793
      %v1844 = vadd.f32 %v1650, %v1798
      %v1845 = vadd.f32 %v1651, %v1803
      %v1846 = vadd.f32 %v1652, %v1808
      %v1847 = vadd.f32 %v1653, %v1813
      %v1848 = vadd.f32 %v1654, %v1818
      %v1849 = vadd.f32 %v1655, %v1823
      %v1850 = vadd.f32 %v1656, %v1828
      %v1851 = vadd.f32 %v1657, %v1833
      %v1852 = vld [vmem:[%s324 + $0x22] sm:$0xff]
      %v1853 = vld [vmem:[%s324 + $0x2a] sm:$0xff]
      %v1854 = vld [vmem:[%s324 + $0x32] sm:$0xff]
      %v1855 = vld [vmem:[%s324 + $0x3a] sm:$0xff]
      %v1856 = vld [vmem:[%s324 + $0x42] sm:$0xff]
      %v1857 = vld [vmem:[%s324 + $0x4a] sm:$0xff]
      %v1858 = vld [vmem:[%s324 + $0x52] sm:$0xff]
      %v1859 = vld [vmem:[%s324 + $0x5a] sm:$0xff]
      %v1860 = vld [vmem:[%s324 + $0x62] sm:$0xff]
      %v1861 = vld [vmem:[%s324 + $0x6a] sm:$0xff]
      %v1862 = vld [vmem:[%s324 + $0x72] sm:$0xff]
      %v1863 = vld [vmem:[%s324 + $0x7a] sm:$0xff]
      %v1864 = vld [vmem:[%s324 + $0x82] sm:$0xff]
      %v1865 = vld [vmem:[%s324 + $0x8a] sm:$0xff]
      %v1866 = vld [vmem:[%s324 + $0x92] sm:$0xff]
      %v1867 = vld [vmem:[%s324 + $0x9a] sm:$0xff]
      %s1868 = scalar_lea.vmem %s2, 1024
      %v1869 = vld [vmem:[%s1868] sm:$0xff]
      %v1870 = vld [vmem:[%s1868 + $0x8] sm:$0xff]
      %v1871 = vld [vmem:[%s1868 + $0x10] sm:$0xff]
      %v1872 = vld [vmem:[%s1868 + $0x18] sm:$0xff]
      %v1873 = vld [vmem:[%s1868 + $0x20] sm:$0xff]
      %v1874 = vld [vmem:[%s1868 + $0x28] sm:$0xff]
      %v1875 = vld [vmem:[%s1868 + $0x30] sm:$0xff]
      %v1876 = vld [vmem:[%s1868 + $0x38] sm:$0xff]
      %v1877 = vld [vmem:[%s1868 + $0x40] sm:$0xff]
      %v1878 = vld [vmem:[%s1868 + $0x48] sm:$0xff]
      %v1879 = vld [vmem:[%s1868 + $0x50] sm:$0xff]
      %v1880 = vld [vmem:[%s1868 + $0x58] sm:$0xff]
      %v1881 = vld [vmem:[%s1868 + $0x60] sm:$0xff]
      %v1882 = vld [vmem:[%s1868 + $0x68] sm:$0xff]
      %v1883 = vld [vmem:[%s1868 + $0x70] sm:$0xff]
      %v1884 = vld [vmem:[%s1868 + $0x78] sm:$0xff]
      %1885 = vmatprep.subr.mxu0 0.0
      %1886 = vmatpush1.msra.mxu0 %v1884
      %1887 = vmatprep.subr.mxu0 0.0
      %1888 = vmatpush1.msra.mxu0 %v1883
      %1889 = vmatprep.subr.mxu0 0.0
      %1890 = vmatpush1.msra.mxu0 %v1882
      %1891 = vmatprep.subr.mxu0 0.0
      %1892 = vmatpush1.msra.mxu0 %v1881
      %1893 = vmatprep.subr.mxu0 0.0
      %1894 = vmatpush1.msra.mxu0 %v1880
      %1895 = vmatprep.subr.mxu0 0.0
      %1896 = vmatpush1.msra.mxu0 %v1879
      %1897 = vmatprep.subr.mxu0 0.0
      %1898 = vmatpush1.msra.mxu0 %v1878
      %1899 = vmatprep.subr.mxu0 0.0
      %1900 = vmatpush1.msra.mxu0 %v1877
      %1901 = vmatprep.subr.mxu0 0.0
      %1902 = vmatpush1.msra.mxu0 %v1876
      %1903 = vmatprep.subr.mxu0 0.0
      %1904 = vmatpush1.msra.mxu0 %v1875
      %1905 = vmatprep.subr.mxu0 0.0
      %1906 = vmatpush1.msra.mxu0 %v1874
      %1907 = vmatprep.subr.mxu0 0.0
      %1908 = vmatpush1.msra.mxu0 %v1873
      %1909 = vmatprep.subr.mxu0 0.0
      %1910 = vmatpush1.msra.mxu0 %v1872
      %1911 = vmatprep.subr.mxu0 0.0
      %1912 = vmatpush1.msra.mxu0 %v1871
      %1913 = vmatprep.subr.mxu0 0.0
      %1914 = vmatpush1.msra.mxu0 %v1870
      %1915 = vmatprep.subr.mxu0 0.0
      %1916 = vmatpush1.msra.mxu0 %v1869
      %1917 = vmatprep.subr.mxu0 0.0
      %1918 = vmatpush2.msra.mxu0 0.0
      %1919 = vmatprep.subr.mxu0 0.0
      %1920 = vmatpush2.msra.mxu0 0.0
      %1921 = vmatprep.subr.mxu0 0.0
      %1922 = vmatpush2.msra.mxu0 0.0
      %1923 = vmatprep.subr.mxu0 0.0
      %1924 = vmatpush2.msra.mxu0 0.0
      %1925 = vmatprep.subr.mxu0 0.0
      %1926 = vmatpush2.msra.mxu0 0.0
      %1927 = vmatprep.subr.mxu0 0.0
      %1928 = vmatpush2.msra.mxu0 0.0
      %1929 = vmatprep.subr.mxu0 0.0
      %1930 = vmatpush2.msra.mxu0 0.0
      %1931 = vmatprep.subr.mxu0 0.0
      %1932 = vmatpush2.msra.mxu0 0.0
      %1933 = vmatprep.subr.mxu0 0.0
      %1934 = vmatpush2.msra.mxu0 0.0
      %1935 = vmatprep.subr.mxu0 0.0
      %1936 = vmatpush2.msra.mxu0 0.0
      %1937 = vmatprep.subr.mxu0 0.0
      %1938 = vmatpush2.msra.mxu0 0.0
      %1939 = vmatprep.subr.mxu0 0.0
      %1940 = vmatpush2.msra.mxu0 0.0
      %1941 = vmatprep.subr.mxu0 0.0
      %1942 = vmatpush2.msra.mxu0 0.0
      %1943 = vmatprep.subr.mxu0 0.0
      %1944 = vmatpush2.msra.mxu0 0.0
      %1945 = vmatprep.subr.mxu0 0.0
      %1946 = vmatpush2.msra.mxu0 0.0
      %1947 = vmatprep.subr.mxu0 0.0
      %1948 = vmatpush2.msra.mxu0 0.0
      %1949 = vmatprep.mubr.f32.mxu0 0.0
      %1950 = vmatmul.mubr.f32.gmra.mxu0 %v1852
      %v1951 = vpop.f32.mrf.mxu0
      %v1952 = vadd.f32 0.0, %v1951
      %v1953 = vpop.f32.mrf.mxu0
      %1954 = vmatprep.mubr.f32.mxu0 0.0
      %1955 = vmatmul.mubr.f32.gmra.mxu0 %v1853
      %v1956 = vpop.f32.mrf.mxu0
      %v1957 = vadd.f32 0.0, %v1956
      %v1958 = vpop.f32.mrf.mxu0
      %1959 = vmatprep.mubr.f32.mxu0 0.0
      %1960 = vmatmul.mubr.f32.gmra.mxu0 %v1854
      %v1961 = vpop.f32.mrf.mxu0
      %v1962 = vadd.f32 0.0, %v1961
      %v1963 = vpop.f32.mrf.mxu0
      %1964 = vmatprep.mubr.f32.mxu0 0.0
      %1965 = vmatmul.mubr.f32.gmra.mxu0 %v1855
      %v1966 = vpop.f32.mrf.mxu0
      %v1967 = vadd.f32 0.0, %v1966
      %v1968 = vpop.f32.mrf.mxu0
      %1969 = vmatprep.mubr.f32.mxu0 0.0
      %1970 = vmatmul.mubr.f32.gmra.mxu0 %v1856
      %v1971 = vpop.f32.mrf.mxu0
      %v1972 = vadd.f32 0.0, %v1971
      %v1973 = vpop.f32.mrf.mxu0
      %1974 = vmatprep.mubr.f32.mxu0 0.0
      %1975 = vmatmul.mubr.f32.gmra.mxu0 %v1857
      %v1976 = vpop.f32.mrf.mxu0
      %v1977 = vadd.f32 0.0, %v1976
      %v1978 = vpop.f32.mrf.mxu0
      %1979 = vmatprep.mubr.f32.mxu0 0.0
      %1980 = vmatmul.mubr.f32.gmra.mxu0 %v1858
      %v1981 = vpop.f32.mrf.mxu0
      %v1982 = vadd.f32 0.0, %v1981
      %v1983 = vpop.f32.mrf.mxu0
      %1984 = vmatprep.mubr.f32.mxu0 0.0
      %1985 = vmatmul.mubr.f32.gmra.mxu0 %v1859
      %v1986 = vpop.f32.mrf.mxu0
      %v1987 = vadd.f32 0.0, %v1986
      %v1988 = vpop.f32.mrf.mxu0
      %1989 = vmatprep.mubr.f32.mxu0 0.0
      %1990 = vmatmul.mubr.f32.gmra.mxu0 %v1860
      %v1991 = vpop.f32.mrf.mxu0
      %v1992 = vadd.f32 0.0, %v1991
      %v1993 = vpop.f32.mrf.mxu0
      %1994 = vmatprep.mubr.f32.mxu0 0.0
      %1995 = vmatmul.mubr.f32.gmra.mxu0 %v1861
      %v1996 = vpop.f32.mrf.mxu0
      %v1997 = vadd.f32 0.0, %v1996
      %v1998 = vpop.f32.mrf.mxu0
      %1999 = vmatprep.mubr.f32.mxu0 0.0
      %2000 = vmatmul.mubr.f32.gmra.mxu0 %v1862
      %v2001 = vpop.f32.mrf.mxu0
      %v2002 = vadd.f32 0.0, %v2001
      %v2003 = vpop.f32.mrf.mxu0
      %2004 = vmatprep.mubr.f32.mxu0 0.0
      %2005 = vmatmul.mubr.f32.gmra.mxu0 %v1863
      %v2006 = vpop.f32.mrf.mxu0
      %v2007 = vadd.f32 0.0, %v2006
      %v2008 = vpop.f32.mrf.mxu0
      %2009 = vmatprep.mubr.f32.mxu0 0.0
      %2010 = vmatmul.mubr.f32.gmra.mxu0 %v1864
      %v2011 = vpop.f32.mrf.mxu0
      %v2012 = vadd.f32 0.0, %v2011
      %v2013 = vpop.f32.mrf.mxu0
      %2014 = vmatprep.mubr.f32.mxu0 0.0
      %2015 = vmatmul.mubr.f32.gmra.mxu0 %v1865
      %v2016 = vpop.f32.mrf.mxu0
      %v2017 = vadd.f32 0.0, %v2016
      %v2018 = vpop.f32.mrf.mxu0
      %2019 = vmatprep.mubr.f32.mxu0 0.0
      %2020 = vmatmul.mubr.f32.gmra.mxu0 %v1866
      %v2021 = vpop.f32.mrf.mxu0
      %v2022 = vadd.f32 0.0, %v2021
      %v2023 = vpop.f32.mrf.mxu0
      %2024 = vmatprep.mubr.f32.mxu0 0.0
      %2025 = vmatmul.mubr.f32.gmra.mxu0 %v1867
      %v2026 = vpop.f32.mrf.mxu0
      %v2027 = vadd.f32 0.0, %v2026
      %v2028 = vpop.f32.mrf.mxu0
      %2029 = vdwg.mxu0
      %v2030 = vadd.f32 %v1836, %v1952
      %v2031 = vadd.f32 %v1837, %v1957
      %v2032 = vadd.f32 %v1838, %v1962
      %v2033 = vadd.f32 %v1839, %v1967
      %v2034 = vadd.f32 %v1840, %v1972
      %v2035 = vadd.f32 %v1841, %v1977
      %v2036 = vadd.f32 %v1842, %v1982
      %v2037 = vadd.f32 %v1843, %v1987
      %v2038 = vadd.f32 %v1844, %v1992
      %v2039 = vadd.f32 %v1845, %v1997
      %v2040 = vadd.f32 %v1846, %v2002
      %v2041 = vadd.f32 %v1847, %v2007
      %v2042 = vadd.f32 %v1848, %v2012
      %v2043 = vadd.f32 %v1849, %v2017
      %v2044 = vadd.f32 %v1850, %v2022
      %v2045 = vadd.f32 %v1851, %v2027
      %v2046 = vld [vmem:[%s3] sm:$0x1]
      %v2048 = vlaneseq
      %v2049 = vshrl.u32 %v2048, 7
      %v2050 = vsub.s32 0, %v2049
      %v2051 = vrot.slane %v2046, %v2050
      %v2053 = vadd.f32 %v2030, %v2051
      %v2054 = vadd.f32 %v2031, %v2051
      %v2055 = vadd.f32 %v2032, %v2051
      %v2056 = vadd.f32 %v2033, %v2051
      %v2057 = vadd.f32 %v2034, %v2051
      %v2058 = vadd.f32 %v2035, %v2051
      %v2059 = vadd.f32 %v2036, %v2051
      %v2060 = vadd.f32 %v2037, %v2051
      %v2061 = vadd.f32 %v2038, %v2051
      %v2062 = vadd.f32 %v2039, %v2051
      %v2063 = vadd.f32 %v2040, %v2051
      %v2064 = vadd.f32 %v2041, %v2051
      %v2065 = vadd.f32 %v2042, %v2051
      %v2066 = vadd.f32 %v2043, %v2051
      %v2067 = vadd.f32 %v2044, %v2051
      %v2068 = vadd.f32 %v2045, %v2051
      %v2069 = vsub.f32 0.0, %v2053
      %v2070 = vsub.f32 0.0, %v2054
      %v2071 = vsub.f32 0.0, %v2055
      %v2072 = vsub.f32 0.0, %v2056
      %v2073 = vsub.f32 0.0, %v2057
      %v2074 = vsub.f32 0.0, %v2058
      %v2075 = vsub.f32 0.0, %v2059
      %v2076 = vsub.f32 0.0, %v2060
      %v2077 = vsub.f32 0.0, %v2061
      %v2078 = vsub.f32 0.0, %v2062
      %v2079 = vsub.f32 0.0, %v2063
      %v2080 = vsub.f32 0.0, %v2064
      %v2081 = vsub.f32 0.0, %v2065
      %v2082 = vsub.f32 0.0, %v2066
      %v2083 = vsub.f32 0.0, %v2067
      %v2084 = vsub.f32 0.0, %v2068
      %v2085 = vmul.f32 %v2069, 1.442695
      %v2086 = vpow.pop %v2085
      %v2087 = vmul.f32 %v2070, 1.442695
      %v2088 = vpow.pop %v2087
      %v2089 = vmul.f32 %v2071, 1.442695
      %v2090 = vpow.pop %v2089
      %v2091 = vmul.f32 %v2072, 1.442695
      %v2092 = vpow.pop %v2091
      %v2093 = vmul.f32 %v2073, 1.442695
      %v2094 = vpow.pop %v2093
      %v2095 = vmul.f32 %v2074, 1.442695
      %v2096 = vpow.pop %v2095
      %v2097 = vmul.f32 %v2075, 1.442695
      %v2098 = vpow.pop %v2097
      %v2099 = vmul.f32 %v2076, 1.442695
      %v2100 = vpow.pop %v2099
      %v2101 = vmul.f32 %v2077, 1.442695
      %v2102 = vpow.pop %v2101
      %v2103 = vmul.f32 %v2078, 1.442695
      %v2104 = vpow.pop %v2103
      %v2105 = vmul.f32 %v2079, 1.442695
      %v2106 = vpow.pop %v2105
      %v2107 = vmul.f32 %v2080, 1.442695
      %v2108 = vpow.pop %v2107
      %v2109 = vmul.f32 %v2081, 1.442695
      %v2110 = vpow.pop %v2109
      %v2111 = vmul.f32 %v2082, 1.442695
      %v2112 = vpow.pop %v2111
      %v2113 = vmul.f32 %v2083, 1.442695
      %v2114 = vpow.pop %v2113
      %v2115 = vmul.f32 %v2084, 1.442695
      %v2116 = vpow.pop %v2115
      %v2117 = vadd.f32 %v2086, 1.0
      %v2118 = vadd.f32 %v2088, 1.0
      %v2119 = vadd.f32 %v2090, 1.0
      %v2120 = vadd.f32 %v2092, 1.0
      %v2121 = vadd.f32 %v2094, 1.0
      %v2122 = vadd.f32 %v2096, 1.0
      %v2123 = vadd.f32 %v2098, 1.0
      %v2124 = vadd.f32 %v2100, 1.0
      %v2125 = vadd.f32 %v2102, 1.0
      %v2126 = vadd.f32 %v2104, 1.0
      %v2127 = vadd.f32 %v2106, 1.0
      %v2128 = vadd.f32 %v2108, 1.0
      %v2129 = vadd.f32 %v2110, 1.0
      %v2130 = vadd.f32 %v2112, 1.0
      %v2131 = vadd.f32 %v2114, 1.0
      %v2132 = vadd.f32 %v2116, 1.0
      %v2133 = vrcp.pop %v2117
      %v2134 = vrcp.pop %v2118
      %v2135 = vrcp.pop %v2119
      %v2136 = vrcp.pop %v2120
      %v2137 = vrcp.pop %v2121
      %v2138 = vrcp.pop %v2122
      %v2139 = vrcp.pop %v2123
      %v2140 = vrcp.pop %v2124
      %v2141 = vrcp.pop %v2125
      %v2142 = vrcp.pop %v2126
      %v2143 = vrcp.pop %v2127
      %v2144 = vrcp.pop %v2128
      %v2145 = vrcp.pop %v2129
      %v2146 = vrcp.pop %v2130
      %v2147 = vrcp.pop %v2131
      %v2148 = vrcp.pop %v2132
      %2149 = vst [vmem:[#allocation2] sm:$0xff] 0.0
      %2150 = vst [vmem:[#allocation2 + $0x8] sm:$0xff] 0.0
      %2151 = vst [vmem:[#allocation2 + $0x10] sm:$0xff] 0.0
      %2152 = vst [vmem:[#allocation2 + $0x90] sm:$0xff] 0.0
      %2153 = vst [vmem:[#allocation2 + $0x98] sm:$0xff] 0.0
      %2154 = vst [vmem:[#allocation2 + $0xa0] sm:$0xff] 0.0
      %2155 = vst [vmem:[#allocation2 + $0xa8] sm:$0xff] 0.0
      %v2156 = vld [vmem:[%s318 + $0x11] sm:$0xff]
      %v2157 = vld [vmem:[%s318 + $0x19] sm:$0xff]
      %v2158 = vld [vmem:[%s318 + $0x21] sm:$0xff]
      %v2159 = vld [vmem:[%s318 + $0x29] sm:$0xff]
      %v2160 = vld [vmem:[%s318 + $0x31] sm:$0xff]
      %v2161 = vld [vmem:[%s318 + $0x39] sm:$0xff]
      %v2162 = vld [vmem:[%s318 + $0x41] sm:$0xff]
      %v2163 = vld [vmem:[%s318 + $0x49] sm:$0xff]
      %v2164 = vld [vmem:[%s318 + $0x51] sm:$0xff]
      %v2165 = vld [vmem:[%s318 + $0x59] sm:$0xff]
      %v2166 = vld [vmem:[%s318 + $0x61] sm:$0xff]
      %v2167 = vld [vmem:[%s318 + $0x69] sm:$0xff]
      %v2168 = vld [vmem:[%s318 + $0x71] sm:$0xff]
      %v2169 = vld [vmem:[%s318 + $0x79] sm:$0xff]
      %v2170 = vld [vmem:[%s318 + $0x81] sm:$0xff]
      %v2171 = vld [vmem:[%s318 + $0x89] sm:$0xff]
      %v2172 = vld [vmem:[%s324 + $0x11] sm:$0xff]
      %v2173 = vld [vmem:[%s324 + $0x19] sm:$0xff]
      %v2174 = vld [vmem:[%s324 + $0x21] sm:$0xff]
      %v2175 = vld [vmem:[%s324 + $0x29] sm:$0xff]
      %v2176 = vld [vmem:[%s324 + $0x31] sm:$0xff]
      %v2177 = vld [vmem:[%s324 + $0x39] sm:$0xff]
      %v2178 = vld [vmem:[%s324 + $0x41] sm:$0xff]
      %v2179 = vld [vmem:[%s324 + $0x49] sm:$0xff]
      %v2180 = vld [vmem:[%s324 + $0x51] sm:$0xff]
      %v2181 = vld [vmem:[%s324 + $0x59] sm:$0xff]
      %v2182 = vld [vmem:[%s324 + $0x61] sm:$0xff]
      %v2183 = vld [vmem:[%s324 + $0x69] sm:$0xff]
      %v2184 = vld [vmem:[%s324 + $0x71] sm:$0xff]
      %v2185 = vld [vmem:[%s324 + $0x79] sm:$0xff]
      %v2186 = vld [vmem:[%s324 + $0x81] sm:$0xff]
      %v2187 = vld [vmem:[%s324 + $0x89] sm:$0xff]
      %v2188 = vmul.f32 %v2172, %v2133
      %v2189 = vmul.f32 %v2173, %v2134
      %v2190 = vmul.f32 %v2174, %v2135
      %v2191 = vmul.f32 %v2175, %v2136
      %v2192 = vmul.f32 %v2176, %v2137
      %v2193 = vmul.f32 %v2177, %v2138
      %v2194 = vmul.f32 %v2178, %v2139
      %v2195 = vmul.f32 %v2179, %v2140
      %v2196 = vmul.f32 %v2180, %v2141
      %v2197 = vmul.f32 %v2181, %v2142
      %v2198 = vmul.f32 %v2182, %v2143
      %v2199 = vmul.f32 %v2183, %v2144
      %v2200 = vmul.f32 %v2184, %v2145
      %v2201 = vmul.f32 %v2185, %v2146
      %v2202 = vmul.f32 %v2186, %v2147
      %v2203 = vmul.f32 %v2187, %v2148
      %v2204 = vadd.f32 %v2156, %v2188
      %v2205 = vadd.f32 %v2157, %v2189
      %v2206 = vadd.f32 %v2158, %v2190
      %v2207 = vadd.f32 %v2159, %v2191
      %v2208 = vadd.f32 %v2160, %v2192
      %v2209 = vadd.f32 %v2161, %v2193
      %v2210 = vadd.f32 %v2162, %v2194
      %v2211 = vadd.f32 %v2163, %v2195
      %v2212 = vadd.f32 %v2164, %v2196
      %v2213 = vadd.f32 %v2165, %v2197
      %v2214 = vadd.f32 %v2166, %v2198
      %v2215 = vadd.f32 %v2167, %v2199
      %v2216 = vadd.f32 %v2168, %v2200
      %v2217 = vadd.f32 %v2169, %v2201
      %v2218 = vadd.f32 %v2170, %v2202
      %v2219 = vadd.f32 %v2171, %v2203
      %2220 = vst [vmem:[#allocation2 + $0x11] sm:$0xff] %v2204
      %2221 = vst [vmem:[#allocation2 + $0x19] sm:$0xff] %v2205
      %2222 = vst [vmem:[#allocation2 + $0x21] sm:$0xff] %v2206
      %2223 = vst [vmem:[#allocation2 + $0x29] sm:$0xff] %v2207
      %2224 = vst [vmem:[#allocation2 + $0x31] sm:$0xff] %v2208
      %2225 = vst [vmem:[#allocation2 + $0x39] sm:$0xff] %v2209
      %2226 = vst [vmem:[#allocation2 + $0x41] sm:$0xff] %v2210
      %2227 = vst [vmem:[#allocation2 + $0x49] sm:$0xff] %v2211
      %2228 = vst [vmem:[#allocation2 + $0x51] sm:$0xff] %v2212
      %2229 = vst [vmem:[#allocation2 + $0x59] sm:$0xff] %v2213
      %2230 = vst [vmem:[#allocation2 + $0x61] sm:$0xff] %v2214
      %2231 = vst [vmem:[#allocation2 + $0x69] sm:$0xff] %v2215
      %2232 = vst [vmem:[#allocation2 + $0x71] sm:$0xff] %v2216
      %2233 = vst [vmem:[#allocation2 + $0x79] sm:$0xff] %v2217
      %2234 = vst [vmem:[#allocation2 + $0x81] sm:$0xff] %v2218
      %2235 = vst [vmem:[#allocation2 + $0x89] sm:$0xff] %v2219
      %v2236 = vld [vmem:[#allocation2] sm:$0xff]
      %v2237 = vld [vmem:[#allocation2 + $0x8] sm:$0xff]
      %v2238 = vld [vmem:[#allocation2 + $0x10] sm:$0xff]
      %v2239 = vld [vmem:[#allocation2 + $0x18] sm:$0xff]
      %v2240 = vld [vmem:[#allocation2 + $0x20] sm:$0xff]
      %v2241 = vld [vmem:[#allocation2 + $0x28] sm:$0xff]
      %v2242 = vld [vmem:[#allocation2 + $0x30] sm:$0xff]
      %v2243 = vld [vmem:[#allocation2 + $0x38] sm:$0xff]
      %v2244 = vld [vmem:[#allocation2 + $0x40] sm:$0xff]
      %v2245 = vld [vmem:[#allocation2 + $0x48] sm:$0xff]
      %v2246 = vld [vmem:[#allocation2 + $0x50] sm:$0xff]
      %v2247 = vld [vmem:[#allocation2 + $0x58] sm:$0xff]
      %v2248 = vld [vmem:[#allocation2 + $0x60] sm:$0xff]
      %v2249 = vld [vmem:[#allocation2 + $0x68] sm:$0xff]
      %v2250 = vld [vmem:[#allocation2 + $0x70] sm:$0xff]
      %v2251 = vld [vmem:[#allocation2 + $0x78] sm:$0xff]
      %v2252 = vld [vmem:[%s4] sm:$0xff]
      %v2253 = vld [vmem:[%s4 + $0x8] sm:$0xff]
      %v2254 = vld [vmem:[%s4 + $0x10] sm:$0xff]
      %v2255 = vld [vmem:[%s4 + $0x18] sm:$0xff]
      %v2256 = vld [vmem:[%s4 + $0x20] sm:$0xff]
      %v2257 = vld [vmem:[%s4 + $0x28] sm:$0xff]
      %v2258 = vld [vmem:[%s4 + $0x30] sm:$0xff]
      %v2259 = vld [vmem:[%s4 + $0x38] sm:$0xff]
      %v2260 = vld [vmem:[%s4 + $0x40] sm:$0xff]
      %v2261 = vld [vmem:[%s4 + $0x48] sm:$0xff]
      %v2262 = vld [vmem:[%s4 + $0x50] sm:$0xff]
      %v2263 = vld [vmem:[%s4 + $0x58] sm:$0xff]
      %v2264 = vld [vmem:[%s4 + $0x60] sm:$0xff]
      %v2265 = vld [vmem:[%s4 + $0x68] sm:$0xff]
      %v2266 = vld [vmem:[%s4 + $0x70] sm:$0xff]
      %v2267 = vld [vmem:[%s4 + $0x78] sm:$0xff]
      %v2268 = vld [vmem:[#allocation2 + $0x1] sm:$0xff]
      %v2269 = vld [vmem:[#allocation2 + $0x9] sm:$0xff]
      %v2270 = vld [vmem:[#allocation2 + $0x11] sm:$0xff]
      %v2271 = vld [vmem:[#allocation2 + $0x19] sm:$0xff]
      %v2272 = vld [vmem:[#allocation2 + $0x21] sm:$0xff]
      %v2273 = vld [vmem:[#allocation2 + $0x29] sm:$0xff]
      %v2274 = vld [vmem:[#allocation2 + $0x31] sm:$0xff]
      %v2275 = vld [vmem:[#allocation2 + $0x39] sm:$0xff]
      %v2276 = vld [vmem:[#allocation2 + $0x41] sm:$0xff]
      %v2277 = vld [vmem:[#allocation2 + $0x49] sm:$0xff]
      %v2278 = vld [vmem:[#allocation2 + $0x51] sm:$0xff]
      %v2279 = vld [vmem:[#allocation2 + $0x59] sm:$0xff]
      %v2280 = vld [vmem:[#allocation2 + $0x61] sm:$0xff]
      %v2281 = vld [vmem:[#allocation2 + $0x69] sm:$0xff]
      %v2282 = vld [vmem:[#allocation2 + $0x71] sm:$0xff]
      %v2283 = vld [vmem:[#allocation2 + $0x79] sm:$0xff]
      %s2284 = scalar_lea.vmem %s4, 128
      %v2285 = vld [vmem:[%s2284] sm:$0xff]
      %v2286 = vld [vmem:[%s2284 + $0x8] sm:$0xff]
      %v2287 = vld [vmem:[%s2284 + $0x10] sm:$0xff]
      %v2288 = vld [vmem:[%s2284 + $0x18] sm:$0xff]
      %v2289 = vld [vmem:[%s2284 + $0x20] sm:$0xff]
      %v2290 = vld [vmem:[%s2284 + $0x28] sm:$0xff]
      %v2291 = vld [vmem:[%s2284 + $0x30] sm:$0xff]
      %v2292 = vld [vmem:[%s2284 + $0x38] sm:$0xff]
      %v2293 = vld [vmem:[%s2284 + $0x40] sm:$0xff]
      %v2294 = vld [vmem:[%s2284 + $0x48] sm:$0xff]
      %v2295 = vld [vmem:[%s2284 + $0x50] sm:$0xff]
      %v2296 = vld [vmem:[%s2284 + $0x58] sm:$0xff]
      %v2297 = vld [vmem:[%s2284 + $0x60] sm:$0xff]
      %v2298 = vld [vmem:[%s2284 + $0x68] sm:$0xff]
      %v2299 = vld [vmem:[%s2284 + $0x70] sm:$0xff]
      %v2300 = vld [vmem:[%s2284 + $0x78] sm:$0xff]
      %2301 = vmatprep.subr.mxu0 0.0
      %2302 = vmatpush1.msra.mxu0 %v2300
      %2303 = vmatprep.subr.mxu0 0.0
      %2304 = vmatpush1.msra.mxu0 %v2299
      %2305 = vmatprep.subr.mxu0 0.0
      %2306 = vmatpush1.msra.mxu0 %v2298
      %2307 = vmatprep.subr.mxu0 0.0
      %2308 = vmatpush1.msra.mxu0 %v2297
      %2309 = vmatprep.subr.mxu0 0.0
      %2310 = vmatpush1.msra.mxu0 %v2296
      %2311 = vmatprep.subr.mxu0 0.0
      %2312 = vmatpush1.msra.mxu0 %v2295
      %2313 = vmatprep.subr.mxu0 0.0
      %2314 = vmatpush1.msra.mxu0 %v2294
      %2315 = vmatprep.subr.mxu0 0.0
      %2316 = vmatpush1.msra.mxu0 %v2293
      %2317 = vmatprep.subr.mxu0 0.0
      %2318 = vmatpush1.msra.mxu0 %v2292
      %2319 = vmatprep.subr.mxu0 0.0
      %2320 = vmatpush1.msra.mxu0 %v2291
      %2321 = vmatprep.subr.mxu0 0.0
      %2322 = vmatpush1.msra.mxu0 %v2290
      %2323 = vmatprep.subr.mxu0 0.0
      %2324 = vmatpush1.msra.mxu0 %v2289
      %2325 = vmatprep.subr.mxu0 0.0
      %2326 = vmatpush1.msra.mxu0 %v2288
      %2327 = vmatprep.subr.mxu0 0.0
      %2328 = vmatpush1.msra.mxu0 %v2287
      %2329 = vmatprep.subr.mxu0 0.0
      %2330 = vmatpush1.msra.mxu0 %v2286
      %2331 = vmatprep.subr.mxu0 0.0
      %2332 = vmatpush1.msra.mxu0 %v2285
      %2333 = vmatprep.subr.mxu0 0.0
      %2334 = vmatpush2.msra.mxu0 0.0
      %2335 = vmatprep.subr.mxu0 0.0
      %2336 = vmatpush2.msra.mxu0 0.0
      %2337 = vmatprep.subr.mxu0 0.0
      %2338 = vmatpush2.msra.mxu0 0.0
      %2339 = vmatprep.subr.mxu0 0.0
      %2340 = vmatpush2.msra.mxu0 0.0
      %2341 = vmatprep.subr.mxu0 0.0
      %2342 = vmatpush2.msra.mxu0 0.0
      %2343 = vmatprep.subr.mxu0 0.0
      %2344 = vmatpush2.msra.mxu0 0.0
      %2345 = vmatprep.subr.mxu0 0.0
      %2346 = vmatpush2.msra.mxu0 0.0
      %2347 = vmatprep.subr.mxu0 0.0
      %2348 = vmatpush2.msra.mxu0 0.0
      %2349 = vmatprep.subr.mxu0 0.0
      %2350 = vmatpush2.msra.mxu0 0.0
      %2351 = vmatprep.subr.mxu0 0.0
      %2352 = vmatpush2.msra.mxu0 0.0
      %2353 = vmatprep.subr.mxu0 0.0
      %2354 = vmatpush2.msra.mxu0 0.0
      %2355 = vmatprep.subr.mxu0 0.0
      %2356 = vmatpush2.msra.mxu0 0.0
      %2357 = vmatprep.subr.mxu0 0.0
      %2358 = vmatpush2.msra.mxu0 0.0
      %2359 = vmatprep.subr.mxu0 0.0
      %2360 = vmatpush2.msra.mxu0 0.0
      %2361 = vmatprep.subr.mxu0 0.0
      %2362 = vmatpush2.msra.mxu0 0.0
      %2363 = vmatprep.subr.mxu0 0.0
      %2364 = vmatpush2.msra.mxu0 0.0
      %2365 = vmatprep.mubr.f32.mxu0 0.0
      %2366 = vmatmul.mubr.f32.gmra.mxu0 %v2268
      %v2367 = vpop.f32.mrf.mxu0
      %v2368 = vadd.f32 0.0, %v2367
      %v2369 = vpop.f32.mrf.mxu0
      %2370 = vmatprep.mubr.f32.mxu0 0.0
      %2371 = vmatmul.mubr.f32.gmra.mxu0 %v2269
      %v2372 = vpop.f32.mrf.mxu0
      %v2373 = vadd.f32 0.0, %v2372
      %v2374 = vpop.f32.mrf.mxu0
      %2375 = vmatprep.mubr.f32.mxu0 0.0
      %2376 = vmatmul.mubr.f32.gmra.mxu0 %v2270
      %v2377 = vpop.f32.mrf.mxu0
      %v2378 = vadd.f32 0.0, %v2377
      %v2379 = vpop.f32.mrf.mxu0
      %2380 = vmatprep.mubr.f32.mxu0 0.0
      %2381 = vmatmul.mubr.f32.gmra.mxu0 %v2271
      %v2382 = vpop.f32.mrf.mxu0
      %v2383 = vadd.f32 0.0, %v2382
      %v2384 = vpop.f32.mrf.mxu0
      %2385 = vmatprep.mubr.f32.mxu0 0.0
      %2386 = vmatmul.mubr.f32.gmra.mxu0 %v2272
      %v2387 = vpop.f32.mrf.mxu0
      %v2388 = vadd.f32 0.0, %v2387
      %v2389 = vpop.f32.mrf.mxu0
      %2390 = vmatprep.mubr.f32.mxu0 0.0
      %2391 = vmatmul.mubr.f32.gmra.mxu0 %v2273
      %v2392 = vpop.f32.mrf.mxu0
      %v2393 = vadd.f32 0.0, %v2392
      %v2394 = vpop.f32.mrf.mxu0
      %2395 = vmatprep.mubr.f32.mxu0 0.0
      %2396 = vmatmul.mubr.f32.gmra.mxu0 %v2274
      %v2397 = vpop.f32.mrf.mxu0
      %v2398 = vadd.f32 0.0, %v2397
      %v2399 = vpop.f32.mrf.mxu0
      %2400 = vmatprep.mubr.f32.mxu0 0.0
      %2401 = vmatmul.mubr.f32.gmra.mxu0 %v2275
      %v2402 = vpop.f32.mrf.mxu0
      %v2403 = vadd.f32 0.0, %v2402
      %v2404 = vpop.f32.mrf.mxu0
      %2405 = vmatprep.mubr.f32.mxu0 0.0
      %2406 = vmatmul.mubr.f32.gmra.mxu0 %v2276
      %v2407 = vpop.f32.mrf.mxu0
      %v2408 = vadd.f32 0.0, %v2407
      %v2409 = vpop.f32.mrf.mxu0
      %2410 = vmatprep.mubr.f32.mxu0 0.0
      %2411 = vmatmul.mubr.f32.gmra.mxu0 %v2277
      %v2412 = vpop.f32.mrf.mxu0
      %v2413 = vadd.f32 0.0, %v2412
      %v2414 = vpop.f32.mrf.mxu0
      %2415 = vmatprep.mubr.f32.mxu0 0.0
      %2416 = vmatmul.mubr.f32.gmra.mxu0 %v2278
      %v2417 = vpop.f32.mrf.mxu0
      %v2418 = vadd.f32 0.0, %v2417
      %v2419 = vpop.f32.mrf.mxu0
      %2420 = vmatprep.mubr.f32.mxu0 0.0
      %2421 = vmatmul.mubr.f32.gmra.mxu0 %v2279
      %v2422 = vpop.f32.mrf.mxu0
      %v2423 = vadd.f32 0.0, %v2422
      %v2424 = vpop.f32.mrf.mxu0
      %2425 = vmatprep.mubr.f32.mxu0 0.0
      %2426 = vmatmul.mubr.f32.gmra.mxu0 %v2280
      %v2427 = vpop.f32.mrf.mxu0
      %v2428 = vadd.f32 0.0, %v2427
      %v2429 = vpop.f32.mrf.mxu0
      %2430 = vmatprep.mubr.f32.mxu0 0.0
      %2431 = vmatmul.mubr.f32.gmra.mxu0 %v2281
      %v2432 = vpop.f32.mrf.mxu0
      %v2433 = vadd.f32 0.0, %v2432
      %v2434 = vpop.f32.mrf.mxu0
      %2435 = vmatprep.mubr.f32.mxu0 0.0
      %2436 = vmatmul.mubr.f32.gmra.mxu0 %v2282
      %v2437 = vpop.f32.mrf.mxu0
      %v2438 = vadd.f32 0.0, %v2437
      %v2439 = vpop.f32.mrf.mxu0
      %2440 = vmatprep.mubr.f32.mxu0 0.0
      %2441 = vmatmul.mubr.f32.gmra.mxu0 %v2283
      %v2442 = vpop.f32.mrf.mxu0
      %v2443 = vadd.f32 0.0, %v2442
      %v2444 = vpop.f32.mrf.mxu0
      %2445 = vdwg.mxu0
      %2446 = vmatprep.subr.mxu0 0.0
      %2447 = vmatpush1.msra.mxu0 %v2267
      %2448 = vmatprep.subr.mxu0 0.0
      %2449 = vmatpush1.msra.mxu0 %v2266
      %2450 = vmatprep.subr.mxu0 0.0
      %2451 = vmatpush1.msra.mxu0 %v2265
      %2452 = vmatprep.subr.mxu0 0.0
      %2453 = vmatpush1.msra.mxu0 %v2264
      %2454 = vmatprep.subr.mxu0 0.0
      %2455 = vmatpush1.msra.mxu0 %v2263
      %2456 = vmatprep.subr.mxu0 0.0
      %2457 = vmatpush1.msra.mxu0 %v2262
      %2458 = vmatprep.subr.mxu0 0.0
      %2459 = vmatpush1.msra.mxu0 %v2261
      %2460 = vmatprep.subr.mxu0 0.0
      %2461 = vmatpush1.msra.mxu0 %v2260
      %2462 = vmatprep.subr.mxu0 0.0
      %2463 = vmatpush1.msra.mxu0 %v2259
      %2464 = vmatprep.subr.mxu0 0.0
      %2465 = vmatpush1.msra.mxu0 %v2258
      %2466 = vmatprep.subr.mxu0 0.0
      %2467 = vmatpush1.msra.mxu0 %v2257
      %2468 = vmatprep.subr.mxu0 0.0
      %2469 = vmatpush1.msra.mxu0 %v2256
      %2470 = vmatprep.subr.mxu0 0.0
      %2471 = vmatpush1.msra.mxu0 %v2255
      %2472 = vmatprep.subr.mxu0 0.0
      %2473 = vmatpush1.msra.mxu0 %v2254
      %2474 = vmatprep.subr.mxu0 0.0
      %2475 = vmatpush1.msra.mxu0 %v2253
      %2476 = vmatprep.subr.mxu0 0.0
      %2477 = vmatpush1.msra.mxu0 %v2252
      %2478 = vmatprep.subr.mxu0 0.0
      %2479 = vmatpush2.msra.mxu0 0.0
      %2480 = vmatprep.subr.mxu0 0.0
      %2481 = vmatpush2.msra.mxu0 0.0
      %2482 = vmatprep.subr.mxu0 0.0
      %2483 = vmatpush2.msra.mxu0 0.0
      %2484 = vmatprep.subr.mxu0 0.0
      %2485 = vmatpush2.msra.mxu0 0.0
      %2486 = vmatprep.subr.mxu0 0.0
      %2487 = vmatpush2.msra.mxu0 0.0
      %2488 = vmatprep.subr.mxu0 0.0
      %2489 = vmatpush2.msra.mxu0 0.0
      %2490 = vmatprep.subr.mxu0 0.0
      %2491 = vmatpush2.msra.mxu0 0.0
      %2492 = vmatprep.subr.mxu0 0.0
      %2493 = vmatpush2.msra.mxu0 0.0
      %2494 = vmatprep.subr.mxu0 0.0
      %2495 = vmatpush2.msra.mxu0 0.0
      %2496 = vmatprep.subr.mxu0 0.0
      %2497 = vmatpush2.msra.mxu0 0.0
      %2498 = vmatprep.subr.mxu0 0.0
      %2499 = vmatpush2.msra.mxu0 0.0
      %2500 = vmatprep.subr.mxu0 0.0
      %2501 = vmatpush2.msra.mxu0 0.0
      %2502 = vmatprep.subr.mxu0 0.0
      %2503 = vmatpush2.msra.mxu0 0.0
      %2504 = vmatprep.subr.mxu0 0.0
      %2505 = vmatpush2.msra.mxu0 0.0
      %2506 = vmatprep.subr.mxu0 0.0
      %2507 = vmatpush2.msra.mxu0 0.0
      %2508 = vmatprep.subr.mxu0 0.0
      %2509 = vmatpush2.msra.mxu0 0.0
      %2510 = vmatprep.mubr.f32.mxu0 0.0
      %2511 = vmatmul.mubr.f32.gmra.mxu0 %v2236
      %v2512 = vpop.f32.mrf.mxu0
      %v2513 = vadd.f32 %v2368, %v2512
      %v2514 = vpop.f32.mrf.mxu0
      %2515 = vmatprep.mubr.f32.mxu0 0.0
      %2516 = vmatmul.mubr.f32.gmra.mxu0 %v2237
      %v2517 = vpop.f32.mrf.mxu0
      %v2518 = vadd.f32 %v2373, %v2517
      %v2519 = vpop.f32.mrf.mxu0
      %2520 = vmatprep.mubr.f32.mxu0 0.0
      %2521 = vmatmul.mubr.f32.gmra.mxu0 %v2238
      %v2522 = vpop.f32.mrf.mxu0
      %v2523 = vadd.f32 %v2378, %v2522
      %v2524 = vpop.f32.mrf.mxu0
      %2525 = vmatprep.mubr.f32.mxu0 0.0
      %2526 = vmatmul.mubr.f32.gmra.mxu0 %v2239
      %v2527 = vpop.f32.mrf.mxu0
      %v2528 = vadd.f32 %v2383, %v2527
      %v2529 = vpop.f32.mrf.mxu0
      %2530 = vmatprep.mubr.f32.mxu0 0.0
      %2531 = vmatmul.mubr.f32.gmra.mxu0 %v2240
      %v2532 = vpop.f32.mrf.mxu0
      %v2533 = vadd.f32 %v2388, %v2532
      %v2534 = vpop.f32.mrf.mxu0
      %2535 = vmatprep.mubr.f32.mxu0 0.0
      %2536 = vmatmul.mubr.f32.gmra.mxu0 %v2241
      %v2537 = vpop.f32.mrf.mxu0
      %v2538 = vadd.f32 %v2393, %v2537
      %v2539 = vpop.f32.mrf.mxu0
      %2540 = vmatprep.mubr.f32.mxu0 0.0
      %2541 = vmatmul.mubr.f32.gmra.mxu0 %v2242
      %v2542 = vpop.f32.mrf.mxu0
      %v2543 = vadd.f32 %v2398, %v2542
      %v2544 = vpop.f32.mrf.mxu0
      %2545 = vmatprep.mubr.f32.mxu0 0.0
      %2546 = vmatmul.mubr.f32.gmra.mxu0 %v2243
      %v2547 = vpop.f32.mrf.mxu0
      %v2548 = vadd.f32 %v2403, %v2547
      %v2549 = vpop.f32.mrf.mxu0
      %2550 = vmatprep.mubr.f32.mxu0 0.0
      %2551 = vmatmul.mubr.f32.gmra.mxu0 %v2244
      %v2552 = vpop.f32.mrf.mxu0
      %v2553 = vadd.f32 %v2408, %v2552
      %v2554 = vpop.f32.mrf.mxu0
      %2555 = vmatprep.mubr.f32.mxu0 0.0
      %2556 = vmatmul.mubr.f32.gmra.mxu0 %v2245
      %v2557 = vpop.f32.mrf.mxu0
      %v2558 = vadd.f32 %v2413, %v2557
      %v2559 = vpop.f32.mrf.mxu0
      %2560 = vmatprep.mubr.f32.mxu0 0.0
      %2561 = vmatmul.mubr.f32.gmra.mxu0 %v2246
      %v2562 = vpop.f32.mrf.mxu0
      %v2563 = vadd.f32 %v2418, %v2562
      %v2564 = vpop.f32.mrf.mxu0
      %2565 = vmatprep.mubr.f32.mxu0 0.0
      %2566 = vmatmul.mubr.f32.gmra.mxu0 %v2247
      %v2567 = vpop.f32.mrf.mxu0
      %v2568 = vadd.f32 %v2423, %v2567
      %v2569 = vpop.f32.mrf.mxu0
      %2570 = vmatprep.mubr.f32.mxu0 0.0
      %2571 = vmatmul.mubr.f32.gmra.mxu0 %v2248
      %v2572 = vpop.f32.mrf.mxu0
      %v2573 = vadd.f32 %v2428, %v2572
      %v2574 = vpop.f32.mrf.mxu0
      %2575 = vmatprep.mubr.f32.mxu0 0.0
      %2576 = vmatmul.mubr.f32.gmra.mxu0 %v2249
      %v2577 = vpop.f32.mrf.mxu0
      %v2578 = vadd.f32 %v2433, %v2577
      %v2579 = vpop.f32.mrf.mxu0
      %2580 = vmatprep.mubr.f32.mxu0 0.0
      %2581 = vmatmul.mubr.f32.gmra.mxu0 %v2250
      %v2582 = vpop.f32.mrf.mxu0
      %v2583 = vadd.f32 %v2438, %v2582
      %v2584 = vpop.f32.mrf.mxu0
      %2585 = vmatprep.mubr.f32.mxu0 0.0
      %2586 = vmatmul.mubr.f32.gmra.mxu0 %v2251
      %v2587 = vpop.f32.mrf.mxu0
      %v2588 = vadd.f32 %v2443, %v2587
      %v2589 = vpop.f32.mrf.mxu0
      %2590 = vdwg.mxu0
      %v2591 = vld [vmem:[#allocation2 + $0x2] sm:$0xff]
      %v2592 = vld [vmem:[#allocation2 + $0xa] sm:$0xff]
      %v2593 = vld [vmem:[#allocation2 + $0x12] sm:$0xff]
      %v2594 = vld [vmem:[#allocation2 + $0x1a] sm:$0xff]
      %v2595 = vld [vmem:[#allocation2 + $0x22] sm:$0xff]
      %v2596 = vld [vmem:[#allocation2 + $0x2a] sm:$0xff]
      %v2597 = vld [vmem:[#allocation2 + $0x32] sm:$0xff]
      %v2598 = vld [vmem:[#allocation2 + $0x3a] sm:$0xff]
      %v2599 = vld [vmem:[#allocation2 + $0x42] sm:$0xff]
      %v2600 = vld [vmem:[#allocation2 + $0x4a] sm:$0xff]
      %v2601 = vld [vmem:[#allocation2 + $0x52] sm:$0xff]
      %v2602 = vld [vmem:[#allocation2 + $0x5a] sm:$0xff]
      %v2603 = vld [vmem:[#allocation2 + $0x62] sm:$0xff]
      %v2604 = vld [vmem:[#allocation2 + $0x6a] sm:$0xff]
      %v2605 = vld [vmem:[#allocation2 + $0x72] sm:$0xff]
      %v2606 = vld [vmem:[#allocation2 + $0x7a] sm:$0xff]
      %s2607 = scalar_lea.vmem %s4, 256
      %v2608 = vld [vmem:[%s2607] sm:$0xff]
      %v2609 = vld [vmem:[%s2607 + $0x8] sm:$0xff]
      %v2610 = vld [vmem:[%s2607 + $0x10] sm:$0xff]
      %v2611 = vld [vmem:[%s2607 + $0x18] sm:$0xff]
      %v2612 = vld [vmem:[%s2607 + $0x20] sm:$0xff]
      %v2613 = vld [vmem:[%s2607 + $0x28] sm:$0xff]
      %v2614 = vld [vmem:[%s2607 + $0x30] sm:$0xff]
      %v2615 = vld [vmem:[%s2607 + $0x38] sm:$0xff]
      %v2616 = vld [vmem:[%s2607 + $0x40] sm:$0xff]
      %v2617 = vld [vmem:[%s2607 + $0x48] sm:$0xff]
      %v2618 = vld [vmem:[%s2607 + $0x50] sm:$0xff]
      %v2619 = vld [vmem:[%s2607 + $0x58] sm:$0xff]
      %v2620 = vld [vmem:[%s2607 + $0x60] sm:$0xff]
      %v2621 = vld [vmem:[%s2607 + $0x68] sm:$0xff]
      %v2622 = vld [vmem:[%s2607 + $0x70] sm:$0xff]
      %v2623 = vld [vmem:[%s2607 + $0x78] sm:$0xff]
      %2624 = vmatprep.subr.mxu0 0.0
      %2625 = vmatpush1.msra.mxu0 %v2623
      %2626 = vmatprep.subr.mxu0 0.0
      %2627 = vmatpush1.msra.mxu0 %v2622
      %2628 = vmatprep.subr.mxu0 0.0
      %2629 = vmatpush1.msra.mxu0 %v2621
      %2630 = vmatprep.subr.mxu0 0.0
      %2631 = vmatpush1.msra.mxu0 %v2620
      %2632 = vmatprep.subr.mxu0 0.0
      %2633 = vmatpush1.msra.mxu0 %v2619
      %2634 = vmatprep.subr.mxu0 0.0
      %2635 = vmatpush1.msra.mxu0 %v2618
      %2636 = vmatprep.subr.mxu0 0.0
      %2637 = vmatpush1.msra.mxu0 %v2617
      %2638 = vmatprep.subr.mxu0 0.0
      %2639 = vmatpush1.msra.mxu0 %v2616
      %2640 = vmatprep.subr.mxu0 0.0
      %2641 = vmatpush1.msra.mxu0 %v2615
      %2642 = vmatprep.subr.mxu0 0.0
      %2643 = vmatpush1.msra.mxu0 %v2614
      %2644 = vmatprep.subr.mxu0 0.0
      %2645 = vmatpush1.msra.mxu0 %v2613
      %2646 = vmatprep.subr.mxu0 0.0
      %2647 = vmatpush1.msra.mxu0 %v2612
      %2648 = vmatprep.subr.mxu0 0.0
      %2649 = vmatpush1.msra.mxu0 %v2611
      %2650 = vmatprep.subr.mxu0 0.0
      %2651 = vmatpush1.msra.mxu0 %v2610
      %2652 = vmatprep.subr.mxu0 0.0
      %2653 = vmatpush1.msra.mxu0 %v2609
      %2654 = vmatprep.subr.mxu0 0.0
      %2655 = vmatpush1.msra.mxu0 %v2608
      %2656 = vmatprep.subr.mxu0 0.0
      %2657 = vmatpush2.msra.mxu0 0.0
      %2658 = vmatprep.subr.mxu0 0.0
      %2659 = vmatpush2.msra.mxu0 0.0
      %2660 = vmatprep.subr.mxu0 0.0
      %2661 = vmatpush2.msra.mxu0 0.0
      %2662 = vmatprep.subr.mxu0 0.0
      %2663 = vmatpush2.msra.mxu0 0.0
      %2664 = vmatprep.subr.mxu0 0.0
      %2665 = vmatpush2.msra.mxu0 0.0
      %2666 = vmatprep.subr.mxu0 0.0
      %2667 = vmatpush2.msra.mxu0 0.0
      %2668 = vmatprep.subr.mxu0 0.0
      %2669 = vmatpush2.msra.mxu0 0.0
      %2670 = vmatprep.subr.mxu0 0.0
      %2671 = vmatpush2.msra.mxu0 0.0
      %2672 = vmatprep.subr.mxu0 0.0
      %2673 = vmatpush2.msra.mxu0 0.0
      %2674 = vmatprep.subr.mxu0 0.0
      %2675 = vmatpush2.msra.mxu0 0.0
      %2676 = vmatprep.subr.mxu0 0.0
      %2677 = vmatpush2.msra.mxu0 0.0
      %2678 = vmatprep.subr.mxu0 0.0
      %2679 = vmatpush2.msra.mxu0 0.0
      %2680 = vmatprep.subr.mxu0 0.0
      %2681 = vmatpush2.msra.mxu0 0.0
      %2682 = vmatprep.subr.mxu0 0.0
      %2683 = vmatpush2.msra.mxu0 0.0
      %2684 = vmatprep.subr.mxu0 0.0
      %2685 = vmatpush2.msra.mxu0 0.0
      %2686 = vmatprep.subr.mxu0 0.0
      %2687 = vmatpush2.msra.mxu0 0.0
      %2688 = vmatprep.mubr.f32.mxu0 0.0
      %2689 = vmatmul.mubr.f32.gmra.mxu0 %v2591
      %v2690 = vpop.f32.mrf.mxu0
      %v2691 = vadd.f32 0.0, %v2690
      %v2692 = vpop.f32.mrf.mxu0
      %2693 = vmatprep.mubr.f32.mxu0 0.0
      %2694 = vmatmul.mubr.f32.gmra.mxu0 %v2592
      %v2695 = vpop.f32.mrf.mxu0
      %v2696 = vadd.f32 0.0, %v2695
      %v2697 = vpop.f32.mrf.mxu0
      %2698 = vmatprep.mubr.f32.mxu0 0.0
      %2699 = vmatmul.mubr.f32.gmra.mxu0 %v2593
      %v2700 = vpop.f32.mrf.mxu0
      %v2701 = vadd.f32 0.0, %v2700
      %v2702 = vpop.f32.mrf.mxu0
      %2703 = vmatprep.mubr.f32.mxu0 0.0
      %2704 = vmatmul.mubr.f32.gmra.mxu0 %v2594
      %v2705 = vpop.f32.mrf.mxu0
      %v2706 = vadd.f32 0.0, %v2705
      %v2707 = vpop.f32.mrf.mxu0
      %2708 = vmatprep.mubr.f32.mxu0 0.0
      %2709 = vmatmul.mubr.f32.gmra.mxu0 %v2595
      %v2710 = vpop.f32.mrf.mxu0
      %v2711 = vadd.f32 0.0, %v2710
      %v2712 = vpop.f32.mrf.mxu0
      %2713 = vmatprep.mubr.f32.mxu0 0.0
      %2714 = vmatmul.mubr.f32.gmra.mxu0 %v2596
      %v2715 = vpop.f32.mrf.mxu0
      %v2716 = vadd.f32 0.0, %v2715
      %v2717 = vpop.f32.mrf.mxu0
      %2718 = vmatprep.mubr.f32.mxu0 0.0
      %2719 = vmatmul.mubr.f32.gmra.mxu0 %v2597
      %v2720 = vpop.f32.mrf.mxu0
      %v2721 = vadd.f32 0.0, %v2720
      %v2722 = vpop.f32.mrf.mxu0
      %2723 = vmatprep.mubr.f32.mxu0 0.0
      %2724 = vmatmul.mubr.f32.gmra.mxu0 %v2598
      %v2725 = vpop.f32.mrf.mxu0
      %v2726 = vadd.f32 0.0, %v2725
      %v2727 = vpop.f32.mrf.mxu0
      %2728 = vmatprep.mubr.f32.mxu0 0.0
      %2729 = vmatmul.mubr.f32.gmra.mxu0 %v2599
      %v2730 = vpop.f32.mrf.mxu0
      %v2731 = vadd.f32 0.0, %v2730
      %v2732 = vpop.f32.mrf.mxu0
      %2733 = vmatprep.mubr.f32.mxu0 0.0
      %2734 = vmatmul.mubr.f32.gmra.mxu0 %v2600
      %v2735 = vpop.f32.mrf.mxu0
      %v2736 = vadd.f32 0.0, %v2735
      %v2737 = vpop.f32.mrf.mxu0
      %2738 = vmatprep.mubr.f32.mxu0 0.0
      %2739 = vmatmul.mubr.f32.gmra.mxu0 %v2601
      %v2740 = vpop.f32.mrf.mxu0
      %v2741 = vadd.f32 0.0, %v2740
      %v2742 = vpop.f32.mrf.mxu0
      %2743 = vmatprep.mubr.f32.mxu0 0.0
      %2744 = vmatmul.mubr.f32.gmra.mxu0 %v2602
      %v2745 = vpop.f32.mrf.mxu0
      %v2746 = vadd.f32 0.0, %v2745
      %v2747 = vpop.f32.mrf.mxu0
      %2748 = vmatprep.mubr.f32.mxu0 0.0
      %2749 = vmatmul.mubr.f32.gmra.mxu0 %v2603
      %v2750 = vpop.f32.mrf.mxu0
      %v2751 = vadd.f32 0.0, %v2750
      %v2752 = vpop.f32.mrf.mxu0
      %2753 = vmatprep.mubr.f32.mxu0 0.0
      %2754 = vmatmul.mubr.f32.gmra.mxu0 %v2604
      %v2755 = vpop.f32.mrf.mxu0
      %v2756 = vadd.f32 0.0, %v2755
      %v2757 = vpop.f32.mrf.mxu0
      %2758 = vmatprep.mubr.f32.mxu0 0.0
      %2759 = vmatmul.mubr.f32.gmra.mxu0 %v2605
      %v2760 = vpop.f32.mrf.mxu0
      %v2761 = vadd.f32 0.0, %v2760
      %v2762 = vpop.f32.mrf.mxu0
      %2763 = vmatprep.mubr.f32.mxu0 0.0
      %2764 = vmatmul.mubr.f32.gmra.mxu0 %v2606
      %v2765 = vpop.f32.mrf.mxu0
      %v2766 = vadd.f32 0.0, %v2765
      %v2767 = vpop.f32.mrf.mxu0
      %2768 = vdwg.mxu0
      %v2769 = vadd.f32 %v2513, %v2691
      %v2770 = vadd.f32 %v2518, %v2696
      %v2771 = vadd.f32 %v2523, %v2701
      %v2772 = vadd.f32 %v2528, %v2706
      %v2773 = vadd.f32 %v2533, %v2711
      %v2774 = vadd.f32 %v2538, %v2716
      %v2775 = vadd.f32 %v2543, %v2721
      %v2776 = vadd.f32 %v2548, %v2726
      %v2777 = vadd.f32 %v2553, %v2731
      %v2778 = vadd.f32 %v2558, %v2736
      %v2779 = vadd.f32 %v2563, %v2741
      %v2780 = vadd.f32 %v2568, %v2746
      %v2781 = vadd.f32 %v2573, %v2751
      %v2782 = vadd.f32 %v2578, %v2756
      %v2783 = vadd.f32 %v2583, %v2761
      %v2784 = vadd.f32 %v2588, %v2766
      %v2785 = vld [vmem:[#allocation2 + $0x10] sm:$0xff]
      %v2786 = vld [vmem:[#allocation2 + $0x18] sm:$0xff]
      %v2787 = vld [vmem:[#allocation2 + $0x20] sm:$0xff]
      %v2788 = vld [vmem:[#allocation2 + $0x28] sm:$0xff]
      %v2789 = vld [vmem:[#allocation2 + $0x30] sm:$0xff]
      %v2790 = vld [vmem:[#allocation2 + $0x38] sm:$0xff]
      %v2791 = vld [vmem:[#allocation2 + $0x40] sm:$0xff]
      %v2792 = vld [vmem:[#allocation2 + $0x48] sm:$0xff]
      %v2793 = vld [vmem:[#allocation2 + $0x50] sm:$0xff]
      %v2794 = vld [vmem:[#allocation2 + $0x58] sm:$0xff]
      %v2795 = vld [vmem:[#allocation2 + $0x60] sm:$0xff]
      %v2796 = vld [vmem:[#allocation2 + $0x68] sm:$0xff]
      %v2797 = vld [vmem:[#allocation2 + $0x70] sm:$0xff]
      %v2798 = vld [vmem:[#allocation2 + $0x78] sm:$0xff]
      %v2799 = vld [vmem:[#allocation2 + $0x80] sm:$0xff]
      %v2800 = vld [vmem:[#allocation2 + $0x88] sm:$0xff]
      %s2801 = scalar_lea.vmem %s4, 384
      %v2802 = vld [vmem:[%s2801] sm:$0xff]
      %v2803 = vld [vmem:[%s2801 + $0x8] sm:$0xff]
      %v2804 = vld [vmem:[%s2801 + $0x10] sm:$0xff]
      %v2805 = vld [vmem:[%s2801 + $0x18] sm:$0xff]
      %v2806 = vld [vmem:[%s2801 + $0x20] sm:$0xff]
      %v2807 = vld [vmem:[%s2801 + $0x28] sm:$0xff]
      %v2808 = vld [vmem:[%s2801 + $0x30] sm:$0xff]
      %v2809 = vld [vmem:[%s2801 + $0x38] sm:$0xff]
      %v2810 = vld [vmem:[%s2801 + $0x40] sm:$0xff]
      %v2811 = vld [vmem:[%s2801 + $0x48] sm:$0xff]
      %v2812 = vld [vmem:[%s2801 + $0x50] sm:$0xff]
      %v2813 = vld [vmem:[%s2801 + $0x58] sm:$0xff]
      %v2814 = vld [vmem:[%s2801 + $0x60] sm:$0xff]
      %v2815 = vld [vmem:[%s2801 + $0x68] sm:$0xff]
      %v2816 = vld [vmem:[%s2801 + $0x70] sm:$0xff]
      %v2817 = vld [vmem:[%s2801 + $0x78] sm:$0xff]
      %2818 = vmatprep.subr.mxu0 0.0
      %2819 = vmatpush1.msra.mxu0 %v2817
      %2820 = vmatprep.subr.mxu0 0.0
      %2821 = vmatpush1.msra.mxu0 %v2816
      %2822 = vmatprep.subr.mxu0 0.0
      %2823 = vmatpush1.msra.mxu0 %v2815
      %2824 = vmatprep.subr.mxu0 0.0
      %2825 = vmatpush1.msra.mxu0 %v2814
      %2826 = vmatprep.subr.mxu0 0.0
      %2827 = vmatpush1.msra.mxu0 %v2813
      %2828 = vmatprep.subr.mxu0 0.0
      %2829 = vmatpush1.msra.mxu0 %v2812
      %2830 = vmatprep.subr.mxu0 0.0
      %2831 = vmatpush1.msra.mxu0 %v2811
      %2832 = vmatprep.subr.mxu0 0.0
      %2833 = vmatpush1.msra.mxu0 %v2810
      %2834 = vmatprep.subr.mxu0 0.0
      %2835 = vmatpush1.msra.mxu0 %v2809
      %2836 = vmatprep.subr.mxu0 0.0
      %2837 = vmatpush1.msra.mxu0 %v2808
      %2838 = vmatprep.subr.mxu0 0.0
      %2839 = vmatpush1.msra.mxu0 %v2807
      %2840 = vmatprep.subr.mxu0 0.0
      %2841 = vmatpush1.msra.mxu0 %v2806
      %2842 = vmatprep.subr.mxu0 0.0
      %2843 = vmatpush1.msra.mxu0 %v2805
      %2844 = vmatprep.subr.mxu0 0.0
      %2845 = vmatpush1.msra.mxu0 %v2804
      %2846 = vmatprep.subr.mxu0 0.0
      %2847 = vmatpush1.msra.mxu0 %v2803
      %2848 = vmatprep.subr.mxu0 0.0
      %2849 = vmatpush1.msra.mxu0 %v2802
      %2850 = vmatprep.subr.mxu0 0.0
      %2851 = vmatpush2.msra.mxu0 0.0
      %2852 = vmatprep.subr.mxu0 0.0
      %2853 = vmatpush2.msra.mxu0 0.0
      %2854 = vmatprep.subr.mxu0 0.0
      %2855 = vmatpush2.msra.mxu0 0.0
      %2856 = vmatprep.subr.mxu0 0.0
      %2857 = vmatpush2.msra.mxu0 0.0
      %2858 = vmatprep.subr.mxu0 0.0
      %2859 = vmatpush2.msra.mxu0 0.0
      %2860 = vmatprep.subr.mxu0 0.0
      %2861 = vmatpush2.msra.mxu0 0.0
      %2862 = vmatprep.subr.mxu0 0.0
      %2863 = vmatpush2.msra.mxu0 0.0
      %2864 = vmatprep.subr.mxu0 0.0
      %2865 = vmatpush2.msra.mxu0 0.0
      %2866 = vmatprep.subr.mxu0 0.0
      %2867 = vmatpush2.msra.mxu0 0.0
      %2868 = vmatprep.subr.mxu0 0.0
      %2869 = vmatpush2.msra.mxu0 0.0
      %2870 = vmatprep.subr.mxu0 0.0
      %2871 = vmatpush2.msra.mxu0 0.0
      %2872 = vmatprep.subr.mxu0 0.0
      %2873 = vmatpush2.msra.mxu0 0.0
      %2874 = vmatprep.subr.mxu0 0.0
      %2875 = vmatpush2.msra.mxu0 0.0
      %2876 = vmatprep.subr.mxu0 0.0
      %2877 = vmatpush2.msra.mxu0 0.0
      %2878 = vmatprep.subr.mxu0 0.0
      %2879 = vmatpush2.msra.mxu0 0.0
      %2880 = vmatprep.subr.mxu0 0.0
      %2881 = vmatpush2.msra.mxu0 0.0
      %2882 = vmatprep.mubr.f32.mxu0 0.0
      %2883 = vmatmul.mubr.f32.gmra.mxu0 %v2785
      %v2884 = vpop.f32.mrf.mxu0
      %v2885 = vadd.f32 0.0, %v2884
      %v2886 = vpop.f32.mrf.mxu0
      %2887 = vmatprep.mubr.f32.mxu0 0.0
      %2888 = vmatmul.mubr.f32.gmra.mxu0 %v2786
      %v2889 = vpop.f32.mrf.mxu0
      %v2890 = vadd.f32 0.0, %v2889
      %v2891 = vpop.f32.mrf.mxu0
      %2892 = vmatprep.mubr.f32.mxu0 0.0
      %2893 = vmatmul.mubr.f32.gmra.mxu0 %v2787
      %v2894 = vpop.f32.mrf.mxu0
      %v2895 = vadd.f32 0.0, %v2894
      %v2896 = vpop.f32.mrf.mxu0
      %2897 = vmatprep.mubr.f32.mxu0 0.0
      %2898 = vmatmul.mubr.f32.gmra.mxu0 %v2788
      %v2899 = vpop.f32.mrf.mxu0
      %v2900 = vadd.f32 0.0, %v2899
      %v2901 = vpop.f32.mrf.mxu0
      %2902 = vmatprep.mubr.f32.mxu0 0.0
      %2903 = vmatmul.mubr.f32.gmra.mxu0 %v2789
      %v2904 = vpop.f32.mrf.mxu0
      %v2905 = vadd.f32 0.0, %v2904
      %v2906 = vpop.f32.mrf.mxu0
      %2907 = vmatprep.mubr.f32.mxu0 0.0
      %2908 = vmatmul.mubr.f32.gmra.mxu0 %v2790
      %v2909 = vpop.f32.mrf.mxu0
      %v2910 = vadd.f32 0.0, %v2909
      %v2911 = vpop.f32.mrf.mxu0
      %2912 = vmatprep.mubr.f32.mxu0 0.0
      %2913 = vmatmul.mubr.f32.gmra.mxu0 %v2791
      %v2914 = vpop.f32.mrf.mxu0
      %v2915 = vadd.f32 0.0, %v2914
      %v2916 = vpop.f32.mrf.mxu0
      %2917 = vmatprep.mubr.f32.mxu0 0.0
      %2918 = vmatmul.mubr.f32.gmra.mxu0 %v2792
      %v2919 = vpop.f32.mrf.mxu0
      %v2920 = vadd.f32 0.0, %v2919
      %v2921 = vpop.f32.mrf.mxu0
      %2922 = vmatprep.mubr.f32.mxu0 0.0
      %2923 = vmatmul.mubr.f32.gmra.mxu0 %v2793
      %v2924 = vpop.f32.mrf.mxu0
      %v2925 = vadd.f32 0.0, %v2924
      %v2926 = vpop.f32.mrf.mxu0
      %2927 = vmatprep.mubr.f32.mxu0 0.0
      %2928 = vmatmul.mubr.f32.gmra.mxu0 %v2794
      %v2929 = vpop.f32.mrf.mxu0
      %v2930 = vadd.f32 0.0, %v2929
      %v2931 = vpop.f32.mrf.mxu0
      %2932 = vmatprep.mubr.f32.mxu0 0.0
      %2933 = vmatmul.mubr.f32.gmra.mxu0 %v2795
      %v2934 = vpop.f32.mrf.mxu0
      %v2935 = vadd.f32 0.0, %v2934
      %v2936 = vpop.f32.mrf.mxu0
      %2937 = vmatprep.mubr.f32.mxu0 0.0
      %2938 = vmatmul.mubr.f32.gmra.mxu0 %v2796
      %v2939 = vpop.f32.mrf.mxu0
      %v2940 = vadd.f32 0.0, %v2939
      %v2941 = vpop.f32.mrf.mxu0
      %2942 = vmatprep.mubr.f32.mxu0 0.0
      %2943 = vmatmul.mubr.f32.gmra.mxu0 %v2797
      %v2944 = vpop.f32.mrf.mxu0
      %v2945 = vadd.f32 0.0, %v2944
      %v2946 = vpop.f32.mrf.mxu0
      %2947 = vmatprep.mubr.f32.mxu0 0.0
      %2948 = vmatmul.mubr.f32.gmra.mxu0 %v2798
      %v2949 = vpop.f32.mrf.mxu0
      %v2950 = vadd.f32 0.0, %v2949
      %v2951 = vpop.f32.mrf.mxu0
      %2952 = vmatprep.mubr.f32.mxu0 0.0
      %2953 = vmatmul.mubr.f32.gmra.mxu0 %v2799
      %v2954 = vpop.f32.mrf.mxu0
      %v2955 = vadd.f32 0.0, %v2954
      %v2956 = vpop.f32.mrf.mxu0
      %2957 = vmatprep.mubr.f32.mxu0 0.0
      %2958 = vmatmul.mubr.f32.gmra.mxu0 %v2800
      %v2959 = vpop.f32.mrf.mxu0
      %v2960 = vadd.f32 0.0, %v2959
      %v2961 = vpop.f32.mrf.mxu0
      %2962 = vdwg.mxu0
      %v2963 = vadd.f32 %v2769, %v2885
      %v2964 = vadd.f32 %v2770, %v2890
      %v2965 = vadd.f32 %v2771, %v2895
      %v2966 = vadd.f32 %v2772, %v2900
      %v2967 = vadd.f32 %v2773, %v2905
      %v2968 = vadd.f32 %v2774, %v2910
      %v2969 = vadd.f32 %v2775, %v2915
      %v2970 = vadd.f32 %v2776, %v2920
      %v2971 = vadd.f32 %v2777, %v2925
      %v2972 = vadd.f32 %v2778, %v2930
      %v2973 = vadd.f32 %v2779, %v2935
      %v2974 = vadd.f32 %v2780, %v2940
      %v2975 = vadd.f32 %v2781, %v2945
      %v2976 = vadd.f32 %v2782, %v2950
      %v2977 = vadd.f32 %v2783, %v2955
      %v2978 = vadd.f32 %v2784, %v2960
      %v2979 = vld [vmem:[#allocation2 + $0x11] sm:$0xff]
      %v2980 = vld [vmem:[#allocation2 + $0x19] sm:$0xff]
      %v2981 = vld [vmem:[#allocation2 + $0x21] sm:$0xff]
      %v2982 = vld [vmem:[#allocation2 + $0x29] sm:$0xff]
      %v2983 = vld [vmem:[#allocation2 + $0x31] sm:$0xff]
      %v2984 = vld [vmem:[#allocation2 + $0x39] sm:$0xff]
      %v2985 = vld [vmem:[#allocation2 + $0x41] sm:$0xff]
      %v2986 = vld [vmem:[#allocation2 + $0x49] sm:$0xff]
      %v2987 = vld [vmem:[#allocation2 + $0x51] sm:$0xff]
      %v2988 = vld [vmem:[#allocation2 + $0x59] sm:$0xff]
      %v2989 = vld [vmem:[#allocation2 + $0x61] sm:$0xff]
      %v2990 = vld [vmem:[#allocation2 + $0x69] sm:$0xff]
      %v2991 = vld [vmem:[#allocation2 + $0x71] sm:$0xff]
      %v2992 = vld [vmem:[#allocation2 + $0x79] sm:$0xff]
      %v2993 = vld [vmem:[#allocation2 + $0x81] sm:$0xff]
      %v2994 = vld [vmem:[#allocation2 + $0x89] sm:$0xff]
      %s2995 = scalar_lea.vmem %s4, 512
      %v2996 = vld [vmem:[%s2995] sm:$0xff]
      %v2997 = vld [vmem:[%s2995 + $0x8] sm:$0xff]
      %v2998 = vld [vmem:[%s2995 + $0x10] sm:$0xff]
      %v2999 = vld [vmem:[%s2995 + $0x18] sm:$0xff]
      %v3000 = vld [vmem:[%s2995 + $0x20] sm:$0xff]
      %v3001 = vld [vmem:[%s2995 + $0x28] sm:$0xff]
      %v3002 = vld [vmem:[%s2995 + $0x30] sm:$0xff]
      %v3003 = vld [vmem:[%s2995 + $0x38] sm:$0xff]
      %v3004 = vld [vmem:[%s2995 + $0x40] sm:$0xff]
      %v3005 = vld [vmem:[%s2995 + $0x48] sm:$0xff]
      %v3006 = vld [vmem:[%s2995 + $0x50] sm:$0xff]
      %v3007 = vld [vmem:[%s2995 + $0x58] sm:$0xff]
      %v3008 = vld [vmem:[%s2995 + $0x60] sm:$0xff]
      %v3009 = vld [vmem:[%s2995 + $0x68] sm:$0xff]
      %v3010 = vld [vmem:[%s2995 + $0x70] sm:$0xff]
      %v3011 = vld [vmem:[%s2995 + $0x78] sm:$0xff]
      %3012 = vmatprep.subr.mxu0 0.0
      %3013 = vmatpush1.msra.mxu0 %v3011
      %3014 = vmatprep.subr.mxu0 0.0
      %3015 = vmatpush1.msra.mxu0 %v3010
      %3016 = vmatprep.subr.mxu0 0.0
      %3017 = vmatpush1.msra.mxu0 %v3009
      %3018 = vmatprep.subr.mxu0 0.0
      %3019 = vmatpush1.msra.mxu0 %v3008
      %3020 = vmatprep.subr.mxu0 0.0
      %3021 = vmatpush1.msra.mxu0 %v3007
      %3022 = vmatprep.subr.mxu0 0.0
      %3023 = vmatpush1.msra.mxu0 %v3006
      %3024 = vmatprep.subr.mxu0 0.0
      %3025 = vmatpush1.msra.mxu0 %v3005
      %3026 = vmatprep.subr.mxu0 0.0
      %3027 = vmatpush1.msra.mxu0 %v3004
      %3028 = vmatprep.subr.mxu0 0.0
      %3029 = vmatpush1.msra.mxu0 %v3003
      %3030 = vmatprep.subr.mxu0 0.0
      %3031 = vmatpush1.msra.mxu0 %v3002
      %3032 = vmatprep.subr.mxu0 0.0
      %3033 = vmatpush1.msra.mxu0 %v3001
      %3034 = vmatprep.subr.mxu0 0.0
      %3035 = vmatpush1.msra.mxu0 %v3000
      %3036 = vmatprep.subr.mxu0 0.0
      %3037 = vmatpush1.msra.mxu0 %v2999
      %3038 = vmatprep.subr.mxu0 0.0
      %3039 = vmatpush1.msra.mxu0 %v2998
      %3040 = vmatprep.subr.mxu0 0.0
      %3041 = vmatpush1.msra.mxu0 %v2997
      %3042 = vmatprep.subr.mxu0 0.0
      %3043 = vmatpush1.msra.mxu0 %v2996
      %3044 = vmatprep.subr.mxu0 0.0
      %3045 = vmatpush2.msra.mxu0 0.0
      %3046 = vmatprep.subr.mxu0 0.0
      %3047 = vmatpush2.msra.mxu0 0.0
      %3048 = vmatprep.subr.mxu0 0.0
      %3049 = vmatpush2.msra.mxu0 0.0
      %3050 = vmatprep.subr.mxu0 0.0
      %3051 = vmatpush2.msra.mxu0 0.0
      %3052 = vmatprep.subr.mxu0 0.0
      %3053 = vmatpush2.msra.mxu0 0.0
      %3054 = vmatprep.subr.mxu0 0.0
      %3055 = vmatpush2.msra.mxu0 0.0
      %3056 = vmatprep.subr.mxu0 0.0
      %3057 = vmatpush2.msra.mxu0 0.0
      %3058 = vmatprep.subr.mxu0 0.0
      %3059 = vmatpush2.msra.mxu0 0.0
      %3060 = vmatprep.subr.mxu0 0.0
      %3061 = vmatpush2.msra.mxu0 0.0
      %3062 = vmatprep.subr.mxu0 0.0
      %3063 = vmatpush2.msra.mxu0 0.0
      %3064 = vmatprep.subr.mxu0 0.0
      %3065 = vmatpush2.msra.mxu0 0.0
      %3066 = vmatprep.subr.mxu0 0.0
      %3067 = vmatpush2.msra.mxu0 0.0
      %3068 = vmatprep.subr.mxu0 0.0
      %3069 = vmatpush2.msra.mxu0 0.0
      %3070 = vmatprep.subr.mxu0 0.0
      %3071 = vmatpush2.msra.mxu0 0.0
      %3072 = vmatprep.subr.mxu0 0.0
      %3073 = vmatpush2.msra.mxu0 0.0
      %3074 = vmatprep.subr.mxu0 0.0
      %3075 = vmatpush2.msra.mxu0 0.0
      %3076 = vmatprep.mubr.f32.mxu0 0.0
      %3077 = vmatmul.mubr.f32.gmra.mxu0 %v2979
      %v3078 = vpop.f32.mrf.mxu0
      %v3079 = vadd.f32 0.0, %v3078
      %v3080 = vpop.f32.mrf.mxu0
      %3081 = vmatprep.mubr.f32.mxu0 0.0
      %3082 = vmatmul.mubr.f32.gmra.mxu0 %v2980
      %v3083 = vpop.f32.mrf.mxu0
      %v3084 = vadd.f32 0.0, %v3083
      %v3085 = vpop.f32.mrf.mxu0
      %3086 = vmatprep.mubr.f32.mxu0 0.0
      %3087 = vmatmul.mubr.f32.gmra.mxu0 %v2981
      %v3088 = vpop.f32.mrf.mxu0
      %v3089 = vadd.f32 0.0, %v3088
      %v3090 = vpop.f32.mrf.mxu0
      %3091 = vmatprep.mubr.f32.mxu0 0.0
      %3092 = vmatmul.mubr.f32.gmra.mxu0 %v2982
      %v3093 = vpop.f32.mrf.mxu0
      %v3094 = vadd.f32 0.0, %v3093
      %v3095 = vpop.f32.mrf.mxu0
      %3096 = vmatprep.mubr.f32.mxu0 0.0
      %3097 = vmatmul.mubr.f32.gmra.mxu0 %v2983
      %v3098 = vpop.f32.mrf.mxu0
      %v3099 = vadd.f32 0.0, %v3098
      %v3100 = vpop.f32.mrf.mxu0
      %3101 = vmatprep.mubr.f32.mxu0 0.0
      %3102 = vmatmul.mubr.f32.gmra.mxu0 %v2984
      %v3103 = vpop.f32.mrf.mxu0
      %v3104 = vadd.f32 0.0, %v3103
      %v3105 = vpop.f32.mrf.mxu0
      %3106 = vmatprep.mubr.f32.mxu0 0.0
      %3107 = vmatmul.mubr.f32.gmra.mxu0 %v2985
      %v3108 = vpop.f32.mrf.mxu0
      %v3109 = vadd.f32 0.0, %v3108
      %v3110 = vpop.f32.mrf.mxu0
      %3111 = vmatprep.mubr.f32.mxu0 0.0
      %3112 = vmatmul.mubr.f32.gmra.mxu0 %v2986
      %v3113 = vpop.f32.mrf.mxu0
      %v3114 = vadd.f32 0.0, %v3113
      %v3115 = vpop.f32.mrf.mxu0
      %3116 = vmatprep.mubr.f32.mxu0 0.0
      %3117 = vmatmul.mubr.f32.gmra.mxu0 %v2987
      %v3118 = vpop.f32.mrf.mxu0
      %v3119 = vadd.f32 0.0, %v3118
      %v3120 = vpop.f32.mrf.mxu0
      %3121 = vmatprep.mubr.f32.mxu0 0.0
      %3122 = vmatmul.mubr.f32.gmra.mxu0 %v2988
      %v3123 = vpop.f32.mrf.mxu0
      %v3124 = vadd.f32 0.0, %v3123
      %v3125 = vpop.f32.mrf.mxu0
      %3126 = vmatprep.mubr.f32.mxu0 0.0
      %3127 = vmatmul.mubr.f32.gmra.mxu0 %v2989
      %v3128 = vpop.f32.mrf.mxu0
      %v3129 = vadd.f32 0.0, %v3128
      %v3130 = vpop.f32.mrf.mxu0
      %3131 = vmatprep.mubr.f32.mxu0 0.0
      %3132 = vmatmul.mubr.f32.gmra.mxu0 %v2990
      %v3133 = vpop.f32.mrf.mxu0
      %v3134 = vadd.f32 0.0, %v3133
      %v3135 = vpop.f32.mrf.mxu0
      %3136 = vmatprep.mubr.f32.mxu0 0.0
      %3137 = vmatmul.mubr.f32.gmra.mxu0 %v2991
      %v3138 = vpop.f32.mrf.mxu0
      %v3139 = vadd.f32 0.0, %v3138
      %v3140 = vpop.f32.mrf.mxu0
      %3141 = vmatprep.mubr.f32.mxu0 0.0
      %3142 = vmatmul.mubr.f32.gmra.mxu0 %v2992
      %v3143 = vpop.f32.mrf.mxu0
      %v3144 = vadd.f32 0.0, %v3143
      %v3145 = vpop.f32.mrf.mxu0
      %3146 = vmatprep.mubr.f32.mxu0 0.0
      %3147 = vmatmul.mubr.f32.gmra.mxu0 %v2993
      %v3148 = vpop.f32.mrf.mxu0
      %v3149 = vadd.f32 0.0, %v3148
      %v3150 = vpop.f32.mrf.mxu0
      %3151 = vmatprep.mubr.f32.mxu0 0.0
      %3152 = vmatmul.mubr.f32.gmra.mxu0 %v2994
      %v3153 = vpop.f32.mrf.mxu0
      %v3154 = vadd.f32 0.0, %v3153
      %v3155 = vpop.f32.mrf.mxu0
      %3156 = vdwg.mxu0
      %v3157 = vadd.f32 %v2963, %v3079
      %v3158 = vadd.f32 %v2964, %v3084
      %v3159 = vadd.f32 %v2965, %v3089
      %v3160 = vadd.f32 %v2966, %v3094
      %v3161 = vadd.f32 %v2967, %v3099
      %v3162 = vadd.f32 %v2968, %v3104
      %v3163 = vadd.f32 %v2969, %v3109
      %v3164 = vadd.f32 %v2970, %v3114
      %v3165 = vadd.f32 %v2971, %v3119
      %v3166 = vadd.f32 %v2972, %v3124
      %v3167 = vadd.f32 %v2973, %v3129
      %v3168 = vadd.f32 %v2974, %v3134
      %v3169 = vadd.f32 %v2975, %v3139
      %v3170 = vadd.f32 %v2976, %v3144
      %v3171 = vadd.f32 %v2977, %v3149
      %v3172 = vadd.f32 %v2978, %v3154
      %v3173 = vld [vmem:[#allocation2 + $0x12] sm:$0xff]
      %v3174 = vld [vmem:[#allocation2 + $0x1a] sm:$0xff]
      %v3175 = vld [vmem:[#allocation2 + $0x22] sm:$0xff]
      %v3176 = vld [vmem:[#allocation2 + $0x2a] sm:$0xff]
      %v3177 = vld [vmem:[#allocation2 + $0x32] sm:$0xff]
      %v3178 = vld [vmem:[#allocation2 + $0x3a] sm:$0xff]
      %v3179 = vld [vmem:[#allocation2 + $0x42] sm:$0xff]
      %v3180 = vld [vmem:[#allocation2 + $0x4a] sm:$0xff]
      %v3181 = vld [vmem:[#allocation2 + $0x52] sm:$0xff]
      %v3182 = vld [vmem:[#allocation2 + $0x5a] sm:$0xff]
      %v3183 = vld [vmem:[#allocation2 + $0x62] sm:$0xff]
      %v3184 = vld [vmem:[#allocation2 + $0x6a] sm:$0xff]
      %v3185 = vld [vmem:[#allocation2 + $0x72] sm:$0xff]
      %v3186 = vld [vmem:[#allocation2 + $0x7a] sm:$0xff]
      %v3187 = vld [vmem:[#allocation2 + $0x82] sm:$0xff]
      %v3188 = vld [vmem:[#allocation2 + $0x8a] sm:$0xff]
      %s3189 = scalar_lea.vmem %s4, 640
      %v3190 = vld [vmem:[%s3189] sm:$0xff]
      %v3191 = vld [vmem:[%s3189 + $0x8] sm:$0xff]
      %v3192 = vld [vmem:[%s3189 + $0x10] sm:$0xff]
      %v3193 = vld [vmem:[%s3189 + $0x18] sm:$0xff]
      %v3194 = vld [vmem:[%s3189 + $0x20] sm:$0xff]
      %v3195 = vld [vmem:[%s3189 + $0x28] sm:$0xff]
      %v3196 = vld [vmem:[%s3189 + $0x30] sm:$0xff]
      %v3197 = vld [vmem:[%s3189 + $0x38] sm:$0xff]
      %v3198 = vld [vmem:[%s3189 + $0x40] sm:$0xff]
      %v3199 = vld [vmem:[%s3189 + $0x48] sm:$0xff]
      %v3200 = vld [vmem:[%s3189 + $0x50] sm:$0xff]
      %v3201 = vld [vmem:[%s3189 + $0x58] sm:$0xff]
      %v3202 = vld [vmem:[%s3189 + $0x60] sm:$0xff]
      %v3203 = vld [vmem:[%s3189 + $0x68] sm:$0xff]
      %v3204 = vld [vmem:[%s3189 + $0x70] sm:$0xff]
      %v3205 = vld [vmem:[%s3189 + $0x78] sm:$0xff]
      %3206 = vmatprep.subr.mxu0 0.0
      %3207 = vmatpush1.msra.mxu0 %v3205
      %3208 = vmatprep.subr.mxu0 0.0
      %3209 = vmatpush1.msra.mxu0 %v3204
      %3210 = vmatprep.subr.mxu0 0.0
      %3211 = vmatpush1.msra.mxu0 %v3203
      %3212 = vmatprep.subr.mxu0 0.0
      %3213 = vmatpush1.msra.mxu0 %v3202
      %3214 = vmatprep.subr.mxu0 0.0
      %3215 = vmatpush1.msra.mxu0 %v3201
      %3216 = vmatprep.subr.mxu0 0.0
      %3217 = vmatpush1.msra.mxu0 %v3200
      %3218 = vmatprep.subr.mxu0 0.0
      %3219 = vmatpush1.msra.mxu0 %v3199
      %3220 = vmatprep.subr.mxu0 0.0
      %3221 = vmatpush1.msra.mxu0 %v3198
      %3222 = vmatprep.subr.mxu0 0.0
      %3223 = vmatpush1.msra.mxu0 %v3197
      %3224 = vmatprep.subr.mxu0 0.0
      %3225 = vmatpush1.msra.mxu0 %v3196
      %3226 = vmatprep.subr.mxu0 0.0
      %3227 = vmatpush1.msra.mxu0 %v3195
      %3228 = vmatprep.subr.mxu0 0.0
      %3229 = vmatpush1.msra.mxu0 %v3194
      %3230 = vmatprep.subr.mxu0 0.0
      %3231 = vmatpush1.msra.mxu0 %v3193
      %3232 = vmatprep.subr.mxu0 0.0
      %3233 = vmatpush1.msra.mxu0 %v3192
      %3234 = vmatprep.subr.mxu0 0.0
      %3235 = vmatpush1.msra.mxu0 %v3191
      %3236 = vmatprep.subr.mxu0 0.0
      %3237 = vmatpush1.msra.mxu0 %v3190
      %3238 = vmatprep.subr.mxu0 0.0
      %3239 = vmatpush2.msra.mxu0 0.0
      %3240 = vmatprep.subr.mxu0 0.0
      %3241 = vmatpush2.msra.mxu0 0.0
      %3242 = vmatprep.subr.mxu0 0.0
      %3243 = vmatpush2.msra.mxu0 0.0
      %3244 = vmatprep.subr.mxu0 0.0
      %3245 = vmatpush2.msra.mxu0 0.0
      %3246 = vmatprep.subr.mxu0 0.0
      %3247 = vmatpush2.msra.mxu0 0.0
      %3248 = vmatprep.subr.mxu0 0.0
      %3249 = vmatpush2.msra.mxu0 0.0
      %3250 = vmatprep.subr.mxu0 0.0
      %3251 = vmatpush2.msra.mxu0 0.0
      %3252 = vmatprep.subr.mxu0 0.0
      %3253 = vmatpush2.msra.mxu0 0.0
      %3254 = vmatprep.subr.mxu0 0.0
      %3255 = vmatpush2.msra.mxu0 0.0
      %3256 = vmatprep.subr.mxu0 0.0
      %3257 = vmatpush2.msra.mxu0 0.0
      %3258 = vmatprep.subr.mxu0 0.0
      %3259 = vmatpush2.msra.mxu0 0.0
      %3260 = vmatprep.subr.mxu0 0.0
      %3261 = vmatpush2.msra.mxu0 0.0
      %3262 = vmatprep.subr.mxu0 0.0
      %3263 = vmatpush2.msra.mxu0 0.0
      %3264 = vmatprep.subr.mxu0 0.0
      %3265 = vmatpush2.msra.mxu0 0.0
      %3266 = vmatprep.subr.mxu0 0.0
      %3267 = vmatpush2.msra.mxu0 0.0
      %3268 = vmatprep.subr.mxu0 0.0
      %3269 = vmatpush2.msra.mxu0 0.0
      %3270 = vmatprep.mubr.f32.mxu0 0.0
      %3271 = vmatmul.mubr.f32.gmra.mxu0 %v3173
      %v3272 = vpop.f32.mrf.mxu0
      %v3273 = vadd.f32 0.0, %v3272
      %v3274 = vpop.f32.mrf.mxu0
      %3275 = vmatprep.mubr.f32.mxu0 0.0
      %3276 = vmatmul.mubr.f32.gmra.mxu0 %v3174
      %v3277 = vpop.f32.mrf.mxu0
      %v3278 = vadd.f32 0.0, %v3277
      %v3279 = vpop.f32.mrf.mxu0
      %3280 = vmatprep.mubr.f32.mxu0 0.0
      %3281 = vmatmul.mubr.f32.gmra.mxu0 %v3175
      %v3282 = vpop.f32.mrf.mxu0
      %v3283 = vadd.f32 0.0, %v3282
      %v3284 = vpop.f32.mrf.mxu0
      %3285 = vmatprep.mubr.f32.mxu0 0.0
      %3286 = vmatmul.mubr.f32.gmra.mxu0 %v3176
      %v3287 = vpop.f32.mrf.mxu0
      %v3288 = vadd.f32 0.0, %v3287
      %v3289 = vpop.f32.mrf.mxu0
      %3290 = vmatprep.mubr.f32.mxu0 0.0
      %3291 = vmatmul.mubr.f32.gmra.mxu0 %v3177
      %v3292 = vpop.f32.mrf.mxu0
      %v3293 = vadd.f32 0.0, %v3292
      %v3294 = vpop.f32.mrf.mxu0
      %3295 = vmatprep.mubr.f32.mxu0 0.0
      %3296 = vmatmul.mubr.f32.gmra.mxu0 %v3178
      %v3297 = vpop.f32.mrf.mxu0
      %v3298 = vadd.f32 0.0, %v3297
      %v3299 = vpop.f32.mrf.mxu0
      %3300 = vmatprep.mubr.f32.mxu0 0.0
      %3301 = vmatmul.mubr.f32.gmra.mxu0 %v3179
      %v3302 = vpop.f32.mrf.mxu0
      %v3303 = vadd.f32 0.0, %v3302
      %v3304 = vpop.f32.mrf.mxu0
      %3305 = vmatprep.mubr.f32.mxu0 0.0
      %3306 = vmatmul.mubr.f32.gmra.mxu0 %v3180
      %v3307 = vpop.f32.mrf.mxu0
      %v3308 = vadd.f32 0.0, %v3307
      %v3309 = vpop.f32.mrf.mxu0
      %3310 = vmatprep.mubr.f32.mxu0 0.0
      %3311 = vmatmul.mubr.f32.gmra.mxu0 %v3181
      %v3312 = vpop.f32.mrf.mxu0
      %v3313 = vadd.f32 0.0, %v3312
      %v3314 = vpop.f32.mrf.mxu0
      %3315 = vmatprep.mubr.f32.mxu0 0.0
      %3316 = vmatmul.mubr.f32.gmra.mxu0 %v3182
      %v3317 = vpop.f32.mrf.mxu0
      %v3318 = vadd.f32 0.0, %v3317
      %v3319 = vpop.f32.mrf.mxu0
      %3320 = vmatprep.mubr.f32.mxu0 0.0
      %3321 = vmatmul.mubr.f32.gmra.mxu0 %v3183
      %v3322 = vpop.f32.mrf.mxu0
      %v3323 = vadd.f32 0.0, %v3322
      %v3324 = vpop.f32.mrf.mxu0
      %3325 = vmatprep.mubr.f32.mxu0 0.0
      %3326 = vmatmul.mubr.f32.gmra.mxu0 %v3184
      %v3327 = vpop.f32.mrf.mxu0
      %v3328 = vadd.f32 0.0, %v3327
      %v3329 = vpop.f32.mrf.mxu0
      %3330 = vmatprep.mubr.f32.mxu0 0.0
      %3331 = vmatmul.mubr.f32.gmra.mxu0 %v3185
      %v3332 = vpop.f32.mrf.mxu0
      %v3333 = vadd.f32 0.0, %v3332
      %v3334 = vpop.f32.mrf.mxu0
      %3335 = vmatprep.mubr.f32.mxu0 0.0
      %3336 = vmatmul.mubr.f32.gmra.mxu0 %v3186
      %v3337 = vpop.f32.mrf.mxu0
      %v3338 = vadd.f32 0.0, %v3337
      %v3339 = vpop.f32.mrf.mxu0
      %3340 = vmatprep.mubr.f32.mxu0 0.0
      %3341 = vmatmul.mubr.f32.gmra.mxu0 %v3187
      %v3342 = vpop.f32.mrf.mxu0
      %v3343 = vadd.f32 0.0, %v3342
      %v3344 = vpop.f32.mrf.mxu0
      %3345 = vmatprep.mubr.f32.mxu0 0.0
      %3346 = vmatmul.mubr.f32.gmra.mxu0 %v3188
      %v3347 = vpop.f32.mrf.mxu0
      %v3348 = vadd.f32 0.0, %v3347
      %v3349 = vpop.f32.mrf.mxu0
      %3350 = vdwg.mxu0
      %v3351 = vadd.f32 %v3157, %v3273
      %v3352 = vadd.f32 %v3158, %v3278
      %v3353 = vadd.f32 %v3159, %v3283
      %v3354 = vadd.f32 %v3160, %v3288
      %v3355 = vadd.f32 %v3161, %v3293
      %v3356 = vadd.f32 %v3162, %v3298
      %v3357 = vadd.f32 %v3163, %v3303
      %v3358 = vadd.f32 %v3164, %v3308
      %v3359 = vadd.f32 %v3165, %v3313
      %v3360 = vadd.f32 %v3166, %v3318
      %v3361 = vadd.f32 %v3167, %v3323
      %v3362 = vadd.f32 %v3168, %v3328
      %v3363 = vadd.f32 %v3169, %v3333
      %v3364 = vadd.f32 %v3170, %v3338
      %v3365 = vadd.f32 %v3171, %v3343
      %v3366 = vadd.f32 %v3172, %v3348
      %v3367 = vld [vmem:[#allocation2 + $0x20] sm:$0xff]
      %v3368 = vld [vmem:[#allocation2 + $0x28] sm:$0xff]
      %v3369 = vld [vmem:[#allocation2 + $0x30] sm:$0xff]
      %v3370 = vld [vmem:[#allocation2 + $0x38] sm:$0xff]
      %v3371 = vld [vmem:[#allocation2 + $0x40] sm:$0xff]
      %v3372 = vld [vmem:[#allocation2 + $0x48] sm:$0xff]
      %v3373 = vld [vmem:[#allocation2 + $0x50] sm:$0xff]
      %v3374 = vld [vmem:[#allocation2 + $0x58] sm:$0xff]
      %v3375 = vld [vmem:[#allocation2 + $0x60] sm:$0xff]
      %v3376 = vld [vmem:[#allocation2 + $0x68] sm:$0xff]
      %v3377 = vld [vmem:[#allocation2 + $0x70] sm:$0xff]
      %v3378 = vld [vmem:[#allocation2 + $0x78] sm:$0xff]
      %v3379 = vld [vmem:[#allocation2 + $0x80] sm:$0xff]
      %v3380 = vld [vmem:[#allocation2 + $0x88] sm:$0xff]
      %v3381 = vld [vmem:[#allocation2 + $0x90] sm:$0xff]
      %v3382 = vld [vmem:[#allocation2 + $0x98] sm:$0xff]
      %s3383 = scalar_lea.vmem %s4, 768
      %v3384 = vld [vmem:[%s3383] sm:$0xff]
      %v3385 = vld [vmem:[%s3383 + $0x8] sm:$0xff]
      %v3386 = vld [vmem:[%s3383 + $0x10] sm:$0xff]
      %v3387 = vld [vmem:[%s3383 + $0x18] sm:$0xff]
      %v3388 = vld [vmem:[%s3383 + $0x20] sm:$0xff]
      %v3389 = vld [vmem:[%s3383 + $0x28] sm:$0xff]
      %v3390 = vld [vmem:[%s3383 + $0x30] sm:$0xff]
      %v3391 = vld [vmem:[%s3383 + $0x38] sm:$0xff]
      %v3392 = vld [vmem:[%s3383 + $0x40] sm:$0xff]
      %v3393 = vld [vmem:[%s3383 + $0x48] sm:$0xff]
      %v3394 = vld [vmem:[%s3383 + $0x50] sm:$0xff]
      %v3395 = vld [vmem:[%s3383 + $0x58] sm:$0xff]
      %v3396 = vld [vmem:[%s3383 + $0x60] sm:$0xff]
      %v3397 = vld [vmem:[%s3383 + $0x68] sm:$0xff]
      %v3398 = vld [vmem:[%s3383 + $0x70] sm:$0xff]
      %v3399 = vld [vmem:[%s3383 + $0x78] sm:$0xff]
      %3400 = vmatprep.subr.mxu0 0.0
      %3401 = vmatpush1.msra.mxu0 %v3399
      %3402 = vmatprep.subr.mxu0 0.0
      %3403 = vmatpush1.msra.mxu0 %v3398
      %3404 = vmatprep.subr.mxu0 0.0
      %3405 = vmatpush1.msra.mxu0 %v3397
      %3406 = vmatprep.subr.mxu0 0.0
      %3407 = vmatpush1.msra.mxu0 %v3396
      %3408 = vmatprep.subr.mxu0 0.0
      %3409 = vmatpush1.msra.mxu0 %v3395
      %3410 = vmatprep.subr.mxu0 0.0
      %3411 = vmatpush1.msra.mxu0 %v3394
      %3412 = vmatprep.subr.mxu0 0.0
      %3413 = vmatpush1.msra.mxu0 %v3393
      %3414 = vmatprep.subr.mxu0 0.0
      %3415 = vmatpush1.msra.mxu0 %v3392
      %3416 = vmatprep.subr.mxu0 0.0
      %3417 = vmatpush1.msra.mxu0 %v3391
      %3418 = vmatprep.subr.mxu0 0.0
      %3419 = vmatpush1.msra.mxu0 %v3390
      %3420 = vmatprep.subr.mxu0 0.0
      %3421 = vmatpush1.msra.mxu0 %v3389
      %3422 = vmatprep.subr.mxu0 0.0
      %3423 = vmatpush1.msra.mxu0 %v3388
      %3424 = vmatprep.subr.mxu0 0.0
      %3425 = vmatpush1.msra.mxu0 %v3387
      %3426 = vmatprep.subr.mxu0 0.0
      %3427 = vmatpush1.msra.mxu0 %v3386
      %3428 = vmatprep.subr.mxu0 0.0
      %3429 = vmatpush1.msra.mxu0 %v3385
      %3430 = vmatprep.subr.mxu0 0.0
      %3431 = vmatpush1.msra.mxu0 %v3384
      %3432 = vmatprep.subr.mxu0 0.0
      %3433 = vmatpush2.msra.mxu0 0.0
      %3434 = vmatprep.subr.mxu0 0.0
      %3435 = vmatpush2.msra.mxu0 0.0
      %3436 = vmatprep.subr.mxu0 0.0
      %3437 = vmatpush2.msra.mxu0 0.0
      %3438 = vmatprep.subr.mxu0 0.0
      %3439 = vmatpush2.msra.mxu0 0.0
      %3440 = vmatprep.subr.mxu0 0.0
      %3441 = vmatpush2.msra.mxu0 0.0
      %3442 = vmatprep.subr.mxu0 0.0
      %3443 = vmatpush2.msra.mxu0 0.0
      %3444 = vmatprep.subr.mxu0 0.0
      %3445 = vmatpush2.msra.mxu0 0.0
      %3446 = vmatprep.subr.mxu0 0.0
      %3447 = vmatpush2.msra.mxu0 0.0
      %3448 = vmatprep.subr.mxu0 0.0
      %3449 = vmatpush2.msra.mxu0 0.0
      %3450 = vmatprep.subr.mxu0 0.0
      %3451 = vmatpush2.msra.mxu0 0.0
      %3452 = vmatprep.subr.mxu0 0.0
      %3453 = vmatpush2.msra.mxu0 0.0
      %3454 = vmatprep.subr.mxu0 0.0
      %3455 = vmatpush2.msra.mxu0 0.0
      %3456 = vmatprep.subr.mxu0 0.0
      %3457 = vmatpush2.msra.mxu0 0.0
      %3458 = vmatprep.subr.mxu0 0.0
      %3459 = vmatpush2.msra.mxu0 0.0
      %3460 = vmatprep.subr.mxu0 0.0
      %3461 = vmatpush2.msra.mxu0 0.0
      %3462 = vmatprep.subr.mxu0 0.0
      %3463 = vmatpush2.msra.mxu0 0.0
      %3464 = vmatprep.mubr.f32.mxu0 0.0
      %3465 = vmatmul.mubr.f32.gmra.mxu0 %v3367
      %v3466 = vpop.f32.mrf.mxu0
      %v3467 = vadd.f32 0.0, %v3466
      %v3468 = vpop.f32.mrf.mxu0
      %3469 = vmatprep.mubr.f32.mxu0 0.0
      %3470 = vmatmul.mubr.f32.gmra.mxu0 %v3368
      %v3471 = vpop.f32.mrf.mxu0
      %v3472 = vadd.f32 0.0, %v3471
      %v3473 = vpop.f32.mrf.mxu0
      %3474 = vmatprep.mubr.f32.mxu0 0.0
      %3475 = vmatmul.mubr.f32.gmra.mxu0 %v3369
      %v3476 = vpop.f32.mrf.mxu0
      %v3477 = vadd.f32 0.0, %v3476
      %v3478 = vpop.f32.mrf.mxu0
      %3479 = vmatprep.mubr.f32.mxu0 0.0
      %3480 = vmatmul.mubr.f32.gmra.mxu0 %v3370
      %v3481 = vpop.f32.mrf.mxu0
      %v3482 = vadd.f32 0.0, %v3481
      %v3483 = vpop.f32.mrf.mxu0
      %3484 = vmatprep.mubr.f32.mxu0 0.0
      %3485 = vmatmul.mubr.f32.gmra.mxu0 %v3371
      %v3486 = vpop.f32.mrf.mxu0
      %v3487 = vadd.f32 0.0, %v3486
      %v3488 = vpop.f32.mrf.mxu0
      %3489 = vmatprep.mubr.f32.mxu0 0.0
      %3490 = vmatmul.mubr.f32.gmra.mxu0 %v3372
      %v3491 = vpop.f32.mrf.mxu0
      %v3492 = vadd.f32 0.0, %v3491
      %v3493 = vpop.f32.mrf.mxu0
      %3494 = vmatprep.mubr.f32.mxu0 0.0
      %3495 = vmatmul.mubr.f32.gmra.mxu0 %v3373
      %v3496 = vpop.f32.mrf.mxu0
      %v3497 = vadd.f32 0.0, %v3496
      %v3498 = vpop.f32.mrf.mxu0
      %3499 = vmatprep.mubr.f32.mxu0 0.0
      %3500 = vmatmul.mubr.f32.gmra.mxu0 %v3374
      %v3501 = vpop.f32.mrf.mxu0
      %v3502 = vadd.f32 0.0, %v3501
      %v3503 = vpop.f32.mrf.mxu0
      %3504 = vmatprep.mubr.f32.mxu0 0.0
      %3505 = vmatmul.mubr.f32.gmra.mxu0 %v3375
      %v3506 = vpop.f32.mrf.mxu0
      %v3507 = vadd.f32 0.0, %v3506
      %v3508 = vpop.f32.mrf.mxu0
      %3509 = vmatprep.mubr.f32.mxu0 0.0
      %3510 = vmatmul.mubr.f32.gmra.mxu0 %v3376
      %v3511 = vpop.f32.mrf.mxu0
      %v3512 = vadd.f32 0.0, %v3511
      %v3513 = vpop.f32.mrf.mxu0
      %3514 = vmatprep.mubr.f32.mxu0 0.0
      %3515 = vmatmul.mubr.f32.gmra.mxu0 %v3377
      %v3516 = vpop.f32.mrf.mxu0
      %v3517 = vadd.f32 0.0, %v3516
      %v3518 = vpop.f32.mrf.mxu0
      %3519 = vmatprep.mubr.f32.mxu0 0.0
      %3520 = vmatmul.mubr.f32.gmra.mxu0 %v3378
      %v3521 = vpop.f32.mrf.mxu0
      %v3522 = vadd.f32 0.0, %v3521
      %v3523 = vpop.f32.mrf.mxu0
      %3524 = vmatprep.mubr.f32.mxu0 0.0
      %3525 = vmatmul.mubr.f32.gmra.mxu0 %v3379
      %v3526 = vpop.f32.mrf.mxu0
      %v3527 = vadd.f32 0.0, %v3526
      %v3528 = vpop.f32.mrf.mxu0
      %3529 = vmatprep.mubr.f32.mxu0 0.0
      %3530 = vmatmul.mubr.f32.gmra.mxu0 %v3380
      %v3531 = vpop.f32.mrf.mxu0
      %v3532 = vadd.f32 0.0, %v3531
      %v3533 = vpop.f32.mrf.mxu0
      %3534 = vmatprep.mubr.f32.mxu0 0.0
      %3535 = vmatmul.mubr.f32.gmra.mxu0 %v3381
      %v3536 = vpop.f32.mrf.mxu0
      %v3537 = vadd.f32 0.0, %v3536
      %v3538 = vpop.f32.mrf.mxu0
      %3539 = vmatprep.mubr.f32.mxu0 0.0
      %3540 = vmatmul.mubr.f32.gmra.mxu0 %v3382
      %v3541 = vpop.f32.mrf.mxu0
      %v3542 = vadd.f32 0.0, %v3541
      %v3543 = vpop.f32.mrf.mxu0
      %3544 = vdwg.mxu0
      %v3545 = vadd.f32 %v3351, %v3467
      %v3546 = vadd.f32 %v3352, %v3472
      %v3547 = vadd.f32 %v3353, %v3477
      %v3548 = vadd.f32 %v3354, %v3482
      %v3549 = vadd.f32 %v3355, %v3487
      %v3550 = vadd.f32 %v3356, %v3492
      %v3551 = vadd.f32 %v3357, %v3497
      %v3552 = vadd.f32 %v3358, %v3502
      %v3553 = vadd.f32 %v3359, %v3507
      %v3554 = vadd.f32 %v3360, %v3512
      %v3555 = vadd.f32 %v3361, %v3517
      %v3556 = vadd.f32 %v3362, %v3522
      %v3557 = vadd.f32 %v3363, %v3527
      %v3558 = vadd.f32 %v3364, %v3532
      %v3559 = vadd.f32 %v3365, %v3537
      %v3560 = vadd.f32 %v3366, %v3542
      %v3561 = vld [vmem:[#allocation2 + $0x21] sm:$0xff]
      %v3562 = vld [vmem:[#allocation2 + $0x29] sm:$0xff]
      %v3563 = vld [vmem:[#allocation2 + $0x31] sm:$0xff]
      %v3564 = vld [vmem:[#allocation2 + $0x39] sm:$0xff]
      %v3565 = vld [vmem:[#allocation2 + $0x41] sm:$0xff]
      %v3566 = vld [vmem:[#allocation2 + $0x49] sm:$0xff]
      %v3567 = vld [vmem:[#allocation2 + $0x51] sm:$0xff]
      %v3568 = vld [vmem:[#allocation2 + $0x59] sm:$0xff]
      %v3569 = vld [vmem:[#allocation2 + $0x61] sm:$0xff]
      %v3570 = vld [vmem:[#allocation2 + $0x69] sm:$0xff]
      %v3571 = vld [vmem:[#allocation2 + $0x71] sm:$0xff]
      %v3572 = vld [vmem:[#allocation2 + $0x79] sm:$0xff]
      %v3573 = vld [vmem:[#allocation2 + $0x81] sm:$0xff]
      %v3574 = vld [vmem:[#allocation2 + $0x89] sm:$0xff]
      %v3575 = vld [vmem:[#allocation2 + $0x91] sm:$0xff]
      %v3576 = vld [vmem:[#allocation2 + $0x99] sm:$0xff]
      %s3577 = scalar_lea.vmem %s4, 896
      %v3578 = vld [vmem:[%s3577] sm:$0xff]
      %v3579 = vld [vmem:[%s3577 + $0x8] sm:$0xff]
      %v3580 = vld [vmem:[%s3577 + $0x10] sm:$0xff]
      %v3581 = vld [vmem:[%s3577 + $0x18] sm:$0xff]
      %v3582 = vld [vmem:[%s3577 + $0x20] sm:$0xff]
      %v3583 = vld [vmem:[%s3577 + $0x28] sm:$0xff]
      %v3584 = vld [vmem:[%s3577 + $0x30] sm:$0xff]
      %v3585 = vld [vmem:[%s3577 + $0x38] sm:$0xff]
      %v3586 = vld [vmem:[%s3577 + $0x40] sm:$0xff]
      %v3587 = vld [vmem:[%s3577 + $0x48] sm:$0xff]
      %v3588 = vld [vmem:[%s3577 + $0x50] sm:$0xff]
      %v3589 = vld [vmem:[%s3577 + $0x58] sm:$0xff]
      %v3590 = vld [vmem:[%s3577 + $0x60] sm:$0xff]
      %v3591 = vld [vmem:[%s3577 + $0x68] sm:$0xff]
      %v3592 = vld [vmem:[%s3577 + $0x70] sm:$0xff]
      %v3593 = vld [vmem:[%s3577 + $0x78] sm:$0xff]
      %3594 = vmatprep.subr.mxu0 0.0
      %3595 = vmatpush1.msra.mxu0 %v3593
      %3596 = vmatprep.subr.mxu0 0.0
      %3597 = vmatpush1.msra.mxu0 %v3592
      %3598 = vmatprep.subr.mxu0 0.0
      %3599 = vmatpush1.msra.mxu0 %v3591
      %3600 = vmatprep.subr.mxu0 0.0
      %3601 = vmatpush1.msra.mxu0 %v3590
      %3602 = vmatprep.subr.mxu0 0.0
      %3603 = vmatpush1.msra.mxu0 %v3589
      %3604 = vmatprep.subr.mxu0 0.0
      %3605 = vmatpush1.msra.mxu0 %v3588
      %3606 = vmatprep.subr.mxu0 0.0
      %3607 = vmatpush1.msra.mxu0 %v3587
      %3608 = vmatprep.subr.mxu0 0.0
      %3609 = vmatpush1.msra.mxu0 %v3586
      %3610 = vmatprep.subr.mxu0 0.0
      %3611 = vmatpush1.msra.mxu0 %v3585
      %3612 = vmatprep.subr.mxu0 0.0
      %3613 = vmatpush1.msra.mxu0 %v3584
      %3614 = vmatprep.subr.mxu0 0.0
      %3615 = vmatpush1.msra.mxu0 %v3583
      %3616 = vmatprep.subr.mxu0 0.0
      %3617 = vmatpush1.msra.mxu0 %v3582
      %3618 = vmatprep.subr.mxu0 0.0
      %3619 = vmatpush1.msra.mxu0 %v3581
      %3620 = vmatprep.subr.mxu0 0.0
      %3621 = vmatpush1.msra.mxu0 %v3580
      %3622 = vmatprep.subr.mxu0 0.0
      %3623 = vmatpush1.msra.mxu0 %v3579
      %3624 = vmatprep.subr.mxu0 0.0
      %3625 = vmatpush1.msra.mxu0 %v3578
      %3626 = vmatprep.subr.mxu0 0.0
      %3627 = vmatpush2.msra.mxu0 0.0
      %3628 = vmatprep.subr.mxu0 0.0
      %3629 = vmatpush2.msra.mxu0 0.0
      %3630 = vmatprep.subr.mxu0 0.0
      %3631 = vmatpush2.msra.mxu0 0.0
      %3632 = vmatprep.subr.mxu0 0.0
      %3633 = vmatpush2.msra.mxu0 0.0
      %3634 = vmatprep.subr.mxu0 0.0
      %3635 = vmatpush2.msra.mxu0 0.0
      %3636 = vmatprep.subr.mxu0 0.0
      %3637 = vmatpush2.msra.mxu0 0.0
      %3638 = vmatprep.subr.mxu0 0.0
      %3639 = vmatpush2.msra.mxu0 0.0
      %3640 = vmatprep.subr.mxu0 0.0
      %3641 = vmatpush2.msra.mxu0 0.0
      %3642 = vmatprep.subr.mxu0 0.0
      %3643 = vmatpush2.msra.mxu0 0.0
      %3644 = vmatprep.subr.mxu0 0.0
      %3645 = vmatpush2.msra.mxu0 0.0
      %3646 = vmatprep.subr.mxu0 0.0
      %3647 = vmatpush2.msra.mxu0 0.0
      %3648 = vmatprep.subr.mxu0 0.0
      %3649 = vmatpush2.msra.mxu0 0.0
      %3650 = vmatprep.subr.mxu0 0.0
      %3651 = vmatpush2.msra.mxu0 0.0
      %3652 = vmatprep.subr.mxu0 0.0
      %3653 = vmatpush2.msra.mxu0 0.0
      %3654 = vmatprep.subr.mxu0 0.0
      %3655 = vmatpush2.msra.mxu0 0.0
      %3656 = vmatprep.subr.mxu0 0.0
      %3657 = vmatpush2.msra.mxu0 0.0
      %3658 = vmatprep.mubr.f32.mxu0 0.0
      %3659 = vmatmul.mubr.f32.gmra.mxu0 %v3561
      %v3660 = vpop.f32.mrf.mxu0
      %v3661 = vadd.f32 0.0, %v3660
      %v3662 = vpop.f32.mrf.mxu0
      %3663 = vmatprep.mubr.f32.mxu0 0.0
      %3664 = vmatmul.mubr.f32.gmra.mxu0 %v3562
      %v3665 = vpop.f32.mrf.mxu0
      %v3666 = vadd.f32 0.0, %v3665
      %v3667 = vpop.f32.mrf.mxu0
      %3668 = vmatprep.mubr.f32.mxu0 0.0
      %3669 = vmatmul.mubr.f32.gmra.mxu0 %v3563
      %v3670 = vpop.f32.mrf.mxu0
      %v3671 = vadd.f32 0.0, %v3670
      %v3672 = vpop.f32.mrf.mxu0
      %3673 = vmatprep.mubr.f32.mxu0 0.0
      %3674 = vmatmul.mubr.f32.gmra.mxu0 %v3564
      %v3675 = vpop.f32.mrf.mxu0
      %v3676 = vadd.f32 0.0, %v3675
      %v3677 = vpop.f32.mrf.mxu0
      %3678 = vmatprep.mubr.f32.mxu0 0.0
      %3679 = vmatmul.mubr.f32.gmra.mxu0 %v3565
      %v3680 = vpop.f32.mrf.mxu0
      %v3681 = vadd.f32 0.0, %v3680
      %v3682 = vpop.f32.mrf.mxu0
      %3683 = vmatprep.mubr.f32.mxu0 0.0
      %3684 = vmatmul.mubr.f32.gmra.mxu0 %v3566
      %v3685 = vpop.f32.mrf.mxu0
      %v3686 = vadd.f32 0.0, %v3685
      %v3687 = vpop.f32.mrf.mxu0
      %3688 = vmatprep.mubr.f32.mxu0 0.0
      %3689 = vmatmul.mubr.f32.gmra.mxu0 %v3567
      %v3690 = vpop.f32.mrf.mxu0
      %v3691 = vadd.f32 0.0, %v3690
      %v3692 = vpop.f32.mrf.mxu0
      %3693 = vmatprep.mubr.f32.mxu0 0.0
      %3694 = vmatmul.mubr.f32.gmra.mxu0 %v3568
      %v3695 = vpop.f32.mrf.mxu0
      %v3696 = vadd.f32 0.0, %v3695
      %v3697 = vpop.f32.mrf.mxu0
      %3698 = vmatprep.mubr.f32.mxu0 0.0
      %3699 = vmatmul.mubr.f32.gmra.mxu0 %v3569
      %v3700 = vpop.f32.mrf.mxu0
      %v3701 = vadd.f32 0.0, %v3700
      %v3702 = vpop.f32.mrf.mxu0
      %3703 = vmatprep.mubr.f32.mxu0 0.0
      %3704 = vmatmul.mubr.f32.gmra.mxu0 %v3570
      %v3705 = vpop.f32.mrf.mxu0
      %v3706 = vadd.f32 0.0, %v3705
      %v3707 = vpop.f32.mrf.mxu0
      %3708 = vmatprep.mubr.f32.mxu0 0.0
      %3709 = vmatmul.mubr.f32.gmra.mxu0 %v3571
      %v3710 = vpop.f32.mrf.mxu0
      %v3711 = vadd.f32 0.0, %v3710
      %v3712 = vpop.f32.mrf.mxu0
      %3713 = vmatprep.mubr.f32.mxu0 0.0
      %3714 = vmatmul.mubr.f32.gmra.mxu0 %v3572
      %v3715 = vpop.f32.mrf.mxu0
      %v3716 = vadd.f32 0.0, %v3715
      %v3717 = vpop.f32.mrf.mxu0
      %3718 = vmatprep.mubr.f32.mxu0 0.0
      %3719 = vmatmul.mubr.f32.gmra.mxu0 %v3573
      %v3720 = vpop.f32.mrf.mxu0
      %v3721 = vadd.f32 0.0, %v3720
      %v3722 = vpop.f32.mrf.mxu0
      %3723 = vmatprep.mubr.f32.mxu0 0.0
      %3724 = vmatmul.mubr.f32.gmra.mxu0 %v3574
      %v3725 = vpop.f32.mrf.mxu0
      %v3726 = vadd.f32 0.0, %v3725
      %v3727 = vpop.f32.mrf.mxu0
      %3728 = vmatprep.mubr.f32.mxu0 0.0
      %3729 = vmatmul.mubr.f32.gmra.mxu0 %v3575
      %v3730 = vpop.f32.mrf.mxu0
      %v3731 = vadd.f32 0.0, %v3730
      %v3732 = vpop.f32.mrf.mxu0
      %3733 = vmatprep.mubr.f32.mxu0 0.0
      %3734 = vmatmul.mubr.f32.gmra.mxu0 %v3576
      %v3735 = vpop.f32.mrf.mxu0
      %v3736 = vadd.f32 0.0, %v3735
      %v3737 = vpop.f32.mrf.mxu0
      %3738 = vdwg.mxu0
      %v3739 = vadd.f32 %v3545, %v3661
      %v3740 = vadd.f32 %v3546, %v3666
      %v3741 = vadd.f32 %v3547, %v3671
      %v3742 = vadd.f32 %v3548, %v3676
      %v3743 = vadd.f32 %v3549, %v3681
      %v3744 = vadd.f32 %v3550, %v3686
      %v3745 = vadd.f32 %v3551, %v3691
      %v3746 = vadd.f32 %v3552, %v3696
      %v3747 = vadd.f32 %v3553, %v3701
      %v3748 = vadd.f32 %v3554, %v3706
      %v3749 = vadd.f32 %v3555, %v3711
      %v3750 = vadd.f32 %v3556, %v3716
      %v3751 = vadd.f32 %v3557, %v3721
      %v3752 = vadd.f32 %v3558, %v3726
      %v3753 = vadd.f32 %v3559, %v3731
      %v3754 = vadd.f32 %v3560, %v3736
      %v3755 = vld [vmem:[#allocation2 + $0x22] sm:$0xff]
      %v3756 = vld [vmem:[#allocation2 + $0x2a] sm:$0xff]
      %v3757 = vld [vmem:[#allocation2 + $0x32] sm:$0xff]
      %v3758 = vld [vmem:[#allocation2 + $0x3a] sm:$0xff]
      %v3759 = vld [vmem:[#allocation2 + $0x42] sm:$0xff]
      %v3760 = vld [vmem:[#allocation2 + $0x4a] sm:$0xff]
      %v3761 = vld [vmem:[#allocation2 + $0x52] sm:$0xff]
      %v3762 = vld [vmem:[#allocation2 + $0x5a] sm:$0xff]
      %v3763 = vld [vmem:[#allocation2 + $0x62] sm:$0xff]
      %v3764 = vld [vmem:[#allocation2 + $0x6a] sm:$0xff]
      %v3765 = vld [vmem:[#allocation2 + $0x72] sm:$0xff]
      %v3766 = vld [vmem:[#allocation2 + $0x7a] sm:$0xff]
      %v3767 = vld [vmem:[#allocation2 + $0x82] sm:$0xff]
      %v3768 = vld [vmem:[#allocation2 + $0x8a] sm:$0xff]
      %v3769 = vld [vmem:[#allocation2 + $0x92] sm:$0xff]
      %v3770 = vld [vmem:[#allocation2 + $0x9a] sm:$0xff]
      %s3771 = scalar_lea.vmem %s4, 1024
      %v3772 = vld [vmem:[%s3771] sm:$0xff]
      %v3773 = vld [vmem:[%s3771 + $0x8] sm:$0xff]
      %v3774 = vld [vmem:[%s3771 + $0x10] sm:$0xff]
      %v3775 = vld [vmem:[%s3771 + $0x18] sm:$0xff]
      %v3776 = vld [vmem:[%s3771 + $0x20] sm:$0xff]
      %v3777 = vld [vmem:[%s3771 + $0x28] sm:$0xff]
      %v3778 = vld [vmem:[%s3771 + $0x30] sm:$0xff]
      %v3779 = vld [vmem:[%s3771 + $0x38] sm:$0xff]
      %v3780 = vld [vmem:[%s3771 + $0x40] sm:$0xff]
      %v3781 = vld [vmem:[%s3771 + $0x48] sm:$0xff]
      %v3782 = vld [vmem:[%s3771 + $0x50] sm:$0xff]
      %v3783 = vld [vmem:[%s3771 + $0x58] sm:$0xff]
      %v3784 = vld [vmem:[%s3771 + $0x60] sm:$0xff]
      %v3785 = vld [vmem:[%s3771 + $0x68] sm:$0xff]
      %v3786 = vld [vmem:[%s3771 + $0x70] sm:$0xff]
      %v3787 = vld [vmem:[%s3771 + $0x78] sm:$0xff]
      %3788 = vmatprep.subr.mxu0 0.0
      %3789 = vmatpush1.msra.mxu0 %v3787
      %3790 = vmatprep.subr.mxu0 0.0
      %3791 = vmatpush1.msra.mxu0 %v3786
      %3792 = vmatprep.subr.mxu0 0.0
      %3793 = vmatpush1.msra.mxu0 %v3785
      %3794 = vmatprep.subr.mxu0 0.0
      %3795 = vmatpush1.msra.mxu0 %v3784
      %3796 = vmatprep.subr.mxu0 0.0
      %3797 = vmatpush1.msra.mxu0 %v3783
      %3798 = vmatprep.subr.mxu0 0.0
      %3799 = vmatpush1.msra.mxu0 %v3782
      %3800 = vmatprep.subr.mxu0 0.0
      %3801 = vmatpush1.msra.mxu0 %v3781
      %3802 = vmatprep.subr.mxu0 0.0
      %3803 = vmatpush1.msra.mxu0 %v3780
      %3804 = vmatprep.subr.mxu0 0.0
      %3805 = vmatpush1.msra.mxu0 %v3779
      %3806 = vmatprep.subr.mxu0 0.0
      %3807 = vmatpush1.msra.mxu0 %v3778
      %3808 = vmatprep.subr.mxu0 0.0
      %3809 = vmatpush1.msra.mxu0 %v3777
      %3810 = vmatprep.subr.mxu0 0.0
      %3811 = vmatpush1.msra.mxu0 %v3776
      %3812 = vmatprep.subr.mxu0 0.0
      %3813 = vmatpush1.msra.mxu0 %v3775
      %3814 = vmatprep.subr.mxu0 0.0
      %3815 = vmatpush1.msra.mxu0 %v3774
      %3816 = vmatprep.subr.mxu0 0.0
      %3817 = vmatpush1.msra.mxu0 %v3773
      %3818 = vmatprep.subr.mxu0 0.0
      %3819 = vmatpush1.msra.mxu0 %v3772
      %3820 = vmatprep.subr.mxu0 0.0
      %3821 = vmatpush2.msra.mxu0 0.0
      %3822 = vmatprep.subr.mxu0 0.0
      %3823 = vmatpush2.msra.mxu0 0.0
      %3824 = vmatprep.subr.mxu0 0.0
      %3825 = vmatpush2.msra.mxu0 0.0
      %3826 = vmatprep.subr.mxu0 0.0
      %3827 = vmatpush2.msra.mxu0 0.0
      %3828 = vmatprep.subr.mxu0 0.0
      %3829 = vmatpush2.msra.mxu0 0.0
      %3830 = vmatprep.subr.mxu0 0.0
      %3831 = vmatpush2.msra.mxu0 0.0
      %3832 = vmatprep.subr.mxu0 0.0
      %3833 = vmatpush2.msra.mxu0 0.0
      %3834 = vmatprep.subr.mxu0 0.0
      %3835 = vmatpush2.msra.mxu0 0.0
      %3836 = vmatprep.subr.mxu0 0.0
      %3837 = vmatpush2.msra.mxu0 0.0
      %3838 = vmatprep.subr.mxu0 0.0
      %3839 = vmatpush2.msra.mxu0 0.0
      %3840 = vmatprep.subr.mxu0 0.0
      %3841 = vmatpush2.msra.mxu0 0.0
      %3842 = vmatprep.subr.mxu0 0.0
      %3843 = vmatpush2.msra.mxu0 0.0
      %3844 = vmatprep.subr.mxu0 0.0
      %3845 = vmatpush2.msra.mxu0 0.0
      %3846 = vmatprep.subr.mxu0 0.0
      %3847 = vmatpush2.msra.mxu0 0.0
      %3848 = vmatprep.subr.mxu0 0.0
      %3849 = vmatpush2.msra.mxu0 0.0
      %3850 = vmatprep.subr.mxu0 0.0
      %3851 = vmatpush2.msra.mxu0 0.0
      %3852 = vmatprep.mubr.f32.mxu0 0.0
      %3853 = vmatmul.mubr.f32.gmra.mxu0 %v3755
      %v3854 = vpop.f32.mrf.mxu0
      %v3855 = vadd.f32 0.0, %v3854
      %v3856 = vpop.f32.mrf.mxu0
      %3857 = vmatprep.mubr.f32.mxu0 0.0
      %3858 = vmatmul.mubr.f32.gmra.mxu0 %v3756
      %v3859 = vpop.f32.mrf.mxu0
      %v3860 = vadd.f32 0.0, %v3859
      %v3861 = vpop.f32.mrf.mxu0
      %3862 = vmatprep.mubr.f32.mxu0 0.0
      %3863 = vmatmul.mubr.f32.gmra.mxu0 %v3757
      %v3864 = vpop.f32.mrf.mxu0
      %v3865 = vadd.f32 0.0, %v3864
      %v3866 = vpop.f32.mrf.mxu0
      %3867 = vmatprep.mubr.f32.mxu0 0.0
      %3868 = vmatmul.mubr.f32.gmra.mxu0 %v3758
      %v3869 = vpop.f32.mrf.mxu0
      %v3870 = vadd.f32 0.0, %v3869
      %v3871 = vpop.f32.mrf.mxu0
      %3872 = vmatprep.mubr.f32.mxu0 0.0
      %3873 = vmatmul.mubr.f32.gmra.mxu0 %v3759
      %v3874 = vpop.f32.mrf.mxu0
      %v3875 = vadd.f32 0.0, %v3874
      %v3876 = vpop.f32.mrf.mxu0
      %3877 = vmatprep.mubr.f32.mxu0 0.0
      %3878 = vmatmul.mubr.f32.gmra.mxu0 %v3760
      %v3879 = vpop.f32.mrf.mxu0
      %v3880 = vadd.f32 0.0, %v3879
      %v3881 = vpop.f32.mrf.mxu0
      %3882 = vmatprep.mubr.f32.mxu0 0.0
      %3883 = vmatmul.mubr.f32.gmra.mxu0 %v3761
      %v3884 = vpop.f32.mrf.mxu0
      %v3885 = vadd.f32 0.0, %v3884
      %v3886 = vpop.f32.mrf.mxu0
      %3887 = vmatprep.mubr.f32.mxu0 0.0
      %3888 = vmatmul.mubr.f32.gmra.mxu0 %v3762
      %v3889 = vpop.f32.mrf.mxu0
      %v3890 = vadd.f32 0.0, %v3889
      %v3891 = vpop.f32.mrf.mxu0
      %3892 = vmatprep.mubr.f32.mxu0 0.0
      %3893 = vmatmul.mubr.f32.gmra.mxu0 %v3763
      %v3894 = vpop.f32.mrf.mxu0
      %v3895 = vadd.f32 0.0, %v3894
      %v3896 = vpop.f32.mrf.mxu0
      %3897 = vmatprep.mubr.f32.mxu0 0.0
      %3898 = vmatmul.mubr.f32.gmra.mxu0 %v3764
      %v3899 = vpop.f32.mrf.mxu0
      %v3900 = vadd.f32 0.0, %v3899
      %v3901 = vpop.f32.mrf.mxu0
      %3902 = vmatprep.mubr.f32.mxu0 0.0
      %3903 = vmatmul.mubr.f32.gmra.mxu0 %v3765
      %v3904 = vpop.f32.mrf.mxu0
      %v3905 = vadd.f32 0.0, %v3904
      %v3906 = vpop.f32.mrf.mxu0
      %3907 = vmatprep.mubr.f32.mxu0 0.0
      %3908 = vmatmul.mubr.f32.gmra.mxu0 %v3766
      %v3909 = vpop.f32.mrf.mxu0
      %v3910 = vadd.f32 0.0, %v3909
      %v3911 = vpop.f32.mrf.mxu0
      %3912 = vmatprep.mubr.f32.mxu0 0.0
      %3913 = vmatmul.mubr.f32.gmra.mxu0 %v3767
      %v3914 = vpop.f32.mrf.mxu0
      %v3915 = vadd.f32 0.0, %v3914
      %v3916 = vpop.f32.mrf.mxu0
      %3917 = vmatprep.mubr.f32.mxu0 0.0
      %3918 = vmatmul.mubr.f32.gmra.mxu0 %v3768
      %v3919 = vpop.f32.mrf.mxu0
      %v3920 = vadd.f32 0.0, %v3919
      %v3921 = vpop.f32.mrf.mxu0
      %3922 = vmatprep.mubr.f32.mxu0 0.0
      %3923 = vmatmul.mubr.f32.gmra.mxu0 %v3769
      %v3924 = vpop.f32.mrf.mxu0
      %v3925 = vadd.f32 0.0, %v3924
      %v3926 = vpop.f32.mrf.mxu0
      %3927 = vmatprep.mubr.f32.mxu0 0.0
      %3928 = vmatmul.mubr.f32.gmra.mxu0 %v3770
      %v3929 = vpop.f32.mrf.mxu0
      %v3930 = vadd.f32 0.0, %v3929
      %v3931 = vpop.f32.mrf.mxu0
      %3932 = vdwg.mxu0
      %v3933 = vadd.f32 %v3739, %v3855
      %v3934 = vadd.f32 %v3740, %v3860
      %v3935 = vadd.f32 %v3741, %v3865
      %v3936 = vadd.f32 %v3742, %v3870
      %v3937 = vadd.f32 %v3743, %v3875
      %v3938 = vadd.f32 %v3744, %v3880
      %v3939 = vadd.f32 %v3745, %v3885
      %v3940 = vadd.f32 %v3746, %v3890
      %v3941 = vadd.f32 %v3747, %v3895
      %v3942 = vadd.f32 %v3748, %v3900
      %v3943 = vadd.f32 %v3749, %v3905
      %v3944 = vadd.f32 %v3750, %v3910
      %v3945 = vadd.f32 %v3751, %v3915
      %v3946 = vadd.f32 %v3752, %v3920
      %v3947 = vadd.f32 %v3753, %v3925
      %v3948 = vadd.f32 %v3754, %v3930
      %v3949 = vld [vmem:[%s5] sm:$0x1]
      %v3951 = vlaneseq
      %v3952 = vshrl.u32 %v3951, 7
      %v3953 = vsub.s32 0, %v3952
      %v3954 = vrot.slane %v3949, %v3953
      %v3956 = vadd.f32 %v3933, %v3954
      %v3957 = vadd.f32 %v3934, %v3954
      %v3958 = vadd.f32 %v3935, %v3954
      %v3959 = vadd.f32 %v3936, %v3954
      %v3960 = vadd.f32 %v3937, %v3954
      %v3961 = vadd.f32 %v3938, %v3954
      %v3962 = vadd.f32 %v3939, %v3954
      %v3963 = vadd.f32 %v3940, %v3954
      %v3964 = vadd.f32 %v3941, %v3954
      %v3965 = vadd.f32 %v3942, %v3954
      %v3966 = vadd.f32 %v3943, %v3954
      %v3967 = vadd.f32 %v3944, %v3954
      %v3968 = vadd.f32 %v3945, %v3954
      %v3969 = vadd.f32 %v3946, %v3954
      %v3970 = vadd.f32 %v3947, %v3954
      %v3971 = vadd.f32 %v3948, %v3954
      %v3972 = vmax.f32 %v3956, 0.0
      %v3973 = vmax.f32 %v3957, 0.0
      %v3974 = vmax.f32 %v3958, 0.0
      %v3975 = vmax.f32 %v3959, 0.0
      %v3976 = vmax.f32 %v3960, 0.0
      %v3977 = vmax.f32 %v3961, 0.0
      %v3978 = vmax.f32 %v3962, 0.0
      %v3979 = vmax.f32 %v3963, 0.0
      %v3980 = vmax.f32 %v3964, 0.0
      %v3981 = vmax.f32 %v3965, 0.0
      %v3982 = vmax.f32 %v3966, 0.0
      %v3983 = vmax.f32 %v3967, 0.0
      %v3984 = vmax.f32 %v3968, 0.0
      %v3985 = vmax.f32 %v3969, 0.0
      %v3986 = vmax.f32 %v3970, 0.0
      %v3987 = vmax.f32 %v3971, 0.0
      %v3988 = vld [vmem:[%s6] sm:$0xff]
      %v3989 = vld [vmem:[%s6 + $0x8] sm:$0xff]
      %v3990 = vld [vmem:[%s6 + $0x10] sm:$0xff]
      %v3991 = vld [vmem:[%s6 + $0x18] sm:$0xff]
      %v3992 = vld [vmem:[%s6 + $0x20] sm:$0xff]
      %v3993 = vld [vmem:[%s6 + $0x28] sm:$0xff]
      %v3994 = vld [vmem:[%s6 + $0x30] sm:$0xff]
      %v3995 = vld [vmem:[%s6 + $0x38] sm:$0xff]
      %v3996 = vld [vmem:[%s6 + $0x40] sm:$0xff]
      %v3997 = vld [vmem:[%s6 + $0x48] sm:$0xff]
      %v3998 = vld [vmem:[%s6 + $0x50] sm:$0xff]
      %v3999 = vld [vmem:[%s6 + $0x58] sm:$0xff]
      %v4000 = vld [vmem:[%s6 + $0x60] sm:$0xff]
      %v4001 = vld [vmem:[%s6 + $0x68] sm:$0xff]
      %v4002 = vld [vmem:[%s6 + $0x70] sm:$0xff]
      %v4003 = vld [vmem:[%s6 + $0x78] sm:$0xff]
      %v4004 = vld [vmem:[%s6 + $0x80] sm:$0xff]
      %v4005 = vld [vmem:[%s6 + $0x88] sm:$0xff]
      %v4006 = vld [vmem:[%s6 + $0x90] sm:$0xff]
      %v4007 = vld [vmem:[%s6 + $0x98] sm:$0xff]
      %v4008 = vld [vmem:[%s6 + $0xa0] sm:$0xff]
      %v4009 = vld [vmem:[%s6 + $0xa8] sm:$0xff]
      %v4010 = vld [vmem:[%s6 + $0xb0] sm:$0xff]
      %v4011 = vld [vmem:[%s6 + $0xb8] sm:$0xff]
      %v4012 = vld [vmem:[%s6 + $0xc0] sm:$0xff]
      %v4013 = vld [vmem:[%s6 + $0xc8] sm:$0xff]
      %v4014 = vld [vmem:[%s6 + $0xd0] sm:$0xff]
      %v4015 = vld [vmem:[%s6 + $0xd8] sm:$0xff]
      %v4016 = vld [vmem:[%s6 + $0xe0] sm:$0xff]
      %v4017 = vld [vmem:[%s6 + $0xe8] sm:$0xff]
      %v4018 = vld [vmem:[%s6 + $0xf0] sm:$0xff]
      %v4019 = vld [vmem:[%s6 + $0xf8] sm:$0xff]
      %v4020 = vld [vmem:[%s6 + $0x100] sm:$0xff]
      %v4021 = vld [vmem:[%s6 + $0x108] sm:$0xff]
      %v4022 = vld [vmem:[%s6 + $0x110] sm:$0xff]
      %v4023 = vld [vmem:[%s6 + $0x118] sm:$0xff]
      %v4024 = vld [vmem:[%s6 + $0x120] sm:$0xff]
      %v4025 = vld [vmem:[%s6 + $0x128] sm:$0xff]
      %v4026 = vld [vmem:[%s6 + $0x130] sm:$0xff]
      %v4027 = vld [vmem:[%s6 + $0x138] sm:$0xff]
      %v4028 = vld [vmem:[%s6 + $0x140] sm:$0xff]
      %v4029 = vld [vmem:[%s6 + $0x148] sm:$0xff]
      %v4030 = vld [vmem:[%s6 + $0x150] sm:$0xff]
      %v4031 = vld [vmem:[%s6 + $0x158] sm:$0xff]
      %v4032 = vld [vmem:[%s6 + $0x160] sm:$0xff]
      %v4033 = vld [vmem:[%s6 + $0x168] sm:$0xff]
      %v4034 = vld [vmem:[%s6 + $0x170] sm:$0xff]
      %v4035 = vld [vmem:[%s6 + $0x178] sm:$0xff]
      %v4036 = vld [vmem:[%s6 + $0x180] sm:$0xff]
      %v4037 = vld [vmem:[%s6 + $0x188] sm:$0xff]
      %v4038 = vld [vmem:[%s6 + $0x190] sm:$0xff]
      %v4039 = vld [vmem:[%s6 + $0x198] sm:$0xff]
      %v4040 = vld [vmem:[%s6 + $0x1a0] sm:$0xff]
      %v4041 = vld [vmem:[%s6 + $0x1a8] sm:$0xff]
      %v4042 = vld [vmem:[%s6 + $0x1b0] sm:$0xff]
      %v4043 = vld [vmem:[%s6 + $0x1b8] sm:$0xff]
      %v4044 = vld [vmem:[%s6 + $0x1c0] sm:$0xff]
      %v4045 = vld [vmem:[%s6 + $0x1c8] sm:$0xff]
      %v4046 = vld [vmem:[%s6 + $0x1d0] sm:$0xff]
      %v4047 = vld [vmem:[%s6 + $0x1d8] sm:$0xff]
      %v4048 = vld [vmem:[%s6 + $0x1e0] sm:$0xff]
      %v4049 = vld [vmem:[%s6 + $0x1e8] sm:$0xff]
      %v4050 = vld [vmem:[%s6 + $0x1f0] sm:$0xff]
      %v4051 = vld [vmem:[%s6 + $0x1f8] sm:$0xff]
      %v4052 = vld [vmem:[%s7] sm:$0xf]
      %v4054 = vlaneseq
      %v4055 = vshrl.u32 %v4054, 7
      %v4056 = vsub.s32 0, %v4055
      %v4057 = vrot.slane %v4052, %v4056
      %v4058 = vlaneseq
      %v4059 = vshrl.u32 %v4058, 7
      %v4060 = vsub.s32 1, %v4059
      %v4061 = vrot.slane %v4052, %v4060
      %v4062 = vlaneseq
      %v4063 = vshrl.u32 %v4062, 7
      %v4064 = vsub.s32 2, %v4063
      %v4065 = vrot.slane %v4052, %v4064
      %v4066 = vlaneseq
      %v4067 = vshrl.u32 %v4066, 7
      %v4068 = vsub.s32 3, %v4067
      %v4069 = vrot.slane %v4052, %v4068
      %4074 = vmatprep.subr.mxu0 %v4049
      %4075 = vmatpush1.msra.mxu0 %v4048
      %4076 = vmatprep.subr.mxu0 %v4045
      %4077 = vmatpush1.msra.mxu0 %v4044
      %4078 = vmatprep.subr.mxu0 %v4041
      %4079 = vmatpush1.msra.mxu0 %v4040
      %4080 = vmatprep.subr.mxu0 %v4037
      %4081 = vmatpush1.msra.mxu0 %v4036
      %4082 = vmatprep.subr.mxu0 %v4033
      %4083 = vmatpush1.msra.mxu0 %v4032
      %4084 = vmatprep.subr.mxu0 %v4029
      %4085 = vmatpush1.msra.mxu0 %v4028
      %4086 = vmatprep.subr.mxu0 %v4025
      %4087 = vmatpush1.msra.mxu0 %v4024
      %4088 = vmatprep.subr.mxu0 %v4021
      %4089 = vmatpush1.msra.mxu0 %v4020
      %4090 = vmatprep.subr.mxu0 %v4017
      %4091 = vmatpush1.msra.mxu0 %v4016
      %4092 = vmatprep.subr.mxu0 %v4013
      %4093 = vmatpush1.msra.mxu0 %v4012
      %4094 = vmatprep.subr.mxu0 %v4009
      %4095 = vmatpush1.msra.mxu0 %v4008
      %4096 = vmatprep.subr.mxu0 %v4005
      %4097 = vmatpush1.msra.mxu0 %v4004
      %4098 = vmatprep.subr.mxu0 %v4001
      %4099 = vmatpush1.msra.mxu0 %v4000
      %4100 = vmatprep.subr.mxu0 %v3997
      %4101 = vmatpush1.msra.mxu0 %v3996
      %4102 = vmatprep.subr.mxu0 %v3993
      %4103 = vmatpush1.msra.mxu0 %v3992
      %4104 = vmatprep.subr.mxu0 %v3989
      %4105 = vmatpush1.msra.mxu0 %v3988
      %4106 = vmatprep.subr.mxu0 0.0
      %4107 = vmatpush2.msra.mxu0 0.0
      %4108 = vmatprep.subr.mxu0 0.0
      %4109 = vmatpush2.msra.mxu0 0.0
      %4110 = vmatprep.subr.mxu0 0.0
      %4111 = vmatpush2.msra.mxu0 0.0
      %4112 = vmatprep.subr.mxu0 0.0
      %4113 = vmatpush2.msra.mxu0 0.0
      %4114 = vmatprep.subr.mxu0 0.0
      %4115 = vmatpush2.msra.mxu0 0.0
      %4116 = vmatprep.subr.mxu0 0.0
      %4117 = vmatpush2.msra.mxu0 0.0
      %4118 = vmatprep.subr.mxu0 0.0
      %4119 = vmatpush2.msra.mxu0 0.0
      %4120 = vmatprep.subr.mxu0 0.0
      %4121 = vmatpush2.msra.mxu0 0.0
      %4122 = vmatprep.subr.mxu0 0.0
      %4123 = vmatpush2.msra.mxu0 0.0
      %4124 = vmatprep.subr.mxu0 0.0
      %4125 = vmatpush2.msra.mxu0 0.0
      %4126 = vmatprep.subr.mxu0 0.0
      %4127 = vmatpush2.msra.mxu0 0.0
      %4128 = vmatprep.subr.mxu0 0.0
      %4129 = vmatpush2.msra.mxu0 0.0
      %4130 = vmatprep.subr.mxu0 0.0
      %4131 = vmatpush2.msra.mxu0 0.0
      %4132 = vmatprep.subr.mxu0 0.0
      %4133 = vmatpush2.msra.mxu0 0.0
      %4134 = vmatprep.subr.mxu0 0.0
      %4135 = vmatpush2.msra.mxu0 0.0
      %4136 = vmatprep.subr.mxu0 0.0
      %4137 = vmatpush2.msra.mxu0 0.0
      %4138 = vmatprep.mubr.f32.mxu0 0.0
      %4139 = vmatmul.mubr.f32.gmra.mxu0 %v3972
      %v4140 = vpop.f32.mrf.mxu0
      %v4141 = vadd.f32 %v4057, %v4140
      %v4142 = vpop.f32.mrf.mxu0
      %v4143 = vadd.f32 %v4061, %v4142
      %4144 = vmatprep.mubr.f32.mxu0 0.0
      %4145 = vmatmul.mubr.f32.gmra.mxu0 %v3973
      %v4146 = vpop.f32.mrf.mxu0
      %v4147 = vadd.f32 %v4057, %v4146
      %v4148 = vpop.f32.mrf.mxu0
      %v4149 = vadd.f32 %v4061, %v4148
      %4150 = vmatprep.mubr.f32.mxu0 0.0
      %4151 = vmatmul.mubr.f32.gmra.mxu0 %v3974
      %v4152 = vpop.f32.mrf.mxu0
      %v4153 = vadd.f32 %v4057, %v4152
      %v4154 = vpop.f32.mrf.mxu0
      %v4155 = vadd.f32 %v4061, %v4154
      %4156 = vmatprep.mubr.f32.mxu0 0.0
      %4157 = vmatmul.mubr.f32.gmra.mxu0 %v3975
      %v4158 = vpop.f32.mrf.mxu0
      %v4159 = vadd.f32 %v4057, %v4158
      %v4160 = vpop.f32.mrf.mxu0
      %v4161 = vadd.f32 %v4061, %v4160
      %4162 = vmatprep.mubr.f32.mxu0 0.0
      %4163 = vmatmul.mubr.f32.gmra.mxu0 %v3976
      %v4164 = vpop.f32.mrf.mxu0
      %v4165 = vadd.f32 %v4057, %v4164
      %v4166 = vpop.f32.mrf.mxu0
      %v4167 = vadd.f32 %v4061, %v4166
      %4168 = vmatprep.mubr.f32.mxu0 0.0
      %4169 = vmatmul.mubr.f32.gmra.mxu0 %v3977
      %v4170 = vpop.f32.mrf.mxu0
      %v4171 = vadd.f32 %v4057, %v4170
      %v4172 = vpop.f32.mrf.mxu0
      %v4173 = vadd.f32 %v4061, %v4172
      %4174 = vmatprep.mubr.f32.mxu0 0.0
      %4175 = vmatmul.mubr.f32.gmra.mxu0 %v3978
      %v4176 = vpop.f32.mrf.mxu0
      %v4177 = vadd.f32 %v4057, %v4176
      %v4178 = vpop.f32.mrf.mxu0
      %v4179 = vadd.f32 %v4061, %v4178
      %4180 = vmatprep.mubr.f32.mxu0 0.0
      %4181 = vmatmul.mubr.f32.gmra.mxu0 %v3979
      %v4182 = vpop.f32.mrf.mxu0
      %v4183 = vadd.f32 %v4057, %v4182
      %v4184 = vpop.f32.mrf.mxu0
      %v4185 = vadd.f32 %v4061, %v4184
      %4186 = vmatprep.mubr.f32.mxu0 0.0
      %4187 = vmatmul.mubr.f32.gmra.mxu0 %v3980
      %v4188 = vpop.f32.mrf.mxu0
      %v4189 = vadd.f32 %v4057, %v4188
      %v4190 = vpop.f32.mrf.mxu0
      %v4191 = vadd.f32 %v4061, %v4190
      %4192 = vmatprep.mubr.f32.mxu0 0.0
      %4193 = vmatmul.mubr.f32.gmra.mxu0 %v3981
      %v4194 = vpop.f32.mrf.mxu0
      %v4195 = vadd.f32 %v4057, %v4194
      %v4196 = vpop.f32.mrf.mxu0
      %v4197 = vadd.f32 %v4061, %v4196
      %4198 = vmatprep.mubr.f32.mxu0 0.0
      %4199 = vmatmul.mubr.f32.gmra.mxu0 %v3982
      %v4200 = vpop.f32.mrf.mxu0
      %v4201 = vadd.f32 %v4057, %v4200
      %v4202 = vpop.f32.mrf.mxu0
      %v4203 = vadd.f32 %v4061, %v4202
      %4204 = vmatprep.mubr.f32.mxu0 0.0
      %4205 = vmatmul.mubr.f32.gmra.mxu0 %v3983
      %v4206 = vpop.f32.mrf.mxu0
      %v4207 = vadd.f32 %v4057, %v4206
      %v4208 = vpop.f32.mrf.mxu0
      %v4209 = vadd.f32 %v4061, %v4208
      %4210 = vmatprep.mubr.f32.mxu0 0.0
      %4211 = vmatmul.mubr.f32.gmra.mxu0 %v3984
      %v4212 = vpop.f32.mrf.mxu0
      %v4213 = vadd.f32 %v4057, %v4212
      %v4214 = vpop.f32.mrf.mxu0
      %v4215 = vadd.f32 %v4061, %v4214
      %4216 = vmatprep.mubr.f32.mxu0 0.0
      %4217 = vmatmul.mubr.f32.gmra.mxu0 %v3985
      %v4218 = vpop.f32.mrf.mxu0
      %v4219 = vadd.f32 %v4057, %v4218
      %v4220 = vpop.f32.mrf.mxu0
      %v4221 = vadd.f32 %v4061, %v4220
      %4222 = vmatprep.mubr.f32.mxu0 0.0
      %4223 = vmatmul.mubr.f32.gmra.mxu0 %v3986
      %v4224 = vpop.f32.mrf.mxu0
      %v4225 = vadd.f32 %v4057, %v4224
      %v4226 = vpop.f32.mrf.mxu0
      %v4227 = vadd.f32 %v4061, %v4226
      %4228 = vmatprep.mubr.f32.mxu0 0.0
      %4229 = vmatmul.mubr.f32.gmra.mxu0 %v3987
      %v4230 = vpop.f32.mrf.mxu0
      %v4231 = vadd.f32 %v4057, %v4230
      %v4232 = vpop.f32.mrf.mxu0
      %v4233 = vadd.f32 %v4061, %v4232
      %4234 = vdwg.mxu0
      %4235 = vmatprep.subr.mxu0 %v4051
      %4236 = vmatpush1.msra.mxu0 %v4050
      %4237 = vmatprep.subr.mxu0 %v4047
      %4238 = vmatpush1.msra.mxu0 %v4046
      %4239 = vmatprep.subr.mxu0 %v4043
      %4240 = vmatpush1.msra.mxu0 %v4042
      %4241 = vmatprep.subr.mxu0 %v4039
      %4242 = vmatpush1.msra.mxu0 %v4038
      %4243 = vmatprep.subr.mxu0 %v4035
      %4244 = vmatpush1.msra.mxu0 %v4034
      %4245 = vmatprep.subr.mxu0 %v4031
      %4246 = vmatpush1.msra.mxu0 %v4030
      %4247 = vmatprep.subr.mxu0 %v4027
      %4248 = vmatpush1.msra.mxu0 %v4026
      %4249 = vmatprep.subr.mxu0 %v4023
      %4250 = vmatpush1.msra.mxu0 %v4022
      %4251 = vmatprep.subr.mxu0 %v4019
      %4252 = vmatpush1.msra.mxu0 %v4018
      %4253 = vmatprep.subr.mxu0 %v4015
      %4254 = vmatpush1.msra.mxu0 %v4014
      %4255 = vmatprep.subr.mxu0 %v4011
      %4256 = vmatpush1.msra.mxu0 %v4010
      %4257 = vmatprep.subr.mxu0 %v4007
      %4258 = vmatpush1.msra.mxu0 %v4006
      %4259 = vmatprep.subr.mxu0 %v4003
      %4260 = vmatpush1.msra.mxu0 %v4002
      %4261 = vmatprep.subr.mxu0 %v3999
      %4262 = vmatpush1.msra.mxu0 %v3998
      %4263 = vmatprep.subr.mxu0 %v3995
      %4264 = vmatpush1.msra.mxu0 %v3994
      %4265 = vmatprep.subr.mxu0 %v3991
      %4266 = vmatpush1.msra.mxu0 %v3990
      %4267 = vmatprep.subr.mxu0 0.0
      %4268 = vmatpush2.msra.mxu0 0.0
      %4269 = vmatprep.subr.mxu0 0.0
      %4270 = vmatpush2.msra.mxu0 0.0
      %4271 = vmatprep.subr.mxu0 0.0
      %4272 = vmatpush2.msra.mxu0 0.0
      %4273 = vmatprep.subr.mxu0 0.0
      %4274 = vmatpush2.msra.mxu0 0.0
      %4275 = vmatprep.subr.mxu0 0.0
      %4276 = vmatpush2.msra.mxu0 0.0
      %4277 = vmatprep.subr.mxu0 0.0
      %4278 = vmatpush2.msra.mxu0 0.0
      %4279 = vmatprep.subr.mxu0 0.0
      %4280 = vmatpush2.msra.mxu0 0.0
      %4281 = vmatprep.subr.mxu0 0.0
      %4282 = vmatpush2.msra.mxu0 0.0
      %4283 = vmatprep.subr.mxu0 0.0
      %4284 = vmatpush2.msra.mxu0 0.0
      %4285 = vmatprep.subr.mxu0 0.0
      %4286 = vmatpush2.msra.mxu0 0.0
      %4287 = vmatprep.subr.mxu0 0.0
      %4288 = vmatpush2.msra.mxu0 0.0
      %4289 = vmatprep.subr.mxu0 0.0
      %4290 = vmatpush2.msra.mxu0 0.0
      %4291 = vmatprep.subr.mxu0 0.0
      %4292 = vmatpush2.msra.mxu0 0.0
      %4293 = vmatprep.subr.mxu0 0.0
      %4294 = vmatpush2.msra.mxu0 0.0
      %4295 = vmatprep.subr.mxu0 0.0
      %4296 = vmatpush2.msra.mxu0 0.0
      %4297 = vmatprep.subr.mxu0 0.0
      %4298 = vmatpush2.msra.mxu0 0.0
      %4299 = vmatprep.mubr.f32.mxu0 0.0
      %4300 = vmatmul.mubr.f32.gmra.mxu0 %v3972
      %v4301 = vpop.f32.mrf.mxu0
      %v4302 = vadd.f32 %v4065, %v4301
      %v4303 = vpop.f32.mrf.mxu0
      %v4304 = vadd.f32 %v4069, %v4303
      %4305 = vmatprep.mubr.f32.mxu0 0.0
      %4306 = vmatmul.mubr.f32.gmra.mxu0 %v3973
      %v4307 = vpop.f32.mrf.mxu0
      %v4308 = vadd.f32 %v4065, %v4307
      %v4309 = vpop.f32.mrf.mxu0
      %v4310 = vadd.f32 %v4069, %v4309
      %4311 = vmatprep.mubr.f32.mxu0 0.0
      %4312 = vmatmul.mubr.f32.gmra.mxu0 %v3974
      %v4313 = vpop.f32.mrf.mxu0
      %v4314 = vadd.f32 %v4065, %v4313
      %v4315 = vpop.f32.mrf.mxu0
      %v4316 = vadd.f32 %v4069, %v4315
      %4317 = vmatprep.mubr.f32.mxu0 0.0
      %4318 = vmatmul.mubr.f32.gmra.mxu0 %v3975
      %v4319 = vpop.f32.mrf.mxu0
      %v4320 = vadd.f32 %v4065, %v4319
      %v4321 = vpop.f32.mrf.mxu0
      %v4322 = vadd.f32 %v4069, %v4321
      %4323 = vmatprep.mubr.f32.mxu0 0.0
      %4324 = vmatmul.mubr.f32.gmra.mxu0 %v3976
      %v4325 = vpop.f32.mrf.mxu0
      %v4326 = vadd.f32 %v4065, %v4325
      %v4327 = vpop.f32.mrf.mxu0
      %v4328 = vadd.f32 %v4069, %v4327
      %4329 = vmatprep.mubr.f32.mxu0 0.0
      %4330 = vmatmul.mubr.f32.gmra.mxu0 %v3977
      %v4331 = vpop.f32.mrf.mxu0
      %v4332 = vadd.f32 %v4065, %v4331
      %v4333 = vpop.f32.mrf.mxu0
      %v4334 = vadd.f32 %v4069, %v4333
      %4335 = vmatprep.mubr.f32.mxu0 0.0
      %4336 = vmatmul.mubr.f32.gmra.mxu0 %v3978
      %v4337 = vpop.f32.mrf.mxu0
      %v4338 = vadd.f32 %v4065, %v4337
      %v4339 = vpop.f32.mrf.mxu0
      %v4340 = vadd.f32 %v4069, %v4339
      %4341 = vmatprep.mubr.f32.mxu0 0.0
      %4342 = vmatmul.mubr.f32.gmra.mxu0 %v3979
      %v4343 = vpop.f32.mrf.mxu0
      %v4344 = vadd.f32 %v4065, %v4343
      %v4345 = vpop.f32.mrf.mxu0
      %v4346 = vadd.f32 %v4069, %v4345
      %4347 = vmatprep.mubr.f32.mxu0 0.0
      %4348 = vmatmul.mubr.f32.gmra.mxu0 %v3980
      %v4349 = vpop.f32.mrf.mxu0
      %v4350 = vadd.f32 %v4065, %v4349
      %v4351 = vpop.f32.mrf.mxu0
      %v4352 = vadd.f32 %v4069, %v4351
      %4353 = vmatprep.mubr.f32.mxu0 0.0
      %4354 = vmatmul.mubr.f32.gmra.mxu0 %v3981
      %v4355 = vpop.f32.mrf.mxu0
      %v4356 = vadd.f32 %v4065, %v4355
      %v4357 = vpop.f32.mrf.mxu0
      %v4358 = vadd.f32 %v4069, %v4357
      %4359 = vmatprep.mubr.f32.mxu0 0.0
      %4360 = vmatmul.mubr.f32.gmra.mxu0 %v3982
      %v4361 = vpop.f32.mrf.mxu0
      %v4362 = vadd.f32 %v4065, %v4361
      %v4363 = vpop.f32.mrf.mxu0
      %v4364 = vadd.f32 %v4069, %v4363
      %4365 = vmatprep.mubr.f32.mxu0 0.0
      %4366 = vmatmul.mubr.f32.gmra.mxu0 %v3983
      %v4367 = vpop.f32.mrf.mxu0
      %v4368 = vadd.f32 %v4065, %v4367
      %v4369 = vpop.f32.mrf.mxu0
      %v4370 = vadd.f32 %v4069, %v4369
      %4371 = vmatprep.mubr.f32.mxu0 0.0
      %4372 = vmatmul.mubr.f32.gmra.mxu0 %v3984
      %v4373 = vpop.f32.mrf.mxu0
      %v4374 = vadd.f32 %v4065, %v4373
      %v4375 = vpop.f32.mrf.mxu0
      %v4376 = vadd.f32 %v4069, %v4375
      %4377 = vmatprep.mubr.f32.mxu0 0.0
      %4378 = vmatmul.mubr.f32.gmra.mxu0 %v3985
      %v4379 = vpop.f32.mrf.mxu0
      %v4380 = vadd.f32 %v4065, %v4379
      %v4381 = vpop.f32.mrf.mxu0
      %v4382 = vadd.f32 %v4069, %v4381
      %4383 = vmatprep.mubr.f32.mxu0 0.0
      %4384 = vmatmul.mubr.f32.gmra.mxu0 %v3986
      %v4385 = vpop.f32.mrf.mxu0
      %v4386 = vadd.f32 %v4065, %v4385
      %v4387 = vpop.f32.mrf.mxu0
      %v4388 = vadd.f32 %v4069, %v4387
      %4389 = vmatprep.mubr.f32.mxu0 0.0
      %4390 = vmatmul.mubr.f32.gmra.mxu0 %v3987
      %v4391 = vpop.f32.mrf.mxu0
      %v4392 = vadd.f32 %v4065, %v4391
      %v4393 = vpop.f32.mrf.mxu0
      %v4394 = vadd.f32 %v4069, %v4393
      %4395 = vdwg.mxu0
      %4396 = vst [vmem:[%s331] sm:$0xff] %v4141
      %4397 = vst [vmem:[%s331 + $0x8] sm:$0xff] %v4143
      %4398 = vst [vmem:[%s331 + $0x10] sm:$0xff] %v4302
      %4399 = vst [vmem:[%s331 + $0x18] sm:$0xff] %v4304
      %4400 = vst [vmem:[%s331 + $0x20] sm:$0xff] %v4147
      %4401 = vst [vmem:[%s331 + $0x28] sm:$0xff] %v4149
      %4402 = vst [vmem:[%s331 + $0x30] sm:$0xff] %v4308
      %4403 = vst [vmem:[%s331 + $0x38] sm:$0xff] %v4310
      %4404 = vst [vmem:[%s331 + $0x40] sm:$0xff] %v4153
      %4405 = vst [vmem:[%s331 + $0x48] sm:$0xff] %v4155
      %4406 = vst [vmem:[%s331 + $0x50] sm:$0xff] %v4314
      %4407 = vst [vmem:[%s331 + $0x58] sm:$0xff] %v4316
      %4408 = vst [vmem:[%s331 + $0x60] sm:$0xff] %v4159
      %4409 = vst [vmem:[%s331 + $0x68] sm:$0xff] %v4161
      %4410 = vst [vmem:[%s331 + $0x70] sm:$0xff] %v4320
      %4411 = vst [vmem:[%s331 + $0x78] sm:$0xff] %v4322
      %4412 = vst [vmem:[%s331 + $0x80] sm:$0xff] %v4165
      %4413 = vst [vmem:[%s331 + $0x88] sm:$0xff] %v4167
      %4414 = vst [vmem:[%s331 + $0x90] sm:$0xff] %v4326
      %4415 = vst [vmem:[%s331 + $0x98] sm:$0xff] %v4328
      %4416 = vst [vmem:[%s331 + $0xa0] sm:$0xff] %v4171
      %4417 = vst [vmem:[%s331 + $0xa8] sm:$0xff] %v4173
      %4418 = vst [vmem:[%s331 + $0xb0] sm:$0xff] %v4332
      %4419 = vst [vmem:[%s331 + $0xb8] sm:$0xff] %v4334
      %4420 = vst [vmem:[%s331 + $0xc0] sm:$0xff] %v4177
      %4421 = vst [vmem:[%s331 + $0xc8] sm:$0xff] %v4179
      %4422 = vst [vmem:[%s331 + $0xd0] sm:$0xff] %v4338
      %4423 = vst [vmem:[%s331 + $0xd8] sm:$0xff] %v4340
      %4424 = vst [vmem:[%s331 + $0xe0] sm:$0xff] %v4183
      %4425 = vst [vmem:[%s331 + $0xe8] sm:$0xff] %v4185
      %4426 = vst [vmem:[%s331 + $0xf0] sm:$0xff] %v4344
      %4427 = vst [vmem:[%s331 + $0xf8] sm:$0xff] %v4346
      %4428 = vst [vmem:[%s331 + $0x100] sm:$0xff] %v4189
      %4429 = vst [vmem:[%s331 + $0x108] sm:$0xff] %v4191
      %4430 = vst [vmem:[%s331 + $0x110] sm:$0xff] %v4350
      %4431 = vst [vmem:[%s331 + $0x118] sm:$0xff] %v4352
      %4432 = vst [vmem:[%s331 + $0x120] sm:$0xff] %v4195
      %4433 = vst [vmem:[%s331 + $0x128] sm:$0xff] %v4197
      %4434 = vst [vmem:[%s331 + $0x130] sm:$0xff] %v4356
      %4435 = vst [vmem:[%s331 + $0x138] sm:$0xff] %v4358
      %4436 = vst [vmem:[%s331 + $0x140] sm:$0xff] %v4201
      %4437 = vst [vmem:[%s331 + $0x148] sm:$0xff] %v4203
      %4438 = vst [vmem:[%s331 + $0x150] sm:$0xff] %v4362
      %4439 = vst [vmem:[%s331 + $0x158] sm:$0xff] %v4364
      %4440 = vst [vmem:[%s331 + $0x160] sm:$0xff] %v4207
      %4441 = vst [vmem:[%s331 + $0x168] sm:$0xff] %v4209
      %4442 = vst [vmem:[%s331 + $0x170] sm:$0xff] %v4368
      %4443 = vst [vmem:[%s331 + $0x178] sm:$0xff] %v4370
      %4444 = vst [vmem:[%s331 + $0x180] sm:$0xff] %v4213
      %4445 = vst [vmem:[%s331 + $0x188] sm:$0xff] %v4215
      %4446 = vst [vmem:[%s331 + $0x190] sm:$0xff] %v4374
      %4447 = vst [vmem:[%s331 + $0x198] sm:$0xff] %v4376
      %4448 = vst [vmem:[%s331 + $0x1a0] sm:$0xff] %v4219
      %4449 = vst [vmem:[%s331 + $0x1a8] sm:$0xff] %v4221
      %4450 = vst [vmem:[%s331 + $0x1b0] sm:$0xff] %v4380
      %4451 = vst [vmem:[%s331 + $0x1b8] sm:$0xff] %v4382
      %4452 = vst [vmem:[%s331 + $0x1c0] sm:$0xff] %v4225
      %4453 = vst [vmem:[%s331 + $0x1c8] sm:$0xff] %v4227
      %4454 = vst [vmem:[%s331 + $0x1d0] sm:$0xff] %v4386
      %4455 = vst [vmem:[%s331 + $0x1d8] sm:$0xff] %v4388
      %4456 = vst [vmem:[%s331 + $0x1e0] sm:$0xff] %v4231
      %4457 = vst [vmem:[%s331 + $0x1e8] sm:$0xff] %v4233
      %4458 = vst [vmem:[%s331 + $0x1f0] sm:$0xff] %v4392
      %4459 = vst [vmem:[%s331 + $0x1f8] sm:$0xff] %v4394
      %s4460 = smul.u32 16, %s19
      %p4461 = scmp.lt.s32.totalorder %s4460, 31
      %s4462 = scalar_select %p4461, %s4460, 31
      %s4463 = smul.addr %s4462, 4
      %s4464 = smul.addr %s4463, 8
      %s4465 = scalar_lea.vmem %s8, %s4464
      // Predicated region
      $region53: #{upblock3d.1} parent=51 // pred_check
        %p4466 = pneg %p215
      $region54: #{upblock3d.1} parent=51 // pred_check_branch
        %4468 = sbr.rel (%p4466) target = $region56
      $region55: #{upblock3d.1} parent=51 // pred_region
        %s4469 = smul.u32 16, %s19
      $region56: #{upblock3d.1} parent=51 // pred_fallthru
        _
    $region52: #{upblock3d.1} parent=5 // pred_fallthru
      _
    %p4470 = scmp.le.s32.totalorder 2, %s14
    // Predicated region
    $region57: #{upblock3d.1} parent=5 // pred_check
      %p4471 = pneg %p4470
    $region58: #{upblock3d.1} parent=5 // pred_check_branch
      %4473 = sbr.rel (%p4471) target = $region60
    $region59: #{upblock3d.1} parent=5 // pred_region
      %s4474 = ssub.s32 %s14, 2
      // Predicated region
      $region61: #{upblock3d.1} parent=59 // pred_check
        %p4475 = pneg %p221
      $region62: #{upblock3d.1} parent=59 // pred_check_branch
        %4477 = sbr.rel (%p4475) target = $region64
      $region63: #{upblock3d.1} parent=59 // pred_region
        %s4478 = smul.u32 16, %s20
        %p4479 = scmp.lt.s32.totalorder %s4478, 31
        %s4480 = scalar_select %p4479, %s4478, 31
        %s4481 = smul.addr %s4480, 4
        %s4482 = smul.addr %s4481, 8
        %s4483 = scalar_lea.vmem %s8, %s4482
      $region64: #{upblock3d.1} parent=59 // pred_fallthru
        _
    $region60: #{upblock3d.1} parent=5 // pred_fallthru
      _
  $region6: #{upblock3d.1} parent=0 // loop_footer
    %s18 = sadd.s32 1, %s14
  $region7: #{upblock3d.1} parent=0 // loop_footer_branch
    %13 = sbr.rel target = $region3
  $region8: #{upblock3d.1} parent=0 // loop_exit
    _

</llo_original>
